<compile_context>
chip_gen: v5e
topology: v5e:2x2
jax: 0.10.0
libtpu: 0.0.40
codegen_flags: <defaults>
</compile_context>

<pallas_src>
import numpy as np
import jax
import jax.numpy as jnp
from jax.experimental import pallas as pl
from jax.experimental.pallas import tpu as pltpu

RES_SCALE = 1.0      # default res_scale=1 in RCAB.__init__
KSIZE = 3            # kernel_size of the two body convolutions
PAD = KSIZE // 2     # "same" padding (default_conv pads kernel_size // 2)


def _pick_batch_block(n, h, target_m=256, max_m=1024):
    """Batch elements folded into one grid step (the matmul M dimension).

    Pick the smallest divisor of n whose NB*H reaches `target_m` (256-row MXU tile
    amortization on v6e/v7x; also >=128 for v5e).  If the whole batch cannot reach
    the target, fold it all into one fat step -- per-step pipeline overhead and
    duplicated weight pushes dominate tiny-M steps.  Cap M to keep VMEM blocks sane."""
    divs = [d for d in range(1, n + 1) if n % d == 0]
    reach = [d for d in divs if d * h >= target_m]
    nb = reach[0] if reach else n
    cap = max(max_m, h)
    if nb * h > cap:
        capped = [d for d in divs if d * h <= cap]
        if capped:
            nb = capped[-1]
    return nb


def pack_rcab_params(params, H, W, compute_dtype=jnp.bfloat16):
    """Repack RCAB parameters into kernel-ready, lane-dense form (done once, host side).

    * The per-tap conv weights (9, C, C) become banded (KSIZE, W*C, W*C) matrices that
      fold the three kx taps *and* the W-direction zero padding, so each 3x3 conv is
      three (M, W*C) @ (W*C, W*C) MXU matmuls over the ky rows.
    * The CALayer is pre-folded:  pooldown = pool @ W_down   (W*C, Cr)
                                  uptile   = W_up @ tile     (Cr, W*C)
      so inside the kernel the squeeze/excite is just two small batched matmuls.
    * All scalar-ish parameters live in one lane-dense (4, W*C) f32 slab:
      row 0: conv1 bias tiled over W; row 1: conv2 bias tiled; row 2: CA down bias
      (first Cr lanes); row 3: CA up bias tiled over W.
    """
    w1, b1, w2, b2, wd, bd, wu, bu = [np.asarray(p, np.float32) for p in params]
    C = w1.shape[-1]
    Cr = wd.shape[-1]
    WC = W * C

    def band(wt):                                        # wt: (9, C_in, C_out)
        m = np.zeros((KSIZE, W, C, W, C), np.float32)    # (ky, w_in, ci, w_out, co)
        for ky in range(KSIZE):
            for kx in range(KSIZE):
                dw = kx - PAD                            # input col = output col + dw
                for wo in range(W):
                    wi = wo + dw
                    if 0 <= wi < W:                      # out of range == zero padding
                        m[ky, wi, :, wo, :] = wt[ky * KSIZE + kx]
        return m.reshape(KSIZE, WC, WC)

    cd = compute_dtype
    w1b = jnp.asarray(band(w1), cd)
    w2b = jnp.asarray(band(w2), cd)

    pool = np.tile(np.eye(C, dtype=np.float32), (W, 1)) / float(H * W)   # (WC, C)
    tile = np.tile(np.eye(C, dtype=np.float32), (1, W))                  # (C, WC)
    pooldown = jnp.asarray(pool @ wd, jnp.float32)                       # (WC, Cr)
    uptile = jnp.asarray(wu @ tile, jnp.float32)                         # (Cr, WC)

    biases = np.zeros((4, WC), np.float32)
    biases[0] = np.tile(b1.reshape(-1), W)
    biases[1] = np.tile(b2.reshape(-1), W)
    biases[2, :Cr] = bd.reshape(-1)
    biases[3] = np.tile(bu.reshape(-1), W)
    return (w1b, w2b, jnp.asarray(biases), pooldown, uptile)


def rcab_kernel(x_ref, w1_ref, w2_ref, bias_ref, pd_ref, ut_ref,
                o_ref, pad_ref, res_ref):
    # x_ref   : (NB, H, W*C)        lane-dense input block (compute dtype)
    # w1/w2   : (KSIZE, W*C, W*C)   banded conv weights (kx taps + W padding folded in)
    # bias_ref: (4, W*C) f32        [b1 | b2 | bd (first Cr lanes) | bu tiled]
    # pd_ref  : (W*C, Cr) f32       pool @ W_down
    # ut_ref  : (Cr, W*C) f32       W_up @ tile
    # o_ref   : (NB, H, W*C)        lane-dense output block
    # pad_ref : (NB, H+2, W*C)      VMEM scratch, H-padded conv operand (reused x -> h1)
    # res_ref : (NB, H, W*C) f32    VMEM scratch for the conv2 output (bounds vreg use)
    NB, H, WC = x_ref.shape
    Hp = H + 2 * PAD
    M = NB * H
    Cr = pd_ref.shape[1]

    # ---- H-pad the input in VMEM (no HBM-side padded copy; borders re-zeroed every
    # step so the kernel stays correct under a "parallel" / megacore-split grid). ----
    zrow = jnp.zeros((NB, PAD, WC), pad_ref.dtype)
    pad_ref[:, 0:PAD, :] = zrow
    pad_ref[:, Hp - PAD:Hp, :] = zrow
    pad_ref[:, PAD:PAD + H, :] = x_ref[...]

    # ---- conv1 (3x3 "same") as 3 banded MXU matmuls + bias + ReLU ----
    # Note: the ky=1,2 lhs slices are sublane-shifted views; Mosaic may materialize a
    # small VMEM copy per tap (perf-only, see review item on v5e vector-store slots).
    acc = jnp.dot(pad_ref[:, 0:H, :].reshape(M, WC), w1_ref[0],
                  preferred_element_type=jnp.float32)
    for ky in range(1, KSIZE):
        acc += jnp.dot(pad_ref[:, ky:ky + H, :].reshape(M, WC), w1_ref[ky],
                       preferred_element_type=jnp.float32)
    h1 = jnp.maximum(acc + bias_ref[0:1, :], 0.0)

    # ---- reuse the padded scratch for the conv1 output (reads above already done;
    # border zero rows are still in place). ----
    pad_ref[:, PAD:PAD + H, :] = h1.reshape(NB, H, WC).astype(pad_ref.dtype)

    # ---- conv2 (3x3 "same") ----
    acc2 = jnp.dot(pad_ref[:, 0:H, :].reshape(M, WC), w2_ref[0],
                   preferred_element_type=jnp.float32)
    for ky in range(1, KSIZE):
        acc2 += jnp.dot(pad_ref[:, ky:ky + H, :].reshape(M, WC), w2_ref[ky],
                        preferred_element_type=jnp.float32)
    res = acc2 + bias_ref[1:2, :]                         # (M, W*C) float32
    res_ref[...] = res.reshape(NB, H, WC)                 # stage in VMEM, bound vregs

    # ---- CALayer, batched over the NB images in the block ----
    rowsum = jnp.sum(res_ref[...], axis=1)                # (NB, W*C)  sum over H
    z = jnp.maximum(jnp.dot(rowsum, pd_ref[...],          # global avg pool + 1x1 down
                            preferred_element_type=jnp.float32)
                    + bias_ref[2:3, 0:Cr], 0.0)           # (NB, Cr)
    y = jax.nn.sigmoid(jnp.dot(z, ut_ref[...],            # 1x1 up + channel tiling
                               preferred_element_type=jnp.float32)
                       + bias_ref[3:4, :])                # (NB, W*C)
    y = y.reshape(NB, 1, WC)

    # ---- gated residual ----
    x_f32 = x_ref[...].astype(jnp.float32)
    o_ref[...] = (res_ref[...] * y * RES_SCALE + x_f32).astype(o_ref.dtype)


def rcab_forward(x_nchw, packed, batch_block=None):
    """RCAB forward. x_nchw: (N, C, H, W); packed: output of pack_rcab_params(...)."""
    N, C, H, W = x_nchw.shape
    w1b, w2b, biases, pooldown, uptile = packed
    WC = W * C
    Hp = H + 2 * PAD
    Cr = pooldown.shape[1]
    compute_dtype = w1b.dtype
    NB = batch_block if batch_block is not None else _pick_batch_block(N, H)
    assert N % NB == 0, "batch_block must divide the batch size"
    # TODO(synk): for large images the (W*C)^2 banded weights / whole-row blocks stop
    # fitting VMEM (notably v7x's 64 MiB); add a halo-tiled (block-tridiagonal) W path.

    # NCHW -> NHWC -> lane-dense (N, H, W*C); H padding is done inside the kernel.
    x = jnp.transpose(x_nchw, (0, 2, 3, 1)).reshape(N, H, WC).astype(compute_dtype)

    isz = lambda dt: np.dtype(dt).itemsize
    cb = isz(compute_dtype)
    ob = isz(x_nchw.dtype)

    # HBM traffic / FLOPs the kernel actually executes (dense banded matmuls).
    w_hbm = 2 * KSIZE * WC * WC * cb + (4 * WC + WC * Cr + Cr * WC) * 4
    cost = pl.CostEstimate(
        flops=2 * KSIZE * 2 * N * H * WC * WC           # two convs, 3 dense ky matmuls
              + 4 * N * WC * Cr                         # folded CA matmuls
              + 3 * N * H * WC,                         # gate + residual elementwise
        transcendentals=N * WC,                         # sigmoid
        bytes_accessed=N * H * WC * (cb + ob) + w_hbm)

    # VMEM: double-buffered weights + in/out blocks, plus the two scratch buffers.
    pd_vmem = WC * max(Cr, 128) * 4                     # (WC, Cr) pads to 128 lanes
    ut_vmem = max(Cr, 8) * WC * 4
    w_vmem = 2 * KSIZE * WC * WC * cb + 8 * WC * 4 + pd_vmem + ut_vmem
    blk_vmem = NB * H * WC * (cb + ob)
    scratch_vmem = NB * Hp * WC * cb + NB * H * WC * 4
    vmem_limit = int(max(32 << 20,
                         min(96 << 20, 1.3 * (2 * (w_vmem + blk_vmem) + scratch_vmem))))

    out = pl.pallas_call(
        rcab_kernel,
        out_shape=jax.ShapeDtypeStruct((N, H, WC), x_nchw.dtype),
        grid_spec=pltpu.PrefetchScalarGridSpec(
            num_scalar_prefetch=0,
            grid=(N // NB,),
            in_specs=[
                pl.BlockSpec((NB, H, WC), lambda n: (n, 0, 0)),       # input (unpadded)
                pl.BlockSpec((KSIZE, WC, WC), lambda n: (0, 0, 0)),   # banded conv1 w
                pl.BlockSpec((KSIZE, WC, WC), lambda n: (0, 0, 0)),   # banded conv2 w
                pl.BlockSpec((4, WC), lambda n: (0, 0)),              # packed biases
                pl.BlockSpec(pooldown.shape, lambda n: (0, 0)),       # pool @ W_down
                pl.BlockSpec(uptile.shape, lambda n: (0, 0)),         # W_up @ tile
            ],
            out_specs=pl.BlockSpec((NB, H, WC), lambda n: (n, 0, 0)),
            scratch_shapes=[pltpu.VMEM((NB, Hp, WC), compute_dtype),  # H-padded operand
                            pltpu.VMEM((NB, H, WC), jnp.float32)],    # conv2 output
        ),
        compiler_params=pltpu.CompilerParams(
            dimension_semantics=("parallel",),      # batch axis -> both TCs on v7x
            vmem_limit_bytes=vmem_limit),
        cost_estimate=cost,
    )(x, w1b, w2b, biases, pooldown, uptile)

    return jnp.transpose(out.reshape(N, H, W, C), (0, 3, 1, 2))       # back to NCHW


def rcab_reference(x_nchw, params):
    """Pure-JAX reference (lax.conv) matching the PyTorch forward."""
    w1, b1, w2, b2, wd, bd, wu, bu = params
    x = jnp.transpose(x_nchw, (0, 2, 3, 1))
    C = x.shape[-1]
    dn = ('NHWC', 'HWIO', 'NHWC')
    w1_hwio = w1.reshape(KSIZE, KSIZE, C, C)
    w2_hwio = w2.reshape(KSIZE, KSIZE, C, C)
    h = jax.lax.conv_general_dilated(x, w1_hwio, (1, 1), 'SAME',
                                     dimension_numbers=dn) + b1.reshape(1, 1, 1, C)
    h = jnp.maximum(h, 0.0)
    r = jax.lax.conv_general_dilated(h, w2_hwio, (1, 1), 'SAME',
                                     dimension_numbers=dn) + b2.reshape(1, 1, 1, C)
    y = jnp.mean(r, axis=(1, 2), keepdims=True)
    y = jnp.maximum(jnp.einsum('nijc,cd->nijd', y, wd) + bd.reshape(1, 1, 1, -1), 0.0)
    y = jax.nn.sigmoid(jnp.einsum('nijd,dc->nijc', y, wu) + bu.reshape(1, 1, 1, C))
    out = r * y * RES_SCALE + x
    return jnp.transpose(out, (0, 3, 1, 2))


if __name__ == "__main__":
    # Shapes consistent with the module: n_feat=32, reduction=16 -> squeeze dim 2.
    N, C, H, W = 2, 32, 16, 16
    reduction = 16
    Cr = C // reduction

    key = jax.random.PRNGKey(0)
    ks = jax.random.split(key, 9)
    scale = 0.1
    x = jax.random.normal(ks[0], (N, C, H, W), jnp.float32)
    # Conv weights stored per-tap as (9, C_in, C_out); equivalent to HWIO reshaped.
    w1 = jax.random.normal(ks[1], (KSIZE * KSIZE, C, C), jnp.float32) * scale
    b1 = jax.random.normal(ks[2], (1, C), jnp.float32) * scale
    w2 = jax.random.normal(ks[3], (KSIZE * KSIZE, C, C), jnp.float32) * scale
    b2 = jax.random.normal(ks[4], (1, C), jnp.float32) * scale
    wd = jax.random.normal(ks[5], (C, Cr), jnp.float32) * scale
    bd = jax.random.normal(ks[6], (1, Cr), jnp.float32) * scale
    wu = jax.random.normal(ks[7], (Cr, C), jnp.float32) * scale
    bu = jax.random.normal(ks[8], (1, C), jnp.float32) * scale
    params = (w1, b1, w2, b2, wd, bd, wu, bu)

    fwd = jax.jit(rcab_forward, static_argnames=("batch_block",))
    ref = rcab_reference(x, params)

    # 1) strict f32 verification path (whole batch folded into one grid step, M=32).
    packed32 = pack_rcab_params(params, H, W, compute_dtype=jnp.float32)
    out32 = jax.block_until_ready(fwd(x, packed32))
    assert out32.shape == (N, C, H, W)
    err32 = float(jnp.max(jnp.abs(out32 - ref)))
    if err32 >= 1e-4:
        raise SystemExit(f"f32 mismatch vs reference: max abs err = {err32}")

    # 2) default (performance) path: bf16 operands, f32 accumulation.
    packed_bf = pack_rcab_params(params, H, W)
    out_bf = jax.block_until_ready(fwd(x, packed_bf))
    err_bf = float(jnp.max(jnp.abs(out_bf - ref)))
    if err_bf >= 1e-1:
        raise SystemExit(f"bf16 mismatch vs reference: max abs err = {err_bf}")

    # 3) larger batch folded into one fat-M step (N=8 -> NB=8, M=128), f32 strict.
    x2 = jax.random.normal(jax.random.PRNGKey(1), (8, C, H, W), jnp.float32)
    out2 = jax.block_until_ready(fwd(x2, packed32))
    err2 = float(jnp.max(jnp.abs(out2 - rcab_reference(x2, params))))
    if err2 >= 1e-4:
        raise SystemExit(f"f32 batched mismatch vs reference: max abs err = {err2}")

    print("KERNEL_OK")
</pallas_src>

<mosaic_0001>
module attributes {stable_mosaic.version = 11 : i64} {
  func.func @rcab_kernel(%arg0: i32, %arg1: memref<2x16x512xf32, #tpu.memory_space<vmem>>, %arg2: memref<3x512x512xf32, #tpu.memory_space<vmem>>, %arg3: memref<3x512x512xf32, #tpu.memory_space<vmem>>, %arg4: memref<4x512xf32, #tpu.memory_space<vmem>>, %arg5: memref<512x2xf32, #tpu.memory_space<vmem>>, %arg6: memref<2x512xf32, #tpu.memory_space<vmem>>, %arg7: memref<2x16x512xf32, #tpu.memory_space<vmem>>, %arg8: memref<2x18x512xf32, #tpu.memory_space<vmem>>, %arg9: memref<2x16x512xf32, #tpu.memory_space<vmem>>) attributes {dimension_semantics = [#tpu.dimension_semantics<parallel>], iteration_bounds = array<i64: 1>, scalar_prefetch = 0 : i64, scratch_operands = 2 : i64, tpu.core_type = #tpu.core_type<tc>, window_params = [{transform_indices = @transform_0, window_bounds = array<i64: 2, 16, 512>}, {pipeline_mode = #tpu.pipeline_mode<synchronous>, transform_indices = @transform_1, window_bounds = array<i64: 3, 512, 512>}, {pipeline_mode = #tpu.pipeline_mode<synchronous>, transform_indices = @transform_2, window_bounds = array<i64: 3, 512, 512>}, {pipeline_mode = #tpu.pipeline_mode<synchronous>, transform_indices = @transform_3, window_bounds = array<i64: 4, 512>}, {pipeline_mode = #tpu.pipeline_mode<synchronous>, transform_indices = @transform_4, window_bounds = array<i64: 512, 2>}, {pipeline_mode = #tpu.pipeline_mode<synchronous>, transform_indices = @transform_5, window_bounds = array<i64: 2, 512>}, {transform_indices = @transform_6, window_bounds = array<i64: 2, 16, 512>}]} {
    %cst = arith.constant 0.000000e+00 : f32
    %0 = vector.broadcast %cst : f32 to vector<2x1x512xf32>
    %c0 = arith.constant 0 : index
    %c0_0 = arith.constant 0 : index
    %c0_1 = arith.constant 0 : index
    %1 = vector.load %arg8[%c0, %c0_0, %c0_1] : memref<2x18x512xf32, #tpu.memory_space<vmem>>, vector<2x1x512xf32>
    tpu.vector_store %arg8[%c0, %c0_0, %c0_1], %0 {strides = array<i32>} : memref<2x18x512xf32, #tpu.memory_space<vmem>>, vector<2x1x512xf32>,
    %c0_2 = arith.constant 0 : index
    %c17 = arith.constant 17 : index
    %c0_3 = arith.constant 0 : index
    %2 = vector.load %arg8[%c0_2, %c17, %c0_3] : memref<2x18x512xf32, #tpu.memory_space<vmem>>, vector<2x1x512xf32>
    tpu.vector_store %arg8[%c0_2, %c17, %c0_3], %0 {strides = array<i32>} : memref<2x18x512xf32, #tpu.memory_space<vmem>>, vector<2x1x512xf32>,
    %c0_4 = arith.constant 0 : index
    %c0_5 = arith.constant 0 : index
    %c0_6 = arith.constant 0 : index
    %3 = vector.load %arg1[%c0_4, %c0_5, %c0_6] : memref<2x16x512xf32, #tpu.memory_space<vmem>>, vector<2x16x512xf32>
    %c0_7 = arith.constant 0 : index
    %c1 = arith.constant 1 : index
    %c0_8 = arith.constant 0 : index
    %4 = vector.load %arg8[%c0_7, %c1, %c0_8] : memref<2x18x512xf32, #tpu.memory_space<vmem>>, vector<2x16x512xf32>
    tpu.vector_store %arg8[%c0_7, %c1, %c0_8], %3 {strides = array<i32>} : memref<2x18x512xf32, #tpu.memory_space<vmem>>, vector<2x16x512xf32>,
    %c0_9 = arith.constant 0 : index
    %c0_10 = arith.constant 0 : index
    %c0_11 = arith.constant 0 : index
    %5 = vector.load %arg8[%c0_9, %c0_10, %c0_11] : memref<2x18x512xf32, #tpu.memory_space<vmem>>, vector<2x16x512xf32>
    %6 = vector.shape_cast %5 : vector<2x16x512xf32> to vector<32x512xf32>
    %c0_12 = arith.constant 0 : index
    %c0_13 = arith.constant 0 : index
    %c0_14 = arith.constant 0 : index
    %7 = vector.load %arg2[%c0_12, %c0_13, %c0_14] : memref<3x512x512xf32, #tpu.memory_space<vmem>>, vector<1x512x512xf32>
    %8 = vector.shape_cast %7 : vector<1x512x512xf32> to vector<512x512xf32>
    %cst_15 = arith.constant dense<0.000000e+00> : vector<32x512xf32>
    %9 = tpu.matmul %6, %8, %cst_15 {dimension_numbers = #tpu.dot_dimension_numbers<[1], [0], [0], [1], [0, 0, 1, 1], [], []>} : vector<32x512xf32>, vector<512x512xf32>, vector<32x512xf32> -> vector<32x512xf32>
    %c0_16 = arith.constant 0 : index
    %c1_17 = arith.constant 1 : index
    %c0_18 = arith.constant 0 : index
    %10 = vector.load %arg8[%c0_16, %c1_17, %c0_18] : memref<2x18x512xf32, #tpu.memory_space<vmem>>, vector<2x16x512xf32>
    %11 = vector.shape_cast %10 : vector<2x16x512xf32> to vector<32x512xf32>
    %c1_19 = arith.constant 1 : index
    %c0_20 = arith.constant 0 : index
    %c0_21 = arith.constant 0 : index
    %12 = vector.load %arg2[%c1_19, %c0_20, %c0_21] : memref<3x512x512xf32, #tpu.memory_space<vmem>>, vector<1x512x512xf32>
    %13 = vector.shape_cast %12 : vector<1x512x512xf32> to vector<512x512xf32>
    %cst_22 = arith.constant dense<0.000000e+00> : vector<32x512xf32>
    %14 = tpu.matmul %11, %13, %cst_22 {dimension_numbers = #tpu.dot_dimension_numbers<[1], [0], [0], [1], [0, 0, 1, 1], [], []>} : vector<32x512xf32>, vector<512x512xf32>, vector<32x512xf32> -> vector<32x512xf32>
    %15 = arith.addf %9, %14 : vector<32x512xf32>
    %c0_23 = arith.constant 0 : index
    %c2 = arith.constant 2 : index
    %c0_24 = arith.constant 0 : index
    %16 = vector.load %arg8[%c0_23, %c2, %c0_24] : memref<2x18x512xf32, #tpu.memory_space<vmem>>, vector<2x16x512xf32>
    %17 = vector.shape_cast %16 : vector<2x16x512xf32> to vector<32x512xf32>
    %c2_25 = arith.constant 2 : index
    %c0_26 = arith.constant 0 : index
    %c0_27 = arith.constant 0 : index
    %18 = vector.load %arg2[%c2_25, %c0_26, %c0_27] : memref<3x512x512xf32, #tpu.memory_space<vmem>>, vector<1x512x512xf32>
    %19 = vector.shape_cast %18 : vector<1x512x512xf32> to vector<512x512xf32>
    %cst_28 = arith.constant dense<0.000000e+00> : vector<32x512xf32>
    %20 = tpu.matmul %17, %19, %cst_28 {dimension_numbers = #tpu.dot_dimension_numbers<[1], [0], [0], [1], [0, 0, 1, 1], [], []>} : vector<32x512xf32>, vector<512x512xf32>, vector<32x512xf32> -> vector<32x512xf32>
    %21 = arith.addf %15, %20 : vector<32x512xf32>
    %c0_29 = arith.constant 0 : index
    %c0_30 = arith.constant 0 : index
    %22 = vector.load %arg4[%c0_29, %c0_30] : memref<4x512xf32, #tpu.memory_space<vmem>>, vector<1x512xf32>
    %23 = vector.broadcast %22 : vector<1x512xf32> to vector<32x512xf32>
    %24 = arith.addf %21, %23 : vector<32x512xf32>
    %cst_31 = arith.constant 0.000000e+00 : f32
    %25 = vector.broadcast %cst_31 : f32 to vector<32x512xf32>
    %26 = arith.maximumf %24, %25 : vector<32x512xf32>
    %27 = vector.shape_cast %26 : vector<32x512xf32> to vector<2x16x512xf32>
    %c0_32 = arith.constant 0 : index
    %c1_33 = arith.constant 1 : index
    %c0_34 = arith.constant 0 : index
    %28 = vector.load %arg8[%c0_32, %c1_33, %c0_34] : memref<2x18x512xf32, #tpu.memory_space<vmem>>, vector<2x16x512xf32>
    tpu.vector_store %arg8[%c0_32, %c1_33, %c0_34], %27 {strides = array<i32>} : memref<2x18x512xf32, #tpu.memory_space<vmem>>, vector<2x16x512xf32>,
    %c0_35 = arith.constant 0 : index
    %c0_36 = arith.constant 0 : index
    %c0_37 = arith.constant 0 : index
    %29 = vector.load %arg8[%c0_35, %c0_36, %c0_37] : memref<2x18x512xf32, #tpu.memory_space<vmem>>, vector<2x16x512xf32>
    %30 = vector.shape_cast %29 : vector<2x16x512xf32> to vector<32x512xf32>
    %c0_38 = arith.constant 0 : index
    %c0_39 = arith.constant 0 : index
    %c0_40 = arith.constant 0 : index
    %31 = vector.load %arg3[%c0_38, %c0_39, %c0_40] : memref<3x512x512xf32, #tpu.memory_space<vmem>>, vector<1x512x512xf32>
    %32 = vector.shape_cast %31 : vector<1x512x512xf32> to vector<512x512xf32>
    %cst_41 = arith.constant dense<0.000000e+00> : vector<32x512xf32>
    %33 = tpu.matmul %30, %32, %cst_41 {dimension_numbers = #tpu.dot_dimension_numbers<[1], [0], [0], [1], [0, 0, 1, 1], [], []>} : vector<32x512xf32>, vector<512x512xf32>, vector<32x512xf32> -> vector<32x512xf32>
    %c0_42 = arith.constant 0 : index
    %c1_43 = arith.constant 1 : index
    %c0_44 = arith.constant 0 : index
    %34 = vector.load %arg8[%c0_42, %c1_43, %c0_44] : memref<2x18x512xf32, #tpu.memory_space<vmem>>, vector<2x16x512xf32>
    %35 = vector.shape_cast %34 : vector<2x16x512xf32> to vector<32x512xf32>
    %c1_45 = arith.constant 1 : index
    %c0_46 = arith.constant 0 : index
    %c0_47 = arith.constant 0 : index
    %36 = vector.load %arg3[%c1_45, %c0_46, %c0_47] : memref<3x512x512xf32, #tpu.memory_space<vmem>>, vector<1x512x512xf32>
    %37 = vector.shape_cast %36 : vector<1x512x512xf32> to vector<512x512xf32>
    %cst_48 = arith.constant dense<0.000000e+00> : vector<32x512xf32>
    %38 = tpu.matmul %35, %37, %cst_48 {dimension_numbers = #tpu.dot_dimension_numbers<[1], [0], [0], [1], [0, 0, 1, 1], [], []>} : vector<32x512xf32>, vector<512x512xf32>, vector<32x512xf32> -> vector<32x512xf32>
    %39 = arith.addf %33, %38 : vector<32x512xf32>
    %c0_49 = arith.constant 0 : index
    %c2_50 = arith.constant 2 : index
    %c0_51 = arith.constant 0 : index
    %40 = vector.load %arg8[%c0_49, %c2_50, %c0_51] : memref<2x18x512xf32, #tpu.memory_space<vmem>>, vector<2x16x512xf32>
    %41 = vector.shape_cast %40 : vector<2x16x512xf32> to vector<32x512xf32>
    %c2_52 = arith.constant 2 : index
    %c0_53 = arith.constant 0 : index
    %c0_54 = arith.constant 0 : index
    %42 = vector.load %arg3[%c2_52, %c0_53, %c0_54] : memref<3x512x512xf32, #tpu.memory_space<vmem>>, vector<1x512x512xf32>
    %43 = vector.shape_cast %42 : vector<1x512x512xf32> to vector<512x512xf32>
    %cst_55 = arith.constant dense<0.000000e+00> : vector<32x512xf32>
    %44 = tpu.matmul %41, %43, %cst_55 {dimension_numbers = #tpu.dot_dimension_numbers<[1], [0], [0], [1], [0, 0, 1, 1], [], []>} : vector<32x512xf32>, vector<512x512xf32>, vector<32x512xf32> -> vector<32x512xf32>
    %45 = arith.addf %39, %44 : vector<32x512xf32>
    %c1_56 = arith.constant 1 : index
    %c0_57 = arith.constant 0 : index
    %46 = vector.load %arg4[%c1_56, %c0_57] : memref<4x512xf32, #tpu.memory_space<vmem>>, vector<1x512xf32>
    %47 = vector.broadcast %46 : vector<1x512xf32> to vector<32x512xf32>
    %48 = arith.addf %45, %47 : vector<32x512xf32>
    %49 = vector.shape_cast %48 : vector<32x512xf32> to vector<2x16x512xf32>
    %c0_58 = arith.constant 0 : index
    %c0_59 = arith.constant 0 : index
    %c0_60 = arith.constant 0 : index
    %50 = vector.load %arg9[%c0_58, %c0_59, %c0_60] : memref<2x16x512xf32, #tpu.memory_space<vmem>>, vector<2x16x512xf32>
    tpu.vector_store %arg9[%c0_58, %c0_59, %c0_60], %49 {strides = array<i32>} : memref<2x16x512xf32, #tpu.memory_space<vmem>>, vector<2x16x512xf32>,
    %c0_61 = arith.constant 0 : index
    %c0_62 = arith.constant 0 : index
    %c0_63 = arith.constant 0 : index
    %51 = vector.load %arg9[%c0_61, %c0_62, %c0_63] : memref<2x16x512xf32, #tpu.memory_space<vmem>>, vector<2x16x512xf32>
    %cst_64 = arith.constant dense<0.000000e+00> : vector<2x512xf32>
    %52 = vector.multi_reduction <add>, %51, %cst_64 [1] : vector<2x16x512xf32> to vector<2x512xf32>
    %c0_65 = arith.constant 0 : index
    %c0_66 = arith.constant 0 : index
    %53 = vector.load %arg5[%c0_65, %c0_66] : memref<512x2xf32, #tpu.memory_space<vmem>>, vector<512x2xf32>
    %cst_67 = arith.constant dense<0.000000e+00> : vector<2x2xf32>
    %54 = tpu.matmul %52, %53, %cst_67 {dimension_numbers = #tpu.dot_dimension_numbers<[1], [0], [0], [1], [0, 0, 1, 1], [], []>} : vector<2x512xf32>, vector<512x2xf32>, vector<2x2xf32> -> vector<2x2xf32>
    %c2_68 = arith.constant 2 : index
    %c0_69 = arith.constant 0 : index
    %55 = vector.load %arg4[%c2_68, %c0_69] : memref<4x512xf32, #tpu.memory_space<vmem>>, vector<1x2xf32>
    %56 = vector.broadcast %55 : vector<1x2xf32> to vector<2x2xf32>
    %57 = arith.addf %54, %56 : vector<2x2xf32>
    %cst_70 = arith.constant 0.000000e+00 : f32
    %58 = vector.broadcast %cst_70 : f32 to vector<2x2xf32>
    %59 = arith.maximumf %57, %58 : vector<2x2xf32>
    %c0_71 = arith.constant 0 : index
    %c0_72 = arith.constant 0 : index
    %60 = vector.load %arg6[%c0_71, %c0_72] : memref<2x512xf32, #tpu.memory_space<vmem>>, vector<2x512xf32>
    %cst_73 = arith.constant dense<0.000000e+00> : vector<2x512xf32>
    %61 = tpu.matmul %59, %60, %cst_73 {dimension_numbers = #tpu.dot_dimension_numbers<[1], [0], [0], [1], [0, 0, 1, 1], [], []>} : vector<2x2xf32>, vector<2x512xf32>, vector<2x512xf32> -> vector<2x512xf32>
    %c3 = arith.constant 3 : index
    %c0_74 = arith.constant 0 : index
    %62 = vector.load %arg4[%c3, %c0_74] : memref<4x512xf32, #tpu.memory_space<vmem>>, vector<1x512xf32>
    %63 = vector.broadcast %62 : vector<1x512xf32> to vector<2x512xf32>
    %64 = arith.addf %61, %63 : vector<2x512xf32>
    %65 = arith.negf %64 : vector<2x512xf32>
    %66 = math.exp %65 : vector<2x512xf32>
    %cst_75 = arith.constant 1.000000e+00 : f32
    %67 = vector.broadcast %cst_75 : f32 to vector<2x512xf32>
    %68 = arith.addf %67, %66 : vector<2x512xf32>
    %69 = arith.divf %67, %68 : vector<2x512xf32>
    %70 = vector.shape_cast %69 : vector<2x512xf32> to vector<2x1x512xf32>
    %c0_76 = arith.constant 0 : index
    %c0_77 = arith.constant 0 : index
    %c0_78 = arith.constant 0 : index
    %71 = vector.load %arg1[%c0_76, %c0_77, %c0_78] : memref<2x16x512xf32, #tpu.memory_space<vmem>>, vector<2x16x512xf32>
    %c0_79 = arith.constant 0 : index
    %c0_80 = arith.constant 0 : index
    %c0_81 = arith.constant 0 : index
    %72 = vector.load %arg9[%c0_79, %c0_80, %c0_81] : memref<2x16x512xf32, #tpu.memory_space<vmem>>, vector<2x16x512xf32>
    %73 = vector.broadcast %70 : vector<2x1x512xf32> to vector<2x16x512xf32>
    %74 = arith.mulf %72, %73 : vector<2x16x512xf32>
    %cst_82 = arith.constant 1.000000e+00 : f32
    %75 = vector.broadcast %cst_82 : f32 to vector<2x16x512xf32>
    %76 = arith.mulf %74, %75 : vector<2x16x512xf32>
    %77 = arith.addf %76, %71 : vector<2x16x512xf32>
    %c0_83 = arith.constant 0 : index
    %c0_84 = arith.constant 0 : index
    %c0_85 = arith.constant 0 : index
    %78 = vector.load %arg7[%c0_83, %c0_84, %c0_85] : memref<2x16x512xf32, #tpu.memory_space<vmem>>, vector<2x16x512xf32>
    tpu.vector_store %arg7[%c0_83, %c0_84, %c0_85], %77 {strides = array<i32>} : memref<2x16x512xf32, #tpu.memory_space<vmem>>, vector<2x16x512xf32>,
    return
  }
  func.func @transform_0(%arg0: i32) -> (i32, i32, i32) {
    %c0_i32 = arith.constant 0 : i32
    %c0_i32_0 = arith.constant 0 : i32
    %c0_i32_1 = arith.constant 0 : i32
    return %arg0, %c0_i32, %c0_i32_0 : i32, i32, i32
  }
  func.func @transform_1(%arg0: i32) -> (i32, i32, i32) {
    %c0_i32 = arith.constant 0 : i32
    %c0_i32_0 = arith.constant 0 : i32
    %c0_i32_1 = arith.constant 0 : i32
    %c0_i32_2 = arith.constant 0 : i32
    return %c0_i32, %c0_i32_0, %c0_i32_1 : i32, i32, i32
  }
  func.func @transform_2(%arg0: i32) -> (i32, i32, i32) {
    %c0_i32 = arith.constant 0 : i32
    %c0_i32_0 = arith.constant 0 : i32
    %c0_i32_1 = arith.constant 0 : i32
    %c0_i32_2 = arith.constant 0 : i32
    return %c0_i32, %c0_i32_0, %c0_i32_1 : i32, i32, i32
  }
  func.func @transform_3(%arg0: i32) -> (i32, i32) {
    %c0_i32 = arith.constant 0 : i32
    %c0_i32_0 = arith.constant 0 : i32
    %c0_i32_1 = arith.constant 0 : i32
    return %c0_i32, %c0_i32_0 : i32, i32
  }
  func.func @transform_4(%arg0: i32) -> (i32, i32) {
    %c0_i32 = arith.constant 0 : i32
    %c0_i32_0 = arith.constant 0 : i32
    %c0_i32_1 = arith.constant 0 : i32
    return %c0_i32, %c0_i32_0 : i32, i32
  }
  func.func @transform_5(%arg0: i32) -> (i32, i32) {
    %c0_i32 = arith.constant 0 : i32
    %c0_i32_0 = arith.constant 0 : i32
    %c0_i32_1 = arith.constant 0 : i32
    return %c0_i32, %c0_i32_0 : i32, i32
  }
  func.func @transform_6(%arg0: i32) -> (i32, i32, i32) {
    %c0_i32 = arith.constant 0 : i32
    %c0_i32_0 = arith.constant 0 : i32
    %c0_i32_1 = arith.constant 0 : i32
    return %arg0, %c0_i32, %c0_i32_0 : i32, i32, i32
  }
}

</mosaic_0001>

<llo_original>
// kernel: rcab_forward.1
$region0: #{rcab_forward.1}
  #allocation0 [shape = 'u32[]', space=smem, size = 0x4, offset = 0x4, fixed_abs, tag = 'smem constant byte address 0x4 - core index']
  #allocation1 [shape = 'u32[72,128]{1,0:T(1,128)}', space=vmem, size = 0x9000, scoped, tag = 'internal scratch']
  #allocation2 [shape = 'f32[2,18,512]{2,1,0:T(8,128)}', space=vmem, size = 0x18000, scoped, tag = 'scratch operand']
  #allocation3 [shape = 'f32[2,16,512]{2,1,0:T(8,128)}', space=vmem, size = 0x10000, scoped, tag = 'scratch operand']
  %s0 = inlined_call_operand.vmem [shape: f32[2,16,512], index: 0, kind: input, shape index: {}]
  %s1 = inlined_call_operand.hbm [shape: f32[3,512,512], index: 1, kind: input, shape index: {}]
  %s2 = inlined_call_operand.hbm [shape: f32[3,512,512], index: 2, kind: input, shape index: {}]
  %s3 = inlined_call_operand.hbm [shape: f32[4,512], index: 3, kind: input, shape index: {}]
  %s4 = inlined_call_operand.vmem [shape: f32[512,2], index: 4, kind: input, shape index: {}]
  %s5 = inlined_call_operand.hbm [shape: f32[2,512], index: 5, kind: input, shape index: {}]
  %s6 = inlined_call_operand.vmem [shape: f32[2,16,512], index: 6, kind: output, shape index: {}]
  %s7 = sld [smem:[#allocation0]]
  $region50: #{rcab_forward.1} parent=0
    _
  %s9 = ssub.s32 1, %s7
  %s10 = scalar_select 0, %s9, %s7
  $region1: #{rcab_forward.1} parent=0
    #allocation4 [shape = 'u8[3145728]{0}', space=vmem, size = 0x300000, scoped, tag = 'input window, operand 1, single buffered']
    #allocation5 [shape = 's32[1]{0}', space=sflag, size = 0x4, scoped, tag = 'scoped memory for rcab_forward.1']
    #allocation6 [shape = 'u8[3145728]{0}', space=vmem, size = 0x300000, scoped, tag = 'input window, operand 2, single buffered']
    #allocation7 [shape = 's32[1]{0}', space=sflag, size = 0x4, scoped, tag = 'scoped memory for rcab_forward.1']
    #allocation8 [shape = 'u8[8192]{0}', space=vmem, size = 0x2000, scoped, tag = 'input window, operand 3, single buffered']
    #allocation9 [shape = 'u8[4096]{0}', space=vmem, size = 0x1000, scoped, tag = 'input window, operand 5, single buffered']
    #allocation10 [shape = 's32[1]{0}', space=sflag, size = 0x4, scoped, tag = 'scoped memory for rcab_forward.1']
    %11 = vsyncpa [#allocation5], 0
    %12 = vsyncpa [#allocation7], 0
    %13 = vsyncpa [#allocation10], 0
    // Predicated region
    $region2: #{rcab_forward.1} parent=1 // pred_check
      _
    $region3: #{rcab_forward.1} parent=1 // pred_check_branch
      %15 = sbr.rel (0) target = $region5
    $region4: #{rcab_forward.1} parent=1 // pred_region
      _
    $region5: #{rcab_forward.1} parent=1 // pred_fallthru
      _
    // Predicated region
    $region6: #{rcab_forward.1} parent=1 // pred_check
      _
    $region7: #{rcab_forward.1} parent=1 // pred_check_branch
      %17 = sbr.rel (0) target = $region9
    $region8: #{rcab_forward.1} parent=1 // pred_region
      %19 = vsyncadd [#allocation5], 0
      %s20 = sshll.u32 %s1, 4
      %s21 = int_to_ptr.hbm [resolvable:$true] %s20
      %s22 = sshll.u32 [#allocation4], 4
      %s23 = int_to_ptr.vmem [resolvable:$true] %s22
      %28 = dma.hbm_to_vmem [thread:$0]  %s21, 98304, %s23, [#allocation5], 512, 512, 32
    $region9: #{rcab_forward.1} parent=1 // pred_fallthru
      _
    // Predicated region
    $region10: #{rcab_forward.1} parent=1 // pred_check
      _
    $region11: #{rcab_forward.1} parent=1 // pred_check_branch
      %30 = sbr.rel (0) target = $region13
    $region12: #{rcab_forward.1} parent=1 // pred_region
      %32 = vsyncadd [#allocation7], 0
      %s33 = sshll.u32 %s2, 4
      %s34 = int_to_ptr.hbm [resolvable:$true] %s33
      %s35 = sshll.u32 [#allocation6], 4
      %s36 = int_to_ptr.vmem [resolvable:$true] %s35
      %41 = dma.hbm_to_vmem [thread:$0]  %s34, 98304, %s36, [#allocation7], 512, 512, 32
    $region13: #{rcab_forward.1} parent=1 // pred_fallthru
      _
    // Predicated region
    $region14: #{rcab_forward.1} parent=1 // pred_check
      _
    $region15: #{rcab_forward.1} parent=1 // pred_check_branch
      %43 = sbr.rel (0) target = $region17
    $region16: #{rcab_forward.1} parent=1 // pred_region
      %45 = vsyncadd [#allocation7], 0
      %s47 = sshll.u32 %s3, 4
      %s48 = int_to_ptr.hbm [resolvable:$true] %s47
      %s49 = sshll.u32 [#allocation8], 4
      %s50 = int_to_ptr.vmem [resolvable:$true] %s49
      %52 = dma.hbm_to_vmem [thread:$0]  %s48, 256, %s50, [#allocation7]
    $region17: #{rcab_forward.1} parent=1 // pred_fallthru
      _
    // Predicated region
    $region18: #{rcab_forward.1} parent=1 // pred_check
      _
    $region19: #{rcab_forward.1} parent=1 // pred_check_branch
      %54 = sbr.rel (0) target = $region21
    $region20: #{rcab_forward.1} parent=1 // pred_region
      _
    $region21: #{rcab_forward.1} parent=1 // pred_fallthru
      _
    // Predicated region
    $region22: #{rcab_forward.1} parent=1 // pred_check
      _
    $region23: #{rcab_forward.1} parent=1 // pred_check_branch
      %56 = sbr.rel (0) target = $region25
    $region24: #{rcab_forward.1} parent=1 // pred_region
      %58 = vsyncadd [#allocation10], 0
      %s60 = sshll.u32 %s5, 4
      %s61 = int_to_ptr.hbm [resolvable:$true] %s60
      %s62 = sshll.u32 [#allocation9], 4
      %s63 = int_to_ptr.vmem [resolvable:$true] %s62
      %65 = dma.hbm_to_vmem [thread:$0]  %s61, 128, %s63, [#allocation10]
    $region25: #{rcab_forward.1} parent=1 // pred_fallthru
      _
    // Predicated region
    $region26: #{rcab_forward.1} parent=1 // pred_check
      _
    $region27: #{rcab_forward.1} parent=1 // pred_check_branch
      %67 = sbr.rel (0) target = $region29
    $region28: #{rcab_forward.1} parent=1 // pred_region
      %69 = dma.done [#allocation5], 98304
    $region29: #{rcab_forward.1} parent=1 // pred_fallthru
      _
    // Predicated region
    $region30: #{rcab_forward.1} parent=1 // pred_check
      _
    $region31: #{rcab_forward.1} parent=1 // pred_check_branch
      %71 = sbr.rel (0) target = $region33
    $region32: #{rcab_forward.1} parent=1 // pred_region
      %73 = dma.done [#allocation7], 98304
    $region33: #{rcab_forward.1} parent=1 // pred_fallthru
      _
    // Predicated region
    $region34: #{rcab_forward.1} parent=1 // pred_check
      _
    $region35: #{rcab_forward.1} parent=1 // pred_check_branch
      %75 = sbr.rel (0) target = $region37
    $region36: #{rcab_forward.1} parent=1 // pred_region
      %77 = dma.done [#allocation7], 256
    $region37: #{rcab_forward.1} parent=1 // pred_fallthru
      _
    // Predicated region
    $region38: #{rcab_forward.1} parent=1 // pred_check
      _
    $region39: #{rcab_forward.1} parent=1 // pred_check_branch
      %79 = sbr.rel (0) target = $region41
    $region40: #{rcab_forward.1} parent=1 // pred_region
      %81 = dma.done [#allocation10], 128
    $region41: #{rcab_forward.1} parent=1 // pred_fallthru
      _
    %v82 = vlaneseq
    %vm83 = vcmp.ge.s32.totalorder %v82, 0
    %vm84 = vcmp.lt.s32.totalorder %v82, 512
    %vm85 = vmand %vm83, %vm84
    %86 = vst.msk [vmem:[#allocation2] ss:$8 sm:$0xf] %vm85, 0.0
    %87 = vst.msk [vmem:[#allocation2] ss:$8 sm:$0x0] %vm85, 0.0
    %s88 = scalar_lea.vmem [#allocation2], 96
    %89 = vst.msk [vmem:[%s88] ss:$8 sm:$0xf] %vm85, 0.0
    %90 = vst.msk [vmem:[%s88] ss:$8 sm:$0x0] %vm85, 0.0
    %s91 = scalar_lea.vmem [#allocation2], 65
    %92 = vst.msk [vmem:[%s91] ss:$8 sm:$0xf] %vm85, 0.0
    %93 = vst.msk [vmem:[%s91] ss:$8 sm:$0x0] %vm85, 0.0
    %s94 = scalar_lea.vmem [#allocation2], 161
    %95 = vst.msk [vmem:[%s94] ss:$8 sm:$0xf] %vm85, 0.0
    %96 = vst.msk [vmem:[%s94] ss:$8 sm:$0x0] %vm85, 0.0
    %v97 = vld [vmem:[%s0] sm:$0xff]
    %v98 = vld [vmem:[%s0 + $0x8] sm:$0xff]
    %v99 = vld [vmem:[%s0 + $0x10] sm:$0xff]
    %v100 = vld [vmem:[%s0 + $0x18] sm:$0xff]
    %v101 = vld [vmem:[%s0 + $0x20] sm:$0xff]
    %v102 = vld [vmem:[%s0 + $0x28] sm:$0xff]
    %v103 = vld [vmem:[%s0 + $0x30] sm:$0xff]
    %v104 = vld [vmem:[%s0 + $0x38] sm:$0xff]
    %v105 = vld [vmem:[%s0 + $0x40] sm:$0xff]
    %v106 = vld [vmem:[%s0 + $0x48] sm:$0xff]
    %v107 = vld [vmem:[%s0 + $0x50] sm:$0xff]
    %v108 = vld [vmem:[%s0 + $0x58] sm:$0xff]
    %v109 = vld [vmem:[%s0 + $0x60] sm:$0xff]
    %v110 = vld [vmem:[%s0 + $0x68] sm:$0xff]
    %v111 = vld [vmem:[%s0 + $0x70] sm:$0xff]
    %v112 = vld [vmem:[%s0 + $0x78] sm:$0xff]
    %vm129 = vcmask 1040384
    %v130 = vrot.slane %v97, 7
    %v131 = vrot.slane %v98, 7
    %v132 = vrot.slane %v99, 7
    %v133 = vrot.slane %v100, 7
    %v134 = vrot.slane %v101, 7
    %v135 = vsel %vm129, %v130, %v134
    %v136 = vrot.slane %v102, 7
    %v137 = vsel %vm129, %v131, %v136
    %v138 = vrot.slane %v103, 7
    %v139 = vsel %vm129, %v132, %v138
    %v140 = vrot.slane %v104, 7
    %v141 = vsel %vm129, %v133, %v140
    %v142 = vrot.slane %v105, 7
    %v143 = vrot.slane %v106, 7
    %v144 = vrot.slane %v107, 7
    %v145 = vrot.slane %v108, 7
    %v146 = vrot.slane %v109, 7
    %v147 = vsel %vm129, %v142, %v146
    %v148 = vrot.slane %v110, 7
    %v149 = vsel %vm129, %v143, %v148
    %v150 = vrot.slane %v111, 7
    %v151 = vsel %vm129, %v144, %v150
    %v152 = vrot.slane %v112, 7
    %v153 = vsel %vm129, %v145, %v152
    %178 = vst [vmem:[#allocation2] sm:$0xfe] %v130
    %179 = vst [vmem:[#allocation2 + $0x8] sm:$0xfe] %v131
    %180 = vst [vmem:[#allocation2 + $0x10] sm:$0xfe] %v132
    %181 = vst [vmem:[#allocation2 + $0x18] sm:$0xfe] %v133
    %182 = vst [vmem:[#allocation2 + $0x20] sm:$0xff] %v135
    %183 = vst [vmem:[#allocation2 + $0x28] sm:$0xff] %v137
    %184 = vst [vmem:[#allocation2 + $0x30] sm:$0xff] %v139
    %185 = vst [vmem:[#allocation2 + $0x38] sm:$0xff] %v141
    %186 = vst [vmem:[#allocation2 + $0x40] sm:$0x1] %v134
    %187 = vst [vmem:[#allocation2 + $0x48] sm:$0x1] %v136
    %188 = vst [vmem:[#allocation2 + $0x50] sm:$0x1] %v138
    %189 = vst [vmem:[#allocation2 + $0x58] sm:$0x1] %v140
    %190 = vst [vmem:[#allocation2 + $0x60] sm:$0xfe] %v142
    %191 = vst [vmem:[#allocation2 + $0x68] sm:$0xfe] %v143
    %192 = vst [vmem:[#allocation2 + $0x70] sm:$0xfe] %v144
    %193 = vst [vmem:[#allocation2 + $0x78] sm:$0xfe] %v145
    %194 = vst [vmem:[#allocation2 + $0x80] sm:$0xff] %v147
    %195 = vst [vmem:[#allocation2 + $0x88] sm:$0xff] %v149
    %196 = vst [vmem:[#allocation2 + $0x90] sm:$0xff] %v151
    %197 = vst [vmem:[#allocation2 + $0x98] sm:$0xff] %v153
    %198 = vst [vmem:[#allocation2 + $0xa0] sm:$0x1] %v146
    %199 = vst [vmem:[#allocation2 + $0xa8] sm:$0x1] %v148
    %200 = vst [vmem:[#allocation2 + $0xb0] sm:$0x1] %v150
    %201 = vst [vmem:[#allocation2 + $0xb8] sm:$0x1] %v152
    %v202 = vld [vmem:[#allocation2] sm:$0xff]
    %v203 = vld [vmem:[#allocation2 + $0x8] sm:$0xff]
    %v204 = vld [vmem:[#allocation2 + $0x10] sm:$0xff]
    %v205 = vld [vmem:[#allocation2 + $0x18] sm:$0xff]
    %v206 = vld [vmem:[#allocation2 + $0x20] sm:$0xff]
    %v207 = vld [vmem:[#allocation2 + $0x28] sm:$0xff]
    %v208 = vld [vmem:[#allocation2 + $0x30] sm:$0xff]
    %v209 = vld [vmem:[#allocation2 + $0x38] sm:$0xff]
    %v210 = vld [vmem:[#allocation2 + $0x60] sm:$0xff]
    %v211 = vld [vmem:[#allocation2 + $0x68] sm:$0xff]
    %v212 = vld [vmem:[#allocation2 + $0x70] sm:$0xff]
    %v213 = vld [vmem:[#allocation2 + $0x78] sm:$0xff]
    %v214 = vld [vmem:[#allocation2 + $0x80] sm:$0xff]
    %v215 = vld [vmem:[#allocation2 + $0x88] sm:$0xff]
    %v216 = vld [vmem:[#allocation2 + $0x90] sm:$0xff]
    %v217 = vld [vmem:[#allocation2 + $0x98] sm:$0xff]
    %v218 = vld [vmem:[#allocation4] sm:$0xff]
    %v219 = vld [vmem:[#allocation4 + $0x8] sm:$0xff]
    %v220 = vld [vmem:[#allocation4 + $0x10] sm:$0xff]
    %v221 = vld [vmem:[#allocation4 + $0x18] sm:$0xff]
    %v222 = vld [vmem:[#allocation4 + $0x20] sm:$0xff]
    %v223 = vld [vmem:[#allocation4 + $0x28] sm:$0xff]
    %v224 = vld [vmem:[#allocation4 + $0x30] sm:$0xff]
    %v225 = vld [vmem:[#allocation4 + $0x38] sm:$0xff]
    %v226 = vld [vmem:[#allocation4 + $0x40] sm:$0xff]
    %v227 = vld [vmem:[#allocation4 + $0x48] sm:$0xff]
    %v228 = vld [vmem:[#allocation4 + $0x50] sm:$0xff]
    %v229 = vld [vmem:[#allocation4 + $0x58] sm:$0xff]
    %v230 = vld [vmem:[#allocation4 + $0x60] sm:$0xff]
    %v231 = vld [vmem:[#allocation4 + $0x68] sm:$0xff]
    %v232 = vld [vmem:[#allocation4 + $0x70] sm:$0xff]
    %v233 = vld [vmem:[#allocation4 + $0x78] sm:$0xff]
    %v234 = vld [vmem:[#allocation4 + $0x80] sm:$0xff]
    %v235 = vld [vmem:[#allocation4 + $0x88] sm:$0xff]
    %v236 = vld [vmem:[#allocation4 + $0x90] sm:$0xff]
    %v237 = vld [vmem:[#allocation4 + $0x98] sm:$0xff]
    %v238 = vld [vmem:[#allocation4 + $0xa0] sm:$0xff]
    %v239 = vld [vmem:[#allocation4 + $0xa8] sm:$0xff]
    %v240 = vld [vmem:[#allocation4 + $0xb0] sm:$0xff]
    %v241 = vld [vmem:[#allocation4 + $0xb8] sm:$0xff]
    %v242 = vld [vmem:[#allocation4 + $0xc0] sm:$0xff]
    %v243 = vld [vmem:[#allocation4 + $0xc8] sm:$0xff]
    %v244 = vld [vmem:[#allocation4 + $0xd0] sm:$0xff]
    %v245 = vld [vmem:[#allocation4 + $0xd8] sm:$0xff]
    %v246 = vld [vmem:[#allocation4 + $0xe0] sm:$0xff]
    %v247 = vld [vmem:[#allocation4 + $0xe8] sm:$0xff]
    %v248 = vld [vmem:[#allocation4 + $0xf0] sm:$0xff]
    %v249 = vld [vmem:[#allocation4 + $0xf8] sm:$0xff]
    %v250 = vld [vmem:[#allocation4 + $0x100] sm:$0xff]
    %v251 = vld [vmem:[#allocation4 + $0x108] sm:$0xff]
    %v252 = vld [vmem:[#allocation4 + $0x110] sm:$0xff]
    %v253 = vld [vmem:[#allocation4 + $0x118] sm:$0xff]
    %v254 = vld [vmem:[#allocation4 + $0x120] sm:$0xff]
    %v255 = vld [vmem:[#allocation4 + $0x128] sm:$0xff]
    %v256 = vld [vmem:[#allocation4 + $0x130] sm:$0xff]
    %v257 = vld [vmem:[#allocation4 + $0x138] sm:$0xff]
    %v258 = vld [vmem:[#allocation4 + $0x140] sm:$0xff]
    %v259 = vld [vmem:[#allocation4 + $0x148] sm:$0xff]
    %v260 = vld [vmem:[#allocation4 + $0x150] sm:$0xff]
    %v261 = vld [vmem:[#allocation4 + $0x158] sm:$0xff]
    %v262 = vld [vmem:[#allocation4 + $0x160] sm:$0xff]
    %v263 = vld [vmem:[#allocation4 + $0x168] sm:$0xff]
    %v264 = vld [vmem:[#allocation4 + $0x170] sm:$0xff]
    %v265 = vld [vmem:[#allocation4 + $0x178] sm:$0xff]
    %v266 = vld [vmem:[#allocation4 + $0x180] sm:$0xff]
    %v267 = vld [vmem:[#allocation4 + $0x188] sm:$0xff]
    %v268 = vld [vmem:[#allocation4 + $0x190] sm:$0xff]
    %v269 = vld [vmem:[#allocation4 + $0x198] sm:$0xff]
    %v270 = vld [vmem:[#allocation4 + $0x1a0] sm:$0xff]
    %v271 = vld [vmem:[#allocation4 + $0x1a8] sm:$0xff]
    %v272 = vld [vmem:[#allocation4 + $0x1b0] sm:$0xff]
    %v273 = vld [vmem:[#allocation4 + $0x1b8] sm:$0xff]
    %v274 = vld [vmem:[#allocation4 + $0x1c0] sm:$0xff]
    %v275 = vld [vmem:[#allocation4 + $0x1c8] sm:$0xff]
    %v276 = vld [vmem:[#allocation4 + $0x1d0] sm:$0xff]
    %v277 = vld [vmem:[#allocation4 + $0x1d8] sm:$0xff]
    %v278 = vld [vmem:[#allocation4 + $0x1e0] sm:$0xff]
    %v279 = vld [vmem:[#allocation4 + $0x1e8] sm:$0xff]
    %v280 = vld [vmem:[#allocation4 + $0x1f0] sm:$0xff]
    %v281 = vld [vmem:[#allocation4 + $0x1f8] sm:$0xff]
    %v282 = vld [vmem:[#allocation4 + $0x200] sm:$0xff]
    %v283 = vld [vmem:[#allocation4 + $0x208] sm:$0xff]
    %v284 = vld [vmem:[#allocation4 + $0x210] sm:$0xff]
    %v285 = vld [vmem:[#allocation4 + $0x218] sm:$0xff]
    %v286 = vld [vmem:[#allocation4 + $0x220] sm:$0xff]
    %v287 = vld [vmem:[#allocation4 + $0x228] sm:$0xff]
    %v288 = vld [vmem:[#allocation4 + $0x230] sm:$0xff]
    %v289 = vld [vmem:[#allocation4 + $0x238] sm:$0xff]
    %v290 = vld [vmem:[#allocation4 + $0x240] sm:$0xff]
    %v291 = vld [vmem:[#allocation4 + $0x248] sm:$0xff]
    %v292 = vld [vmem:[#allocation4 + $0x250] sm:$0xff]
    %v293 = vld [vmem:[#allocation4 + $0x258] sm:$0xff]
    %v294 = vld [vmem:[#allocation4 + $0x260] sm:$0xff]
    %v295 = vld [vmem:[#allocation4 + $0x268] sm:$0xff]
    %v296 = vld [vmem:[#allocation4 + $0x270] sm:$0xff]
    %v297 = vld [vmem:[#allocation4 + $0x278] sm:$0xff]
    %v298 = vld [vmem:[#allocation4 + $0x280] sm:$0xff]
    %v299 = vld [vmem:[#allocation4 + $0x288] sm:$0xff]
    %v300 = vld [vmem:[#allocation4 + $0x290] sm:$0xff]
    %v301 = vld [vmem:[#allocation4 + $0x298] sm:$0xff]
    %v302 = vld [vmem:[#allocation4 + $0x2a0] sm:$0xff]
    %v303 = vld [vmem:[#allocation4 + $0x2a8] sm:$0xff]
    %v304 = vld [vmem:[#allocation4 + $0x2b0] sm:$0xff]
    %v305 = vld [vmem:[#allocation4 + $0x2b8] sm:$0xff]
    %v306 = vld [vmem:[#allocation4 + $0x2c0] sm:$0xff]
    %v307 = vld [vmem:[#allocation4 + $0x2c8] sm:$0xff]
    %v308 = vld [vmem:[#allocation4 + $0x2d0] sm:$0xff]
    %v309 = vld [vmem:[#allocation4 + $0x2d8] sm:$0xff]
    %v310 = vld [vmem:[#allocation4 + $0x2e0] sm:$0xff]
    %v311 = vld [vmem:[#allocation4 + $0x2e8] sm:$0xff]
    %v312 = vld [vmem:[#allocation4 + $0x2f0] sm:$0xff]
    %v313 = vld [vmem:[#allocation4 + $0x2f8] sm:$0xff]
    %v314 = vld [vmem:[#allocation4 + $0x300] sm:$0xff]
    %v315 = vld [vmem:[#allocation4 + $0x308] sm:$0xff]
    %v316 = vld [vmem:[#allocation4 + $0x310] sm:$0xff]
    %v317 = vld [vmem:[#allocation4 + $0x318] sm:$0xff]
    %v318 = vld [vmem:[#allocation4 + $0x320] sm:$0xff]
    %v319 = vld [vmem:[#allocation4 + $0x328] sm:$0xff]
    %v320 = vld [vmem:[#allocation4 + $0x330] sm:$0xff]
    %v321 = vld [vmem:[#allocation4 + $0x338] sm:$0xff]
    %v322 = vld [vmem:[#allocation4 + $0x340] sm:$0xff]
    %v323 = vld [vmem:[#allocation4 + $0x348] sm:$0xff]
    %v324 = vld [vmem:[#allocation4 + $0x350] sm:$0xff]
    %v325 = vld [vmem:[#allocation4 + $0x358] sm:$0xff]
    %v326 = vld [vmem:[#allocation4 + $0x360] sm:$0xff]
    %v327 = vld [vmem:[#allocation4 + $0x368] sm:$0xff]
    %v328 = vld [vmem:[#allocation4 + $0x370] sm:$0xff]
    %v329 = vld [vmem:[#allocation4 + $0x378] sm:$0xff]
    %v330 = vld [vmem:[#allocation4 + $0x380] sm:$0xff]
    %v331 = vld [vmem:[#allocation4 + $0x388] sm:$0xff]
    %v332 = vld [vmem:[#allocation4 + $0x390] sm:$0xff]
    %v333 = vld [vmem:[#allocation4 + $0x398] sm:$0xff]
    %v334 = vld [vmem:[#allocation4 + $0x3a0] sm:$0xff]
    %v335 = vld [vmem:[#allocation4 + $0x3a8] sm:$0xff]
    %v336 = vld [vmem:[#allocation4 + $0x3b0] sm:$0xff]
    %v337 = vld [vmem:[#allocation4 + $0x3b8] sm:$0xff]
    %v338 = vld [vmem:[#allocation4 + $0x3c0] sm:$0xff]
    %v339 = vld [vmem:[#allocation4 + $0x3c8] sm:$0xff]
    %v340 = vld [vmem:[#allocation4 + $0x3d0] sm:$0xff]
    %v341 = vld [vmem:[#allocation4 + $0x3d8] sm:$0xff]
    %v342 = vld [vmem:[#allocation4 + $0x3e0] sm:$0xff]
    %v343 = vld [vmem:[#allocation4 + $0x3e8] sm:$0xff]
    %v344 = vld [vmem:[#allocation4 + $0x3f0] sm:$0xff]
    %v345 = vld [vmem:[#allocation4 + $0x3f8] sm:$0xff]
    %v346 = vld [vmem:[#allocation4 + $0x400] sm:$0xff]
    %v347 = vld [vmem:[#allocation4 + $0x408] sm:$0xff]
    %v348 = vld [vmem:[#allocation4 + $0x410] sm:$0xff]
    %v349 = vld [vmem:[#allocation4 + $0x418] sm:$0xff]
    %v350 = vld [vmem:[#allocation4 + $0x420] sm:$0xff]
    %v351 = vld [vmem:[#allocation4 + $0x428] sm:$0xff]
    %v352 = vld [vmem:[#allocation4 + $0x430] sm:$0xff]
    %v353 = vld [vmem:[#allocation4 + $0x438] sm:$0xff]
    %v354 = vld [vmem:[#allocation4 + $0x440] sm:$0xff]
    %v355 = vld [vmem:[#allocation4 + $0x448] sm:$0xff]
    %v356 = vld [vmem:[#allocation4 + $0x450] sm:$0xff]
    %v357 = vld [vmem:[#allocation4 + $0x458] sm:$0xff]
    %v358 = vld [vmem:[#allocation4 + $0x460] sm:$0xff]
    %v359 = vld [vmem:[#allocation4 + $0x468] sm:$0xff]
    %v360 = vld [vmem:[#allocation4 + $0x470] sm:$0xff]
    %v361 = vld [vmem:[#allocation4 + $0x478] sm:$0xff]
    %v362 = vld [vmem:[#allocation4 + $0x480] sm:$0xff]
    %v363 = vld [vmem:[#allocation4 + $0x488] sm:$0xff]
    %v364 = vld [vmem:[#allocation4 + $0x490] sm:$0xff]
    %v365 = vld [vmem:[#allocation4 + $0x498] sm:$0xff]
    %v366 = vld [vmem:[#allocation4 + $0x4a0] sm:$0xff]
    %v367 = vld [vmem:[#allocation4 + $0x4a8] sm:$0xff]
    %v368 = vld [vmem:[#allocation4 + $0x4b0] sm:$0xff]
    %v369 = vld [vmem:[#allocation4 + $0x4b8] sm:$0xff]
    %v370 = vld [vmem:[#allocation4 + $0x4c0] sm:$0xff]
    %v371 = vld [vmem:[#allocation4 + $0x4c8] sm:$0xff]
    %v372 = vld [vmem:[#allocation4 + $0x4d0] sm:$0xff]
    %v373 = vld [vmem:[#allocation4 + $0x4d8] sm:$0xff]
    %v374 = vld [vmem:[#allocation4 + $0x4e0] sm:$0xff]
    %v375 = vld [vmem:[#allocation4 + $0x4e8] sm:$0xff]
    %v376 = vld [vmem:[#allocation4 + $0x4f0] sm:$0xff]
    %v377 = vld [vmem:[#allocation4 + $0x4f8] sm:$0xff]
    %v378 = vld [vmem:[#allocation4 + $0x500] sm:$0xff]
    %v379 = vld [vmem:[#allocation4 + $0x508] sm:$0xff]
    %v380 = vld [vmem:[#allocation4 + $0x510] sm:$0xff]
    %v381 = vld [vmem:[#allocation4 + $0x518] sm:$0xff]
    %v382 = vld [vmem:[#allocation4 + $0x520] sm:$0xff]
    %v383 = vld [vmem:[#allocation4 + $0x528] sm:$0xff]
    %v384 = vld [vmem:[#allocation4 + $0x530] sm:$0xff]
    %v385 = vld [vmem:[#allocation4 + $0x538] sm:$0xff]
    %v386 = vld [vmem:[#allocation4 + $0x540] sm:$0xff]
    %v387 = vld [vmem:[#allocation4 + $0x548] sm:$0xff]
    %v388 = vld [vmem:[#allocation4 + $0x550] sm:$0xff]
    %v389 = vld [vmem:[#allocation4 + $0x558] sm:$0xff]
    %v390 = vld [vmem:[#allocation4 + $0x560] sm:$0xff]
    %v391 = vld [vmem:[#allocation4 + $0x568] sm:$0xff]
    %v392 = vld [vmem:[#allocation4 + $0x570] sm:$0xff]
    %v393 = vld [vmem:[#allocation4 + $0x578] sm:$0xff]
    %v394 = vld [vmem:[#allocation4 + $0x580] sm:$0xff]
    %v395 = vld [vmem:[#allocation4 + $0x588] sm:$0xff]
    %v396 = vld [vmem:[#allocation4 + $0x590] sm:$0xff]
    %v397 = vld [vmem:[#allocation4 + $0x598] sm:$0xff]
    %v398 = vld [vmem:[#allocation4 + $0x5a0] sm:$0xff]
    %v399 = vld [vmem:[#allocation4 + $0x5a8] sm:$0xff]
    %v400 = vld [vmem:[#allocation4 + $0x5b0] sm:$0xff]
    %v401 = vld [vmem:[#allocation4 + $0x5b8] sm:$0xff]
    %v402 = vld [vmem:[#allocation4 + $0x5c0] sm:$0xff]
    %v403 = vld [vmem:[#allocation4 + $0x5c8] sm:$0xff]
    %v404 = vld [vmem:[#allocation4 + $0x5d0] sm:$0xff]
    %v405 = vld [vmem:[#allocation4 + $0x5d8] sm:$0xff]
    %v406 = vld [vmem:[#allocation4 + $0x5e0] sm:$0xff]
    %v407 = vld [vmem:[#allocation4 + $0x5e8] sm:$0xff]
    %v408 = vld [vmem:[#allocation4 + $0x5f0] sm:$0xff]
    %v409 = vld [vmem:[#allocation4 + $0x5f8] sm:$0xff]
    %v410 = vld [vmem:[#allocation4 + $0x600] sm:$0xff]
    %v411 = vld [vmem:[#allocation4 + $0x608] sm:$0xff]
    %v412 = vld [vmem:[#allocation4 + $0x610] sm:$0xff]
    %v413 = vld [vmem:[#allocation4 + $0x618] sm:$0xff]
    %v414 = vld [vmem:[#allocation4 + $0x620] sm:$0xff]
    %v415 = vld [vmem:[#allocation4 + $0x628] sm:$0xff]
    %v416 = vld [vmem:[#allocation4 + $0x630] sm:$0xff]
    %v417 = vld [vmem:[#allocation4 + $0x638] sm:$0xff]
    %v418 = vld [vmem:[#allocation4 + $0x640] sm:$0xff]
    %v419 = vld [vmem:[#allocation4 + $0x648] sm:$0xff]
    %v420 = vld [vmem:[#allocation4 + $0x650] sm:$0xff]
    %v421 = vld [vmem:[#allocation4 + $0x658] sm:$0xff]
    %v422 = vld [vmem:[#allocation4 + $0x660] sm:$0xff]
    %v423 = vld [vmem:[#allocation4 + $0x668] sm:$0xff]
    %v424 = vld [vmem:[#allocation4 + $0x670] sm:$0xff]
    %v425 = vld [vmem:[#allocation4 + $0x678] sm:$0xff]
    %v426 = vld [vmem:[#allocation4 + $0x680] sm:$0xff]
    %v427 = vld [vmem:[#allocation4 + $0x688] sm:$0xff]
    %v428 = vld [vmem:[#allocation4 + $0x690] sm:$0xff]
    %v429 = vld [vmem:[#allocation4 + $0x698] sm:$0xff]
    %v430 = vld [vmem:[#allocation4 + $0x6a0] sm:$0xff]
    %v431 = vld [vmem:[#allocation4 + $0x6a8] sm:$0xff]
    %v432 = vld [vmem:[#allocation4 + $0x6b0] sm:$0xff]
    %v433 = vld [vmem:[#allocation4 + $0x6b8] sm:$0xff]
    %v434 = vld [vmem:[#allocation4 + $0x6c0] sm:$0xff]
    %v435 = vld [vmem:[#allocation4 + $0x6c8] sm:$0xff]
    %v436 = vld [vmem:[#allocation4 + $0x6d0] sm:$0xff]
    %v437 = vld [vmem:[#allocation4 + $0x6d8] sm:$0xff]
    %v438 = vld [vmem:[#allocation4 + $0x6e0] sm:$0xff]
    %v439 = vld [vmem:[#allocation4 + $0x6e8] sm:$0xff]
    %v440 = vld [vmem:[#allocation4 + $0x6f0] sm:$0xff]
    %v441 = vld [vmem:[#allocation4 + $0x6f8] sm:$0xff]
    %v442 = vld [vmem:[#allocation4 + $0x700] sm:$0xff]
    %v443 = vld [vmem:[#allocation4 + $0x708] sm:$0xff]
    %v444 = vld [vmem:[#allocation4 + $0x710] sm:$0xff]
    %v445 = vld [vmem:[#allocation4 + $0x718] sm:$0xff]
    %v446 = vld [vmem:[#allocation4 + $0x720] sm:$0xff]
    %v447 = vld [vmem:[#allocation4 + $0x728] sm:$0xff]
    %v448 = vld [vmem:[#allocation4 + $0x730] sm:$0xff]
    %v449 = vld [vmem:[#allocation4 + $0x738] sm:$0xff]
    %v450 = vld [vmem:[#allocation4 + $0x740] sm:$0xff]
    %v451 = vld [vmem:[#allocation4 + $0x748] sm:$0xff]
    %v452 = vld [vmem:[#allocation4 + $0x750] sm:$0xff]
    %v453 = vld [vmem:[#allocation4 + $0x758] sm:$0xff]
    %v454 = vld [vmem:[#allocation4 + $0x760] sm:$0xff]
    %v455 = vld [vmem:[#allocation4 + $0x768] sm:$0xff]
    %v456 = vld [vmem:[#allocation4 + $0x770] sm:$0xff]
    %v457 = vld [vmem:[#allocation4 + $0x778] sm:$0xff]
    %v458 = vld [vmem:[#allocation4 + $0x780] sm:$0xff]
    %v459 = vld [vmem:[#allocation4 + $0x788] sm:$0xff]
    %v460 = vld [vmem:[#allocation4 + $0x790] sm:$0xff]
    %v461 = vld [vmem:[#allocation4 + $0x798] sm:$0xff]
    %v462 = vld [vmem:[#allocation4 + $0x7a0] sm:$0xff]
    %v463 = vld [vmem:[#allocation4 + $0x7a8] sm:$0xff]
    %v464 = vld [vmem:[#allocation4 + $0x7b0] sm:$0xff]
    %v465 = vld [vmem:[#allocation4 + $0x7b8] sm:$0xff]
    %v466 = vld [vmem:[#allocation4 + $0x7c0] sm:$0xff]
    %v467 = vld [vmem:[#allocation4 + $0x7c8] sm:$0xff]
    %v468 = vld [vmem:[#allocation4 + $0x7d0] sm:$0xff]
    %v469 = vld [vmem:[#allocation4 + $0x7d8] sm:$0xff]
    %v470 = vld [vmem:[#allocation4 + $0x7e0] sm:$0xff]
    %v471 = vld [vmem:[#allocation4 + $0x7e8] sm:$0xff]
    %v472 = vld [vmem:[#allocation4 + $0x7f0] sm:$0xff]
    %v473 = vld [vmem:[#allocation4 + $0x7f8] sm:$0xff]
    %v474 = vld [vmem:[#allocation2] sm:$0xfe]
    %v475 = vld [vmem:[#allocation2 + $0x8] sm:$0xfe]
    %v476 = vld [vmem:[#allocation2 + $0x10] sm:$0xfe]
    %v477 = vld [vmem:[#allocation2 + $0x18] sm:$0xfe]
    %v478 = vld [vmem:[#allocation2 + $0x40] sm:$0x1]
    %v479 = vld [vmem:[#allocation2 + $0x48] sm:$0x1]
    %v480 = vld [vmem:[#allocation2 + $0x50] sm:$0x1]
    %v481 = vld [vmem:[#allocation2 + $0x58] sm:$0x1]
    %v482 = vld [vmem:[#allocation2 + $0x60] sm:$0xfe]
    %v483 = vld [vmem:[#allocation2 + $0x68] sm:$0xfe]
    %v484 = vld [vmem:[#allocation2 + $0x70] sm:$0xfe]
    %v485 = vld [vmem:[#allocation2 + $0x78] sm:$0xfe]
    %v486 = vld [vmem:[#allocation2 + $0xa0] sm:$0x1]
    %v487 = vld [vmem:[#allocation2 + $0xa8] sm:$0x1]
    %v488 = vld [vmem:[#allocation2 + $0xb0] sm:$0x1]
    %v489 = vld [vmem:[#allocation2 + $0xb8] sm:$0x1]
    %vm514 = vcmask 1046528
    %v515 = vrot.slane %v474, 1
    %v516 = vrot.slane %v206, 1
    %v517 = vsel %vm514, %v515, %v516
    %v518 = vrot.slane %v475, 1
    %v519 = vrot.slane %v207, 1
    %v520 = vsel %vm514, %v518, %v519
    %v521 = vrot.slane %v476, 1
    %v522 = vrot.slane %v208, 1
    %v523 = vsel %vm514, %v521, %v522
    %v524 = vrot.slane %v477, 1
    %v525 = vrot.slane %v209, 1
    %v526 = vsel %vm514, %v524, %v525
    %v527 = vrot.slane %v478, 1
    %v528 = vsel %vm514, %v516, %v527
    %v529 = vrot.slane %v479, 1
    %v530 = vsel %vm514, %v519, %v529
    %v531 = vrot.slane %v480, 1
    %v532 = vsel %vm514, %v522, %v531
    %v533 = vrot.slane %v481, 1
    %v534 = vsel %vm514, %v525, %v533
    %v535 = vrot.slane %v482, 1
    %v536 = vrot.slane %v214, 1
    %v537 = vsel %vm514, %v535, %v536
    %v538 = vrot.slane %v483, 1
    %v539 = vrot.slane %v215, 1
    %v540 = vsel %vm514, %v538, %v539
    %v541 = vrot.slane %v484, 1
    %v542 = vrot.slane %v216, 1
    %v543 = vsel %vm514, %v541, %v542
    %v544 = vrot.slane %v485, 1
    %v545 = vrot.slane %v217, 1
    %v546 = vsel %vm514, %v544, %v545
    %v547 = vrot.slane %v486, 1
    %v548 = vsel %vm514, %v536, %v547
    %v549 = vrot.slane %v487, 1
    %v550 = vsel %vm514, %v539, %v549
    %v551 = vrot.slane %v488, 1
    %v552 = vsel %vm514, %v542, %v551
    %v553 = vrot.slane %v489, 1
    %v554 = vsel %vm514, %v545, %v553
    %s571 = scalar_lea.vmem [#allocation4], 2048
    %v572 = vld [vmem:[%s571] sm:$0xff]
    %v573 = vld [vmem:[%s571 + $0x8] sm:$0xff]
    %v574 = vld [vmem:[%s571 + $0x10] sm:$0xff]
    %v575 = vld [vmem:[%s571 + $0x18] sm:$0xff]
    %v576 = vld [vmem:[%s571 + $0x20] sm:$0xff]
    %v577 = vld [vmem:[%s571 + $0x28] sm:$0xff]
    %v578 = vld [vmem:[%s571 + $0x30] sm:$0xff]
    %v579 = vld [vmem:[%s571 + $0x38] sm:$0xff]
    %v580 = vld [vmem:[%s571 + $0x40] sm:$0xff]
    %v581 = vld [vmem:[%s571 + $0x48] sm:$0xff]
    %v582 = vld [vmem:[%s571 + $0x50] sm:$0xff]
    %v583 = vld [vmem:[%s571 + $0x58] sm:$0xff]
    %v584 = vld [vmem:[%s571 + $0x60] sm:$0xff]
    %v585 = vld [vmem:[%s571 + $0x68] sm:$0xff]
    %v586 = vld [vmem:[%s571 + $0x70] sm:$0xff]
    %v587 = vld [vmem:[%s571 + $0x78] sm:$0xff]
    %v588 = vld [vmem:[%s571 + $0x80] sm:$0xff]
    %v589 = vld [vmem:[%s571 + $0x88] sm:$0xff]
    %v590 = vld [vmem:[%s571 + $0x90] sm:$0xff]
    %v591 = vld [vmem:[%s571 + $0x98] sm:$0xff]
    %v592 = vld [vmem:[%s571 + $0xa0] sm:$0xff]
    %v593 = vld [vmem:[%s571 + $0xa8] sm:$0xff]
    %v594 = vld [vmem:[%s571 + $0xb0] sm:$0xff]
    %v595 = vld [vmem:[%s571 + $0xb8] sm:$0xff]
    %v596 = vld [vmem:[%s571 + $0xc0] sm:$0xff]
    %v597 = vld [vmem:[%s571 + $0xc8] sm:$0xff]
    %v598 = vld [vmem:[%s571 + $0xd0] sm:$0xff]
    %v599 = vld [vmem:[%s571 + $0xd8] sm:$0xff]
    %v600 = vld [vmem:[%s571 + $0xe0] sm:$0xff]
    %v601 = vld [vmem:[%s571 + $0xe8] sm:$0xff]
    %v602 = vld [vmem:[%s571 + $0xf0] sm:$0xff]
    %v603 = vld [vmem:[%s571 + $0xf8] sm:$0xff]
    %v604 = vld [vmem:[%s571 + $0x100] sm:$0xff]
    %v605 = vld [vmem:[%s571 + $0x108] sm:$0xff]
    %v606 = vld [vmem:[%s571 + $0x110] sm:$0xff]
    %v607 = vld [vmem:[%s571 + $0x118] sm:$0xff]
    %v608 = vld [vmem:[%s571 + $0x120] sm:$0xff]
    %v609 = vld [vmem:[%s571 + $0x128] sm:$0xff]
    %v610 = vld [vmem:[%s571 + $0x130] sm:$0xff]
    %v611 = vld [vmem:[%s571 + $0x138] sm:$0xff]
    %v612 = vld [vmem:[%s571 + $0x140] sm:$0xff]
    %v613 = vld [vmem:[%s571 + $0x148] sm:$0xff]
    %v614 = vld [vmem:[%s571 + $0x150] sm:$0xff]
    %v615 = vld [vmem:[%s571 + $0x158] sm:$0xff]
    %v616 = vld [vmem:[%s571 + $0x160] sm:$0xff]
    %v617 = vld [vmem:[%s571 + $0x168] sm:$0xff]
    %v618 = vld [vmem:[%s571 + $0x170] sm:$0xff]
    %v619 = vld [vmem:[%s571 + $0x178] sm:$0xff]
    %v620 = vld [vmem:[%s571 + $0x180] sm:$0xff]
    %v621 = vld [vmem:[%s571 + $0x188] sm:$0xff]
    %v622 = vld [vmem:[%s571 + $0x190] sm:$0xff]
    %v623 = vld [vmem:[%s571 + $0x198] sm:$0xff]
    %v624 = vld [vmem:[%s571 + $0x1a0] sm:$0xff]
    %v625 = vld [vmem:[%s571 + $0x1a8] sm:$0xff]
    %v626 = vld [vmem:[%s571 + $0x1b0] sm:$0xff]
    %v627 = vld [vmem:[%s571 + $0x1b8] sm:$0xff]
    %v628 = vld [vmem:[%s571 + $0x1c0] sm:$0xff]
    %v629 = vld [vmem:[%s571 + $0x1c8] sm:$0xff]
    %v630 = vld [vmem:[%s571 + $0x1d0] sm:$0xff]
    %v631 = vld [vmem:[%s571 + $0x1d8] sm:$0xff]
    %v632 = vld [vmem:[%s571 + $0x1e0] sm:$0xff]
    %v633 = vld [vmem:[%s571 + $0x1e8] sm:$0xff]
    %v634 = vld [vmem:[%s571 + $0x1f0] sm:$0xff]
    %v635 = vld [vmem:[%s571 + $0x1f8] sm:$0xff]
    %v636 = vld [vmem:[%s571 + $0x200] sm:$0xff]
    %v637 = vld [vmem:[%s571 + $0x208] sm:$0xff]
    %v638 = vld [vmem:[%s571 + $0x210] sm:$0xff]
    %v639 = vld [vmem:[%s571 + $0x218] sm:$0xff]
    %v640 = vld [vmem:[%s571 + $0x220] sm:$0xff]
    %v641 = vld [vmem:[%s571 + $0x228] sm:$0xff]
    %v642 = vld [vmem:[%s571 + $0x230] sm:$0xff]
    %v643 = vld [vmem:[%s571 + $0x238] sm:$0xff]
    %v644 = vld [vmem:[%s571 + $0x240] sm:$0xff]
    %v645 = vld [vmem:[%s571 + $0x248] sm:$0xff]
    %v646 = vld [vmem:[%s571 + $0x250] sm:$0xff]
    %v647 = vld [vmem:[%s571 + $0x258] sm:$0xff]
    %v648 = vld [vmem:[%s571 + $0x260] sm:$0xff]
    %v649 = vld [vmem:[%s571 + $0x268] sm:$0xff]
    %v650 = vld [vmem:[%s571 + $0x270] sm:$0xff]
    %v651 = vld [vmem:[%s571 + $0x278] sm:$0xff]
    %v652 = vld [vmem:[%s571 + $0x280] sm:$0xff]
    %v653 = vld [vmem:[%s571 + $0x288] sm:$0xff]
    %v654 = vld [vmem:[%s571 + $0x290] sm:$0xff]
    %v655 = vld [vmem:[%s571 + $0x298] sm:$0xff]
    %v656 = vld [vmem:[%s571 + $0x2a0] sm:$0xff]
    %v657 = vld [vmem:[%s571 + $0x2a8] sm:$0xff]
    %v658 = vld [vmem:[%s571 + $0x2b0] sm:$0xff]
    %v659 = vld [vmem:[%s571 + $0x2b8] sm:$0xff]
    %v660 = vld [vmem:[%s571 + $0x2c0] sm:$0xff]
    %v661 = vld [vmem:[%s571 + $0x2c8] sm:$0xff]
    %v662 = vld [vmem:[%s571 + $0x2d0] sm:$0xff]
    %v663 = vld [vmem:[%s571 + $0x2d8] sm:$0xff]
    %v664 = vld [vmem:[%s571 + $0x2e0] sm:$0xff]
    %v665 = vld [vmem:[%s571 + $0x2e8] sm:$0xff]
    %v666 = vld [vmem:[%s571 + $0x2f0] sm:$0xff]
    %v667 = vld [vmem:[%s571 + $0x2f8] sm:$0xff]
    %v668 = vld [vmem:[%s571 + $0x300] sm:$0xff]
    %v669 = vld [vmem:[%s571 + $0x308] sm:$0xff]
    %v670 = vld [vmem:[%s571 + $0x310] sm:$0xff]
    %v671 = vld [vmem:[%s571 + $0x318] sm:$0xff]
    %v672 = vld [vmem:[%s571 + $0x320] sm:$0xff]
    %v673 = vld [vmem:[%s571 + $0x328] sm:$0xff]
    %v674 = vld [vmem:[%s571 + $0x330] sm:$0xff]
    %v675 = vld [vmem:[%s571 + $0x338] sm:$0xff]
    %v676 = vld [vmem:[%s571 + $0x340] sm:$0xff]
    %v677 = vld [vmem:[%s571 + $0x348] sm:$0xff]
    %v678 = vld [vmem:[%s571 + $0x350] sm:$0xff]
    %v679 = vld [vmem:[%s571 + $0x358] sm:$0xff]
    %v680 = vld [vmem:[%s571 + $0x360] sm:$0xff]
    %v681 = vld [vmem:[%s571 + $0x368] sm:$0xff]
    %v682 = vld [vmem:[%s571 + $0x370] sm:$0xff]
    %v683 = vld [vmem:[%s571 + $0x378] sm:$0xff]
    %v684 = vld [vmem:[%s571 + $0x380] sm:$0xff]
    %v685 = vld [vmem:[%s571 + $0x388] sm:$0xff]
    %v686 = vld [vmem:[%s571 + $0x390] sm:$0xff]
    %v687 = vld [vmem:[%s571 + $0x398] sm:$0xff]
    %v688 = vld [vmem:[%s571 + $0x3a0] sm:$0xff]
    %v689 = vld [vmem:[%s571 + $0x3a8] sm:$0xff]
    %v690 = vld [vmem:[%s571 + $0x3b0] sm:$0xff]
    %v691 = vld [vmem:[%s571 + $0x3b8] sm:$0xff]
    %v692 = vld [vmem:[%s571 + $0x3c0] sm:$0xff]
    %v693 = vld [vmem:[%s571 + $0x3c8] sm:$0xff]
    %v694 = vld [vmem:[%s571 + $0x3d0] sm:$0xff]
    %v695 = vld [vmem:[%s571 + $0x3d8] sm:$0xff]
    %v696 = vld [vmem:[%s571 + $0x3e0] sm:$0xff]
    %v697 = vld [vmem:[%s571 + $0x3e8] sm:$0xff]
    %v698 = vld [vmem:[%s571 + $0x3f0] sm:$0xff]
    %v699 = vld [vmem:[%s571 + $0x3f8] sm:$0xff]
    %v700 = vld [vmem:[%s571 + $0x400] sm:$0xff]
    %v701 = vld [vmem:[%s571 + $0x408] sm:$0xff]
    %v702 = vld [vmem:[%s571 + $0x410] sm:$0xff]
    %v703 = vld [vmem:[%s571 + $0x418] sm:$0xff]
    %v704 = vld [vmem:[%s571 + $0x420] sm:$0xff]
    %v705 = vld [vmem:[%s571 + $0x428] sm:$0xff]
    %v706 = vld [vmem:[%s571 + $0x430] sm:$0xff]
    %v707 = vld [vmem:[%s571 + $0x438] sm:$0xff]
    %v708 = vld [vmem:[%s571 + $0x440] sm:$0xff]
    %v709 = vld [vmem:[%s571 + $0x448] sm:$0xff]
    %v710 = vld [vmem:[%s571 + $0x450] sm:$0xff]
    %v711 = vld [vmem:[%s571 + $0x458] sm:$0xff]
    %v712 = vld [vmem:[%s571 + $0x460] sm:$0xff]
    %v713 = vld [vmem:[%s571 + $0x468] sm:$0xff]
    %v714 = vld [vmem:[%s571 + $0x470] sm:$0xff]
    %v715 = vld [vmem:[%s571 + $0x478] sm:$0xff]
    %v716 = vld [vmem:[%s571 + $0x480] sm:$0xff]
    %v717 = vld [vmem:[%s571 + $0x488] sm:$0xff]
    %v718 = vld [vmem:[%s571 + $0x490] sm:$0xff]
    %v719 = vld [vmem:[%s571 + $0x498] sm:$0xff]
    %v720 = vld [vmem:[%s571 + $0x4a0] sm:$0xff]
    %v721 = vld [vmem:[%s571 + $0x4a8] sm:$0xff]
    %v722 = vld [vmem:[%s571 + $0x4b0] sm:$0xff]
    %v723 = vld [vmem:[%s571 + $0x4b8] sm:$0xff]
    %v724 = vld [vmem:[%s571 + $0x4c0] sm:$0xff]
    %v725 = vld [vmem:[%s571 + $0x4c8] sm:$0xff]
    %v726 = vld [vmem:[%s571 + $0x4d0] sm:$0xff]
    %v727 = vld [vmem:[%s571 + $0x4d8] sm:$0xff]
    %v728 = vld [vmem:[%s571 + $0x4e0] sm:$0xff]
    %v729 = vld [vmem:[%s571 + $0x4e8] sm:$0xff]
    %v730 = vld [vmem:[%s571 + $0x4f0] sm:$0xff]
    %v731 = vld [vmem:[%s571 + $0x4f8] sm:$0xff]
    %v732 = vld [vmem:[%s571 + $0x500] sm:$0xff]
    %v733 = vld [vmem:[%s571 + $0x508] sm:$0xff]
    %v734 = vld [vmem:[%s571 + $0x510] sm:$0xff]
    %v735 = vld [vmem:[%s571 + $0x518] sm:$0xff]
    %v736 = vld [vmem:[%s571 + $0x520] sm:$0xff]
    %v737 = vld [vmem:[%s571 + $0x528] sm:$0xff]
    %v738 = vld [vmem:[%s571 + $0x530] sm:$0xff]
    %v739 = vld [vmem:[%s571 + $0x538] sm:$0xff]
    %v740 = vld [vmem:[%s571 + $0x540] sm:$0xff]
    %v741 = vld [vmem:[%s571 + $0x548] sm:$0xff]
    %v742 = vld [vmem:[%s571 + $0x550] sm:$0xff]
    %v743 = vld [vmem:[%s571 + $0x558] sm:$0xff]
    %v744 = vld [vmem:[%s571 + $0x560] sm:$0xff]
    %v745 = vld [vmem:[%s571 + $0x568] sm:$0xff]
    %v746 = vld [vmem:[%s571 + $0x570] sm:$0xff]
    %v747 = vld [vmem:[%s571 + $0x578] sm:$0xff]
    %v748 = vld [vmem:[%s571 + $0x580] sm:$0xff]
    %v749 = vld [vmem:[%s571 + $0x588] sm:$0xff]
    %v750 = vld [vmem:[%s571 + $0x590] sm:$0xff]
    %v751 = vld [vmem:[%s571 + $0x598] sm:$0xff]
    %v752 = vld [vmem:[%s571 + $0x5a0] sm:$0xff]
    %v753 = vld [vmem:[%s571 + $0x5a8] sm:$0xff]
    %v754 = vld [vmem:[%s571 + $0x5b0] sm:$0xff]
    %v755 = vld [vmem:[%s571 + $0x5b8] sm:$0xff]
    %v756 = vld [vmem:[%s571 + $0x5c0] sm:$0xff]
    %v757 = vld [vmem:[%s571 + $0x5c8] sm:$0xff]
    %v758 = vld [vmem:[%s571 + $0x5d0] sm:$0xff]
    %v759 = vld [vmem:[%s571 + $0x5d8] sm:$0xff]
    %v760 = vld [vmem:[%s571 + $0x5e0] sm:$0xff]
    %v761 = vld [vmem:[%s571 + $0x5e8] sm:$0xff]
    %v762 = vld [vmem:[%s571 + $0x5f0] sm:$0xff]
    %v763 = vld [vmem:[%s571 + $0x5f8] sm:$0xff]
    %v764 = vld [vmem:[%s571 + $0x600] sm:$0xff]
    %v765 = vld [vmem:[%s571 + $0x608] sm:$0xff]
    %v766 = vld [vmem:[%s571 + $0x610] sm:$0xff]
    %v767 = vld [vmem:[%s571 + $0x618] sm:$0xff]
    %v768 = vld [vmem:[%s571 + $0x620] sm:$0xff]
    %v769 = vld [vmem:[%s571 + $0x628] sm:$0xff]
    %v770 = vld [vmem:[%s571 + $0x630] sm:$0xff]
    %v771 = vld [vmem:[%s571 + $0x638] sm:$0xff]
    %v772 = vld [vmem:[%s571 + $0x640] sm:$0xff]
    %v773 = vld [vmem:[%s571 + $0x648] sm:$0xff]
    %v774 = vld [vmem:[%s571 + $0x650] sm:$0xff]
    %v775 = vld [vmem:[%s571 + $0x658] sm:$0xff]
    %v776 = vld [vmem:[%s571 + $0x660] sm:$0xff]
    %v777 = vld [vmem:[%s571 + $0x668] sm:$0xff]
    %v778 = vld [vmem:[%s571 + $0x670] sm:$0xff]
    %v779 = vld [vmem:[%s571 + $0x678] sm:$0xff]
    %v780 = vld [vmem:[%s571 + $0x680] sm:$0xff]
    %v781 = vld [vmem:[%s571 + $0x688] sm:$0xff]
    %v782 = vld [vmem:[%s571 + $0x690] sm:$0xff]
    %v783 = vld [vmem:[%s571 + $0x698] sm:$0xff]
    %v784 = vld [vmem:[%s571 + $0x6a0] sm:$0xff]
    %v785 = vld [vmem:[%s571 + $0x6a8] sm:$0xff]
    %v786 = vld [vmem:[%s571 + $0x6b0] sm:$0xff]
    %v787 = vld [vmem:[%s571 + $0x6b8] sm:$0xff]
    %v788 = vld [vmem:[%s571 + $0x6c0] sm:$0xff]
    %v789 = vld [vmem:[%s571 + $0x6c8] sm:$0xff]
    %v790 = vld [vmem:[%s571 + $0x6d0] sm:$0xff]
    %v791 = vld [vmem:[%s571 + $0x6d8] sm:$0xff]
    %v792 = vld [vmem:[%s571 + $0x6e0] sm:$0xff]
    %v793 = vld [vmem:[%s571 + $0x6e8] sm:$0xff]
    %v794 = vld [vmem:[%s571 + $0x6f0] sm:$0xff]
    %v795 = vld [vmem:[%s571 + $0x6f8] sm:$0xff]
    %v796 = vld [vmem:[%s571 + $0x700] sm:$0xff]
    %v797 = vld [vmem:[%s571 + $0x708] sm:$0xff]
    %v798 = vld [vmem:[%s571 + $0x710] sm:$0xff]
    %v799 = vld [vmem:[%s571 + $0x718] sm:$0xff]
    %v800 = vld [vmem:[%s571 + $0x720] sm:$0xff]
    %v801 = vld [vmem:[%s571 + $0x728] sm:$0xff]
    %v802 = vld [vmem:[%s571 + $0x730] sm:$0xff]
    %v803 = vld [vmem:[%s571 + $0x738] sm:$0xff]
    %v804 = vld [vmem:[%s571 + $0x740] sm:$0xff]
    %v805 = vld [vmem:[%s571 + $0x748] sm:$0xff]
    %v806 = vld [vmem:[%s571 + $0x750] sm:$0xff]
    %v807 = vld [vmem:[%s571 + $0x758] sm:$0xff]
    %v808 = vld [vmem:[%s571 + $0x760] sm:$0xff]
    %v809 = vld [vmem:[%s571 + $0x768] sm:$0xff]
    %v810 = vld [vmem:[%s571 + $0x770] sm:$0xff]
    %v811 = vld [vmem:[%s571 + $0x778] sm:$0xff]
    %v812 = vld [vmem:[%s571 + $0x780] sm:$0xff]
    %v813 = vld [vmem:[%s571 + $0x788] sm:$0xff]
    %v814 = vld [vmem:[%s571 + $0x790] sm:$0xff]
    %v815 = vld [vmem:[%s571 + $0x798] sm:$0xff]
    %v816 = vld [vmem:[%s571 + $0x7a0] sm:$0xff]
    %v817 = vld [vmem:[%s571 + $0x7a8] sm:$0xff]
    %v818 = vld [vmem:[%s571 + $0x7b0] sm:$0xff]
    %v819 = vld [vmem:[%s571 + $0x7b8] sm:$0xff]
    %v820 = vld [vmem:[%s571 + $0x7c0] sm:$0xff]
    %v821 = vld [vmem:[%s571 + $0x7c8] sm:$0xff]
    %v822 = vld [vmem:[%s571 + $0x7d0] sm:$0xff]
    %v823 = vld [vmem:[%s571 + $0x7d8] sm:$0xff]
    %v824 = vld [vmem:[%s571 + $0x7e0] sm:$0xff]
    %v825 = vld [vmem:[%s571 + $0x7e8] sm:$0xff]
    %v826 = vld [vmem:[%s571 + $0x7f0] sm:$0xff]
    %v827 = vld [vmem:[%s571 + $0x7f8] sm:$0xff]
    %828 = vmatpush.msra.mxu0 %v632
    %829 = vmatpush.msra.mxu0 %v628
    %830 = vmatpush.msra.mxu0 %v624
    %831 = vmatpush.msra.mxu0 %v620
    %832 = vmatpush.msra.mxu0 %v616
    %833 = vmatpush.msra.mxu0 %v612
    %834 = vmatpush.msra.mxu0 %v608
    %835 = vmatpush.msra.mxu0 %v604
    %836 = vmatpush.msra.mxu0 %v600
    %837 = vmatpush.msra.mxu0 %v596
    %838 = vmatpush.msra.mxu0 %v592
    %839 = vmatpush.msra.mxu0 %v588
    %840 = vmatpush.msra.mxu0 %v584
    %841 = vmatpush.msra.mxu0 %v580
    %842 = vmatpush.msra.mxu0 %v576
    %843 = vmatpush.msra.mxu0 %v572
    %844 = vmatmul.f32.gmra.mxu0 %v517
    %v845 = vpop.f32.mrf.mxu0
    %v846 = vadd.f32 0.0, %v845
    %847 = vmatmul.f32.gmra.mxu0 %v528
    %v848 = vpop.f32.mrf.mxu0
    %v849 = vadd.f32 0.0, %v848
    %850 = vmatmul.f32.gmra.mxu0 %v537
    %v851 = vpop.f32.mrf.mxu0
    %v852 = vadd.f32 0.0, %v851
    %853 = vmatmul.f32.gmra.mxu0 %v548
    %v854 = vpop.f32.mrf.mxu0
    %v855 = vadd.f32 0.0, %v854
    %856 = vdwg.mxu0
    %857 = vmatpush.msra.mxu0 %v696
    %858 = vmatpush.msra.mxu0 %v692
    %859 = vmatpush.msra.mxu0 %v688
    %860 = vmatpush.msra.mxu0 %v684
    %861 = vmatpush.msra.mxu0 %v680
    %862 = vmatpush.msra.mxu0 %v676
    %863 = vmatpush.msra.mxu0 %v672
    %864 = vmatpush.msra.mxu0 %v668
    %865 = vmatpush.msra.mxu0 %v664
    %866 = vmatpush.msra.mxu0 %v660
    %867 = vmatpush.msra.mxu0 %v656
    %868 = vmatpush.msra.mxu0 %v652
    %869 = vmatpush.msra.mxu0 %v648
    %870 = vmatpush.msra.mxu0 %v644
    %871 = vmatpush.msra.mxu0 %v640
    %872 = vmatpush.msra.mxu0 %v636
    %873 = vmatmul.f32.gmra.mxu0 %v520
    %v874 = vpop.f32.mrf.mxu0
    %v875 = vadd.f32 %v846, %v874
    %876 = vmatmul.f32.gmra.mxu0 %v530
    %v877 = vpop.f32.mrf.mxu0
    %v878 = vadd.f32 %v849, %v877
    %879 = vmatmul.f32.gmra.mxu0 %v540
    %v880 = vpop.f32.mrf.mxu0
    %v881 = vadd.f32 %v852, %v880
    %882 = vmatmul.f32.gmra.mxu0 %v550
    %v883 = vpop.f32.mrf.mxu0
    %v884 = vadd.f32 %v855, %v883
    %885 = vdwg.mxu0
    %886 = vmatpush.msra.mxu0 %v760
    %887 = vmatpush.msra.mxu0 %v756
    %888 = vmatpush.msra.mxu0 %v752
    %889 = vmatpush.msra.mxu0 %v748
    %890 = vmatpush.msra.mxu0 %v744
    %891 = vmatpush.msra.mxu0 %v740
    %892 = vmatpush.msra.mxu0 %v736
    %893 = vmatpush.msra.mxu0 %v732
    %894 = vmatpush.msra.mxu0 %v728
    %895 = vmatpush.msra.mxu0 %v724
    %896 = vmatpush.msra.mxu0 %v720
    %897 = vmatpush.msra.mxu0 %v716
    %898 = vmatpush.msra.mxu0 %v712
    %899 = vmatpush.msra.mxu0 %v708
    %900 = vmatpush.msra.mxu0 %v704
    %901 = vmatpush.msra.mxu0 %v700
    %902 = vmatmul.f32.gmra.mxu0 %v523
    %v903 = vpop.f32.mrf.mxu0
    %v904 = vadd.f32 %v875, %v903
    %905 = vmatmul.f32.gmra.mxu0 %v532
    %v906 = vpop.f32.mrf.mxu0
    %v907 = vadd.f32 %v878, %v906
    %908 = vmatmul.f32.gmra.mxu0 %v543
    %v909 = vpop.f32.mrf.mxu0
    %v910 = vadd.f32 %v881, %v909
    %911 = vmatmul.f32.gmra.mxu0 %v552
    %v912 = vpop.f32.mrf.mxu0
    %v913 = vadd.f32 %v884, %v912
    %914 = vdwg.mxu0
    %915 = vmatpush.msra.mxu0 %v824
    %916 = vmatpush.msra.mxu0 %v820
    %917 = vmatpush.msra.mxu0 %v816
    %918 = vmatpush.msra.mxu0 %v812
    %919 = vmatpush.msra.mxu0 %v808
    %920 = vmatpush.msra.mxu0 %v804
    %921 = vmatpush.msra.mxu0 %v800
    %922 = vmatpush.msra.mxu0 %v796
    %923 = vmatpush.msra.mxu0 %v792
    %924 = vmatpush.msra.mxu0 %v788
    %925 = vmatpush.msra.mxu0 %v784
    %926 = vmatpush.msra.mxu0 %v780
    %927 = vmatpush.msra.mxu0 %v776
    %928 = vmatpush.msra.mxu0 %v772
    %929 = vmatpush.msra.mxu0 %v768
    %930 = vmatpush.msra.mxu0 %v764
    %931 = vmatmul.f32.gmra.mxu0 %v526
    %v932 = vpop.f32.mrf.mxu0
    %v933 = vadd.f32 %v904, %v932
    %934 = vmatmul.f32.gmra.mxu0 %v534
    %v935 = vpop.f32.mrf.mxu0
    %v936 = vadd.f32 %v907, %v935
    %937 = vmatmul.f32.gmra.mxu0 %v546
    %v938 = vpop.f32.mrf.mxu0
    %v939 = vadd.f32 %v910, %v938
    %940 = vmatmul.f32.gmra.mxu0 %v554
    %v941 = vpop.f32.mrf.mxu0
    %v942 = vadd.f32 %v913, %v941
    %943 = vdwg.mxu0
    %944 = vmatpush.msra.mxu0 %v633
    %945 = vmatpush.msra.mxu0 %v629
    %946 = vmatpush.msra.mxu0 %v625
    %947 = vmatpush.msra.mxu0 %v621
    %948 = vmatpush.msra.mxu0 %v617
    %949 = vmatpush.msra.mxu0 %v613
    %950 = vmatpush.msra.mxu0 %v609
    %951 = vmatpush.msra.mxu0 %v605
    %952 = vmatpush.msra.mxu0 %v601
    %953 = vmatpush.msra.mxu0 %v597
    %954 = vmatpush.msra.mxu0 %v593
    %955 = vmatpush.msra.mxu0 %v589
    %956 = vmatpush.msra.mxu0 %v585
    %957 = vmatpush.msra.mxu0 %v581
    %958 = vmatpush.msra.mxu0 %v577
    %959 = vmatpush.msra.mxu0 %v573
    %960 = vmatmul.f32.gmra.mxu0 %v517
    %v961 = vpop.f32.mrf.mxu0
    %v962 = vadd.f32 0.0, %v961
    %963 = vmatmul.f32.gmra.mxu0 %v528
    %v964 = vpop.f32.mrf.mxu0
    %v965 = vadd.f32 0.0, %v964
    %966 = vmatmul.f32.gmra.mxu0 %v537
    %v967 = vpop.f32.mrf.mxu0
    %v968 = vadd.f32 0.0, %v967
    %969 = vmatmul.f32.gmra.mxu0 %v548
    %v970 = vpop.f32.mrf.mxu0
    %v971 = vadd.f32 0.0, %v970
    %972 = vdwg.mxu0
    %973 = vmatpush.msra.mxu0 %v697
    %974 = vmatpush.msra.mxu0 %v693
    %975 = vmatpush.msra.mxu0 %v689
    %976 = vmatpush.msra.mxu0 %v685
    %977 = vmatpush.msra.mxu0 %v681
    %978 = vmatpush.msra.mxu0 %v677
    %979 = vmatpush.msra.mxu0 %v673
    %980 = vmatpush.msra.mxu0 %v669
    %981 = vmatpush.msra.mxu0 %v665
    %982 = vmatpush.msra.mxu0 %v661
    %983 = vmatpush.msra.mxu0 %v657
    %984 = vmatpush.msra.mxu0 %v653
    %985 = vmatpush.msra.mxu0 %v649
    %986 = vmatpush.msra.mxu0 %v645
    %987 = vmatpush.msra.mxu0 %v641
    %988 = vmatpush.msra.mxu0 %v637
    %989 = vmatmul.f32.gmra.mxu0 %v520
    %v990 = vpop.f32.mrf.mxu0
    %v991 = vadd.f32 %v962, %v990
    %992 = vmatmul.f32.gmra.mxu0 %v530
    %v993 = vpop.f32.mrf.mxu0
    %v994 = vadd.f32 %v965, %v993
    %995 = vmatmul.f32.gmra.mxu0 %v540
    %v996 = vpop.f32.mrf.mxu0
    %v997 = vadd.f32 %v968, %v996
    %998 = vmatmul.f32.gmra.mxu0 %v550
    %v999 = vpop.f32.mrf.mxu0
    %v1000 = vadd.f32 %v971, %v999
    %1001 = vdwg.mxu0
    %1002 = vmatpush.msra.mxu0 %v761
    %1003 = vmatpush.msra.mxu0 %v757
    %1004 = vmatpush.msra.mxu0 %v753
    %1005 = vmatpush.msra.mxu0 %v749
    %1006 = vmatpush.msra.mxu0 %v745
    %1007 = vmatpush.msra.mxu0 %v741
    %1008 = vmatpush.msra.mxu0 %v737
    %1009 = vmatpush.msra.mxu0 %v733
    %1010 = vmatpush.msra.mxu0 %v729
    %1011 = vmatpush.msra.mxu0 %v725
    %1012 = vmatpush.msra.mxu0 %v721
    %1013 = vmatpush.msra.mxu0 %v717
    %1014 = vmatpush.msra.mxu0 %v713
    %1015 = vmatpush.msra.mxu0 %v709
    %1016 = vmatpush.msra.mxu0 %v705
    %1017 = vmatpush.msra.mxu0 %v701
    %1018 = vmatmul.f32.gmra.mxu0 %v523
    %v1019 = vpop.f32.mrf.mxu0
    %v1020 = vadd.f32 %v991, %v1019
    %1021 = vmatmul.f32.gmra.mxu0 %v532
    %v1022 = vpop.f32.mrf.mxu0
    %v1023 = vadd.f32 %v994, %v1022
    %1024 = vmatmul.f32.gmra.mxu0 %v543
    %v1025 = vpop.f32.mrf.mxu0
    %v1026 = vadd.f32 %v997, %v1025
    %1027 = vmatmul.f32.gmra.mxu0 %v552
    %v1028 = vpop.f32.mrf.mxu0
    %v1029 = vadd.f32 %v1000, %v1028
    %1030 = vdwg.mxu0
    %1031 = vmatpush.msra.mxu0 %v825
    %1032 = vmatpush.msra.mxu0 %v821
    %1033 = vmatpush.msra.mxu0 %v817
    %1034 = vmatpush.msra.mxu0 %v813
    %1035 = vmatpush.msra.mxu0 %v809
    %1036 = vmatpush.msra.mxu0 %v805
    %1037 = vmatpush.msra.mxu0 %v801
    %1038 = vmatpush.msra.mxu0 %v797
    %1039 = vmatpush.msra.mxu0 %v793
    %1040 = vmatpush.msra.mxu0 %v789
    %1041 = vmatpush.msra.mxu0 %v785
    %1042 = vmatpush.msra.mxu0 %v781
    %1043 = vmatpush.msra.mxu0 %v777
    %1044 = vmatpush.msra.mxu0 %v773
    %1045 = vmatpush.msra.mxu0 %v769
    %1046 = vmatpush.msra.mxu0 %v765
    %1047 = vmatmul.f32.gmra.mxu0 %v526
    %v1048 = vpop.f32.mrf.mxu0
    %v1049 = vadd.f32 %v1020, %v1048
    %1050 = vmatmul.f32.gmra.mxu0 %v534
    %v1051 = vpop.f32.mrf.mxu0
    %v1052 = vadd.f32 %v1023, %v1051
    %1053 = vmatmul.f32.gmra.mxu0 %v546
    %v1054 = vpop.f32.mrf.mxu0
    %v1055 = vadd.f32 %v1026, %v1054
    %1056 = vmatmul.f32.gmra.mxu0 %v554
    %v1057 = vpop.f32.mrf.mxu0
    %v1058 = vadd.f32 %v1029, %v1057
    %1059 = vdwg.mxu0
    %1060 = vmatpush.msra.mxu0 %v634
    %1061 = vmatpush.msra.mxu0 %v630
    %1062 = vmatpush.msra.mxu0 %v626
    %1063 = vmatpush.msra.mxu0 %v622
    %1064 = vmatpush.msra.mxu0 %v618
    %1065 = vmatpush.msra.mxu0 %v614
    %1066 = vmatpush.msra.mxu0 %v610
    %1067 = vmatpush.msra.mxu0 %v606
    %1068 = vmatpush.msra.mxu0 %v602
    %1069 = vmatpush.msra.mxu0 %v598
    %1070 = vmatpush.msra.mxu0 %v594
    %1071 = vmatpush.msra.mxu0 %v590
    %1072 = vmatpush.msra.mxu0 %v586
    %1073 = vmatpush.msra.mxu0 %v582
    %1074 = vmatpush.msra.mxu0 %v578
    %1075 = vmatpush.msra.mxu0 %v574
    %1076 = vmatmul.f32.gmra.mxu0 %v517
    %v1077 = vpop.f32.mrf.mxu0
    %v1078 = vadd.f32 0.0, %v1077
    %1079 = vmatmul.f32.gmra.mxu0 %v528
    %v1080 = vpop.f32.mrf.mxu0
    %v1081 = vadd.f32 0.0, %v1080
    %1082 = vmatmul.f32.gmra.mxu0 %v537
    %v1083 = vpop.f32.mrf.mxu0
    %v1084 = vadd.f32 0.0, %v1083
    %1085 = vmatmul.f32.gmra.mxu0 %v548
    %v1086 = vpop.f32.mrf.mxu0
    %v1087 = vadd.f32 0.0, %v1086
    %1088 = vdwg.mxu0
    %1089 = vmatpush.msra.mxu0 %v698
    %1090 = vmatpush.msra.mxu0 %v694
    %1091 = vmatpush.msra.mxu0 %v690
    %1092 = vmatpush.msra.mxu0 %v686
    %1093 = vmatpush.msra.mxu0 %v682
    %1094 = vmatpush.msra.mxu0 %v678
    %1095 = vmatpush.msra.mxu0 %v674
    %1096 = vmatpush.msra.mxu0 %v670
    %1097 = vmatpush.msra.mxu0 %v666
    %1098 = vmatpush.msra.mxu0 %v662
    %1099 = vmatpush.msra.mxu0 %v658
    %1100 = vmatpush.msra.mxu0 %v654
    %1101 = vmatpush.msra.mxu0 %v650
    %1102 = vmatpush.msra.mxu0 %v646
    %1103 = vmatpush.msra.mxu0 %v642
    %1104 = vmatpush.msra.mxu0 %v638
    %1105 = vmatmul.f32.gmra.mxu0 %v520
    %v1106 = vpop.f32.mrf.mxu0
    %v1107 = vadd.f32 %v1078, %v1106
    %1108 = vmatmul.f32.gmra.mxu0 %v530
    %v1109 = vpop.f32.mrf.mxu0
    %v1110 = vadd.f32 %v1081, %v1109
    %1111 = vmatmul.f32.gmra.mxu0 %v540
    %v1112 = vpop.f32.mrf.mxu0
    %v1113 = vadd.f32 %v1084, %v1112
    %1114 = vmatmul.f32.gmra.mxu0 %v550
    %v1115 = vpop.f32.mrf.mxu0
    %v1116 = vadd.f32 %v1087, %v1115
    %1117 = vdwg.mxu0
    %1118 = vmatpush.msra.mxu0 %v762
    %1119 = vmatpush.msra.mxu0 %v758
    %1120 = vmatpush.msra.mxu0 %v754
    %1121 = vmatpush.msra.mxu0 %v750
    %1122 = vmatpush.msra.mxu0 %v746
    %1123 = vmatpush.msra.mxu0 %v742
    %1124 = vmatpush.msra.mxu0 %v738
    %1125 = vmatpush.msra.mxu0 %v734
    %1126 = vmatpush.msra.mxu0 %v730
    %1127 = vmatpush.msra.mxu0 %v726
    %1128 = vmatpush.msra.mxu0 %v722
    %1129 = vmatpush.msra.mxu0 %v718
    %1130 = vmatpush.msra.mxu0 %v714
    %1131 = vmatpush.msra.mxu0 %v710
    %1132 = vmatpush.msra.mxu0 %v706
    %1133 = vmatpush.msra.mxu0 %v702
    %1134 = vmatmul.f32.gmra.mxu0 %v523
    %v1135 = vpop.f32.mrf.mxu0
    %v1136 = vadd.f32 %v1107, %v1135
    %1137 = vmatmul.f32.gmra.mxu0 %v532
    %v1138 = vpop.f32.mrf.mxu0
    %v1139 = vadd.f32 %v1110, %v1138
    %1140 = vmatmul.f32.gmra.mxu0 %v543
    %v1141 = vpop.f32.mrf.mxu0
    %v1142 = vadd.f32 %v1113, %v1141
    %1143 = vmatmul.f32.gmra.mxu0 %v552
    %v1144 = vpop.f32.mrf.mxu0
    %v1145 = vadd.f32 %v1116, %v1144
    %1146 = vdwg.mxu0
    %1147 = vmatpush.msra.mxu0 %v826
    %1148 = vmatpush.msra.mxu0 %v822
    %1149 = vmatpush.msra.mxu0 %v818
    %1150 = vmatpush.msra.mxu0 %v814
    %1151 = vmatpush.msra.mxu0 %v810
    %1152 = vmatpush.msra.mxu0 %v806
    %1153 = vmatpush.msra.mxu0 %v802
    %1154 = vmatpush.msra.mxu0 %v798
    %1155 = vmatpush.msra.mxu0 %v794
    %1156 = vmatpush.msra.mxu0 %v790
    %1157 = vmatpush.msra.mxu0 %v786
    %1158 = vmatpush.msra.mxu0 %v782
    %1159 = vmatpush.msra.mxu0 %v778
    %1160 = vmatpush.msra.mxu0 %v774
    %1161 = vmatpush.msra.mxu0 %v770
    %1162 = vmatpush.msra.mxu0 %v766
    %1163 = vmatmul.f32.gmra.mxu0 %v526
    %v1164 = vpop.f32.mrf.mxu0
    %v1165 = vadd.f32 %v1136, %v1164
    %1166 = vmatmul.f32.gmra.mxu0 %v534
    %v1167 = vpop.f32.mrf.mxu0
    %v1168 = vadd.f32 %v1139, %v1167
    %1169 = vmatmul.f32.gmra.mxu0 %v546
    %v1170 = vpop.f32.mrf.mxu0
    %v1171 = vadd.f32 %v1142, %v1170
    %1172 = vmatmul.f32.gmra.mxu0 %v554
    %v1173 = vpop.f32.mrf.mxu0
    %v1174 = vadd.f32 %v1145, %v1173
    %1175 = vdwg.mxu0
    %1176 = vmatpush.msra.mxu0 %v635
    %1177 = vmatpush.msra.mxu0 %v631
    %1178 = vmatpush.msra.mxu0 %v627
    %1179 = vmatpush.msra.mxu0 %v623
    %1180 = vmatpush.msra.mxu0 %v619
    %1181 = vmatpush.msra.mxu0 %v615
    %1182 = vmatpush.msra.mxu0 %v611
    %1183 = vmatpush.msra.mxu0 %v607
    %1184 = vmatpush.msra.mxu0 %v603
    %1185 = vmatpush.msra.mxu0 %v599
    %1186 = vmatpush.msra.mxu0 %v595
    %1187 = vmatpush.msra.mxu0 %v591
    %1188 = vmatpush.msra.mxu0 %v587
    %1189 = vmatpush.msra.mxu0 %v583
    %1190 = vmatpush.msra.mxu0 %v579
    %1191 = vmatpush.msra.mxu0 %v575
    %1192 = vmatmul.f32.gmra.mxu0 %v517
    %v1193 = vpop.f32.mrf.mxu0
    %v1194 = vadd.f32 0.0, %v1193
    %1195 = vmatmul.f32.gmra.mxu0 %v528
    %v1196 = vpop.f32.mrf.mxu0
    %v1197 = vadd.f32 0.0, %v1196
    %1198 = vmatmul.f32.gmra.mxu0 %v537
    %v1199 = vpop.f32.mrf.mxu0
    %v1200 = vadd.f32 0.0, %v1199
    %1201 = vmatmul.f32.gmra.mxu0 %v548
    %v1202 = vpop.f32.mrf.mxu0
    %v1203 = vadd.f32 0.0, %v1202
    %1204 = vdwg.mxu0
    %1205 = vmatpush.msra.mxu0 %v699
    %1206 = vmatpush.msra.mxu0 %v695
    %1207 = vmatpush.msra.mxu0 %v691
    %1208 = vmatpush.msra.mxu0 %v687
    %1209 = vmatpush.msra.mxu0 %v683
    %1210 = vmatpush.msra.mxu0 %v679
    %1211 = vmatpush.msra.mxu0 %v675
    %1212 = vmatpush.msra.mxu0 %v671
    %1213 = vmatpush.msra.mxu0 %v667
    %1214 = vmatpush.msra.mxu0 %v663
    %1215 = vmatpush.msra.mxu0 %v659
    %1216 = vmatpush.msra.mxu0 %v655
    %1217 = vmatpush.msra.mxu0 %v651
    %1218 = vmatpush.msra.mxu0 %v647
    %1219 = vmatpush.msra.mxu0 %v643
    %1220 = vmatpush.msra.mxu0 %v639
    %1221 = vmatmul.f32.gmra.mxu0 %v520
    %v1222 = vpop.f32.mrf.mxu0
    %v1223 = vadd.f32 %v1194, %v1222
    %1224 = vmatmul.f32.gmra.mxu0 %v530
    %v1225 = vpop.f32.mrf.mxu0
    %v1226 = vadd.f32 %v1197, %v1225
    %1227 = vmatmul.f32.gmra.mxu0 %v540
    %v1228 = vpop.f32.mrf.mxu0
    %v1229 = vadd.f32 %v1200, %v1228
    %1230 = vmatmul.f32.gmra.mxu0 %v550
    %v1231 = vpop.f32.mrf.mxu0
    %v1232 = vadd.f32 %v1203, %v1231
    %1233 = vdwg.mxu0
    %1234 = vmatpush.msra.mxu0 %v763
    %1235 = vmatpush.msra.mxu0 %v759
    %1236 = vmatpush.msra.mxu0 %v755
    %1237 = vmatpush.msra.mxu0 %v751
    %1238 = vmatpush.msra.mxu0 %v747
    %1239 = vmatpush.msra.mxu0 %v743
    %1240 = vmatpush.msra.mxu0 %v739
    %1241 = vmatpush.msra.mxu0 %v735
    %1242 = vmatpush.msra.mxu0 %v731
    %1243 = vmatpush.msra.mxu0 %v727
    %1244 = vmatpush.msra.mxu0 %v723
    %1245 = vmatpush.msra.mxu0 %v719
    %1246 = vmatpush.msra.mxu0 %v715
    %1247 = vmatpush.msra.mxu0 %v711
    %1248 = vmatpush.msra.mxu0 %v707
    %1249 = vmatpush.msra.mxu0 %v703
    %1250 = vmatmul.f32.gmra.mxu0 %v523
    %v1251 = vpop.f32.mrf.mxu0
    %v1252 = vadd.f32 %v1223, %v1251
    %1253 = vmatmul.f32.gmra.mxu0 %v532
    %v1254 = vpop.f32.mrf.mxu0
    %v1255 = vadd.f32 %v1226, %v1254
    %1256 = vmatmul.f32.gmra.mxu0 %v543
    %v1257 = vpop.f32.mrf.mxu0
    %v1258 = vadd.f32 %v1229, %v1257
    %1259 = vmatmul.f32.gmra.mxu0 %v552
    %v1260 = vpop.f32.mrf.mxu0
    %v1261 = vadd.f32 %v1232, %v1260
    %1262 = vdwg.mxu0
    %1263 = vmatpush.msra.mxu0 %v827
    %1264 = vmatpush.msra.mxu0 %v823
    %1265 = vmatpush.msra.mxu0 %v819
    %1266 = vmatpush.msra.mxu0 %v815
    %1267 = vmatpush.msra.mxu0 %v811
    %1268 = vmatpush.msra.mxu0 %v807
    %1269 = vmatpush.msra.mxu0 %v803
    %1270 = vmatpush.msra.mxu0 %v799
    %1271 = vmatpush.msra.mxu0 %v795
    %1272 = vmatpush.msra.mxu0 %v791
    %1273 = vmatpush.msra.mxu0 %v787
    %1274 = vmatpush.msra.mxu0 %v783
    %1275 = vmatpush.msra.mxu0 %v779
    %1276 = vmatpush.msra.mxu0 %v775
    %1277 = vmatpush.msra.mxu0 %v771
    %1278 = vmatpush.msra.mxu0 %v767
    %1279 = vmatmul.f32.gmra.mxu0 %v526
    %v1280 = vpop.f32.mrf.mxu0
    %v1281 = vadd.f32 %v1252, %v1280
    %1282 = vmatmul.f32.gmra.mxu0 %v534
    %v1283 = vpop.f32.mrf.mxu0
    %v1284 = vadd.f32 %v1255, %v1283
    %1285 = vmatmul.f32.gmra.mxu0 %v546
    %v1286 = vpop.f32.mrf.mxu0
    %v1287 = vadd.f32 %v1258, %v1286
    %1288 = vmatmul.f32.gmra.mxu0 %v554
    %v1289 = vpop.f32.mrf.mxu0
    %v1290 = vadd.f32 %v1261, %v1289
    %1291 = vdwg.mxu0
    %1292 = vmatpush.msra.mxu0 %v278
    %1293 = vmatpush.msra.mxu0 %v274
    %1294 = vmatpush.msra.mxu0 %v270
    %1295 = vmatpush.msra.mxu0 %v266
    %1296 = vmatpush.msra.mxu0 %v262
    %1297 = vmatpush.msra.mxu0 %v258
    %1298 = vmatpush.msra.mxu0 %v254
    %1299 = vmatpush.msra.mxu0 %v250
    %1300 = vmatpush.msra.mxu0 %v246
    %1301 = vmatpush.msra.mxu0 %v242
    %1302 = vmatpush.msra.mxu0 %v238
    %1303 = vmatpush.msra.mxu0 %v234
    %1304 = vmatpush.msra.mxu0 %v230
    %1305 = vmatpush.msra.mxu0 %v226
    %1306 = vmatpush.msra.mxu0 %v222
    %1307 = vmatpush.msra.mxu0 %v218
    %1308 = vmatmul.f32.gmra.mxu0 %v202
    %v1309 = vpop.f32.mrf.mxu0
    %v1310 = vadd.f32 %v933, %v1309
    %1311 = vmatmul.f32.gmra.mxu0 %v206
    %v1312 = vpop.f32.mrf.mxu0
    %v1313 = vadd.f32 %v936, %v1312
    %1314 = vmatmul.f32.gmra.mxu0 %v210
    %v1315 = vpop.f32.mrf.mxu0
    %v1316 = vadd.f32 %v939, %v1315
    %1317 = vmatmul.f32.gmra.mxu0 %v214
    %v1318 = vpop.f32.mrf.mxu0
    %v1319 = vadd.f32 %v942, %v1318
    %1320 = vdwg.mxu0
    %1321 = vmatpush.msra.mxu0 %v342
    %1322 = vmatpush.msra.mxu0 %v338
    %1323 = vmatpush.msra.mxu0 %v334
    %1324 = vmatpush.msra.mxu0 %v330
    %1325 = vmatpush.msra.mxu0 %v326
    %1326 = vmatpush.msra.mxu0 %v322
    %1327 = vmatpush.msra.mxu0 %v318
    %1328 = vmatpush.msra.mxu0 %v314
    %1329 = vmatpush.msra.mxu0 %v310
    %1330 = vmatpush.msra.mxu0 %v306
    %1331 = vmatpush.msra.mxu0 %v302
    %1332 = vmatpush.msra.mxu0 %v298
    %1333 = vmatpush.msra.mxu0 %v294
    %1334 = vmatpush.msra.mxu0 %v290
    %1335 = vmatpush.msra.mxu0 %v286
    %1336 = vmatpush.msra.mxu0 %v282
    %1337 = vmatmul.f32.gmra.mxu0 %v203
    %v1338 = vpop.f32.mrf.mxu0
    %v1339 = vadd.f32 %v1310, %v1338
    %1340 = vmatmul.f32.gmra.mxu0 %v207
    %v1341 = vpop.f32.mrf.mxu0
    %v1342 = vadd.f32 %v1313, %v1341
    %1343 = vmatmul.f32.gmra.mxu0 %v211
    %v1344 = vpop.f32.mrf.mxu0
    %v1345 = vadd.f32 %v1316, %v1344
    %1346 = vmatmul.f32.gmra.mxu0 %v215
    %v1347 = vpop.f32.mrf.mxu0
    %v1348 = vadd.f32 %v1319, %v1347
    %1349 = vdwg.mxu0
    %1350 = vmatpush.msra.mxu0 %v406
    %1351 = vmatpush.msra.mxu0 %v402
    %1352 = vmatpush.msra.mxu0 %v398
    %1353 = vmatpush.msra.mxu0 %v394
    %1354 = vmatpush.msra.mxu0 %v390
    %1355 = vmatpush.msra.mxu0 %v386
    %1356 = vmatpush.msra.mxu0 %v382
    %1357 = vmatpush.msra.mxu0 %v378
    %1358 = vmatpush.msra.mxu0 %v374
    %1359 = vmatpush.msra.mxu0 %v370
    %1360 = vmatpush.msra.mxu0 %v366
    %1361 = vmatpush.msra.mxu0 %v362
    %1362 = vmatpush.msra.mxu0 %v358
    %1363 = vmatpush.msra.mxu0 %v354
    %1364 = vmatpush.msra.mxu0 %v350
    %1365 = vmatpush.msra.mxu0 %v346
    %1366 = vmatmul.f32.gmra.mxu0 %v204
    %v1367 = vpop.f32.mrf.mxu0
    %v1368 = vadd.f32 %v1339, %v1367
    %1369 = vmatmul.f32.gmra.mxu0 %v208
    %v1370 = vpop.f32.mrf.mxu0
    %v1371 = vadd.f32 %v1342, %v1370
    %1372 = vmatmul.f32.gmra.mxu0 %v212
    %v1373 = vpop.f32.mrf.mxu0
    %v1374 = vadd.f32 %v1345, %v1373
    %1375 = vmatmul.f32.gmra.mxu0 %v216
    %v1376 = vpop.f32.mrf.mxu0
    %v1377 = vadd.f32 %v1348, %v1376
    %1378 = vdwg.mxu0
    %1379 = vmatpush.msra.mxu0 %v470
    %1380 = vmatpush.msra.mxu0 %v466
    %1381 = vmatpush.msra.mxu0 %v462
    %1382 = vmatpush.msra.mxu0 %v458
    %1383 = vmatpush.msra.mxu0 %v454
    %1384 = vmatpush.msra.mxu0 %v450
    %1385 = vmatpush.msra.mxu0 %v446
    %1386 = vmatpush.msra.mxu0 %v442
    %1387 = vmatpush.msra.mxu0 %v438
    %1388 = vmatpush.msra.mxu0 %v434
    %1389 = vmatpush.msra.mxu0 %v430
    %1390 = vmatpush.msra.mxu0 %v426
    %1391 = vmatpush.msra.mxu0 %v422
    %1392 = vmatpush.msra.mxu0 %v418
    %1393 = vmatpush.msra.mxu0 %v414
    %1394 = vmatpush.msra.mxu0 %v410
    %1395 = vmatmul.f32.gmra.mxu0 %v205
    %v1396 = vpop.f32.mrf.mxu0
    %v1397 = vadd.f32 %v1368, %v1396
    %1398 = vmatmul.f32.gmra.mxu0 %v209
    %v1399 = vpop.f32.mrf.mxu0
    %v1400 = vadd.f32 %v1371, %v1399
    %1401 = vmatmul.f32.gmra.mxu0 %v213
    %v1402 = vpop.f32.mrf.mxu0
    %v1403 = vadd.f32 %v1374, %v1402
    %1404 = vmatmul.f32.gmra.mxu0 %v217
    %v1405 = vpop.f32.mrf.mxu0
    %v1406 = vadd.f32 %v1377, %v1405
    %1407 = vdwg.mxu0
    %1408 = vmatpush.msra.mxu0 %v279
    %1409 = vmatpush.msra.mxu0 %v275
    %1410 = vmatpush.msra.mxu0 %v271
    %1411 = vmatpush.msra.mxu0 %v267
    %1412 = vmatpush.msra.mxu0 %v263
    %1413 = vmatpush.msra.mxu0 %v259
    %1414 = vmatpush.msra.mxu0 %v255
    %1415 = vmatpush.msra.mxu0 %v251
    %1416 = vmatpush.msra.mxu0 %v247
    %1417 = vmatpush.msra.mxu0 %v243
    %1418 = vmatpush.msra.mxu0 %v239
    %1419 = vmatpush.msra.mxu0 %v235
    %1420 = vmatpush.msra.mxu0 %v231
    %1421 = vmatpush.msra.mxu0 %v227
    %1422 = vmatpush.msra.mxu0 %v223
    %1423 = vmatpush.msra.mxu0 %v219
    %1424 = vmatmul.f32.gmra.mxu0 %v202
    %v1425 = vpop.f32.mrf.mxu0
    %v1426 = vadd.f32 %v1049, %v1425
    %1427 = vmatmul.f32.gmra.mxu0 %v206
    %v1428 = vpop.f32.mrf.mxu0
    %v1429 = vadd.f32 %v1052, %v1428
    %1430 = vmatmul.f32.gmra.mxu0 %v210
    %v1431 = vpop.f32.mrf.mxu0
    %v1432 = vadd.f32 %v1055, %v1431
    %1433 = vmatmul.f32.gmra.mxu0 %v214
    %v1434 = vpop.f32.mrf.mxu0
    %v1435 = vadd.f32 %v1058, %v1434
    %1436 = vdwg.mxu0
    %1437 = vmatpush.msra.mxu0 %v343
    %1438 = vmatpush.msra.mxu0 %v339
    %1439 = vmatpush.msra.mxu0 %v335
    %1440 = vmatpush.msra.mxu0 %v331
    %1441 = vmatpush.msra.mxu0 %v327
    %1442 = vmatpush.msra.mxu0 %v323
    %1443 = vmatpush.msra.mxu0 %v319
    %1444 = vmatpush.msra.mxu0 %v315
    %1445 = vmatpush.msra.mxu0 %v311
    %1446 = vmatpush.msra.mxu0 %v307
    %1447 = vmatpush.msra.mxu0 %v303
    %1448 = vmatpush.msra.mxu0 %v299
    %1449 = vmatpush.msra.mxu0 %v295
    %1450 = vmatpush.msra.mxu0 %v291
    %1451 = vmatpush.msra.mxu0 %v287
    %1452 = vmatpush.msra.mxu0 %v283
    %1453 = vmatmul.f32.gmra.mxu0 %v203
    %v1454 = vpop.f32.mrf.mxu0
    %v1455 = vadd.f32 %v1426, %v1454
    %1456 = vmatmul.f32.gmra.mxu0 %v207
    %v1457 = vpop.f32.mrf.mxu0
    %v1458 = vadd.f32 %v1429, %v1457
    %1459 = vmatmul.f32.gmra.mxu0 %v211
    %v1460 = vpop.f32.mrf.mxu0
    %v1461 = vadd.f32 %v1432, %v1460
    %1462 = vmatmul.f32.gmra.mxu0 %v215
    %v1463 = vpop.f32.mrf.mxu0
    %v1464 = vadd.f32 %v1435, %v1463
    %1465 = vdwg.mxu0
    %1466 = vmatpush.msra.mxu0 %v407
    %1467 = vmatpush.msra.mxu0 %v403
    %1468 = vmatpush.msra.mxu0 %v399
    %1469 = vmatpush.msra.mxu0 %v395
    %1470 = vmatpush.msra.mxu0 %v391
    %1471 = vmatpush.msra.mxu0 %v387
    %1472 = vmatpush.msra.mxu0 %v383
    %1473 = vmatpush.msra.mxu0 %v379
    %1474 = vmatpush.msra.mxu0 %v375
    %1475 = vmatpush.msra.mxu0 %v371
    %1476 = vmatpush.msra.mxu0 %v367
    %1477 = vmatpush.msra.mxu0 %v363
    %1478 = vmatpush.msra.mxu0 %v359
    %1479 = vmatpush.msra.mxu0 %v355
    %1480 = vmatpush.msra.mxu0 %v351
    %1481 = vmatpush.msra.mxu0 %v347
    %1482 = vmatmul.f32.gmra.mxu0 %v204
    %v1483 = vpop.f32.mrf.mxu0
    %v1484 = vadd.f32 %v1455, %v1483
    %1485 = vmatmul.f32.gmra.mxu0 %v208
    %v1486 = vpop.f32.mrf.mxu0
    %v1487 = vadd.f32 %v1458, %v1486
    %1488 = vmatmul.f32.gmra.mxu0 %v212
    %v1489 = vpop.f32.mrf.mxu0
    %v1490 = vadd.f32 %v1461, %v1489
    %1491 = vmatmul.f32.gmra.mxu0 %v216
    %v1492 = vpop.f32.mrf.mxu0
    %v1493 = vadd.f32 %v1464, %v1492
    %1494 = vdwg.mxu0
    %1495 = vmatpush.msra.mxu0 %v471
    %1496 = vmatpush.msra.mxu0 %v467
    %1497 = vmatpush.msra.mxu0 %v463
    %1498 = vmatpush.msra.mxu0 %v459
    %1499 = vmatpush.msra.mxu0 %v455
    %1500 = vmatpush.msra.mxu0 %v451
    %1501 = vmatpush.msra.mxu0 %v447
    %1502 = vmatpush.msra.mxu0 %v443
    %1503 = vmatpush.msra.mxu0 %v439
    %1504 = vmatpush.msra.mxu0 %v435
    %1505 = vmatpush.msra.mxu0 %v431
    %1506 = vmatpush.msra.mxu0 %v427
    %1507 = vmatpush.msra.mxu0 %v423
    %1508 = vmatpush.msra.mxu0 %v419
    %1509 = vmatpush.msra.mxu0 %v415
    %1510 = vmatpush.msra.mxu0 %v411
    %1511 = vmatmul.f32.gmra.mxu0 %v205
    %v1512 = vpop.f32.mrf.mxu0
    %v1513 = vadd.f32 %v1484, %v1512
    %1514 = vmatmul.f32.gmra.mxu0 %v209
    %v1515 = vpop.f32.mrf.mxu0
    %v1516 = vadd.f32 %v1487, %v1515
    %1517 = vmatmul.f32.gmra.mxu0 %v213
    %v1518 = vpop.f32.mrf.mxu0
    %v1519 = vadd.f32 %v1490, %v1518
    %1520 = vmatmul.f32.gmra.mxu0 %v217
    %v1521 = vpop.f32.mrf.mxu0
    %v1522 = vadd.f32 %v1493, %v1521
    %1523 = vdwg.mxu0
    %1524 = vmatpush.msra.mxu0 %v280
    %1525 = vmatpush.msra.mxu0 %v276
    %1526 = vmatpush.msra.mxu0 %v272
    %1527 = vmatpush.msra.mxu0 %v268
    %1528 = vmatpush.msra.mxu0 %v264
    %1529 = vmatpush.msra.mxu0 %v260
    %1530 = vmatpush.msra.mxu0 %v256
    %1531 = vmatpush.msra.mxu0 %v252
    %1532 = vmatpush.msra.mxu0 %v248
    %1533 = vmatpush.msra.mxu0 %v244
    %1534 = vmatpush.msra.mxu0 %v240
    %1535 = vmatpush.msra.mxu0 %v236
    %1536 = vmatpush.msra.mxu0 %v232
    %1537 = vmatpush.msra.mxu0 %v228
    %1538 = vmatpush.msra.mxu0 %v224
    %1539 = vmatpush.msra.mxu0 %v220
    %1540 = vmatmul.f32.gmra.mxu0 %v202
    %v1541 = vpop.f32.mrf.mxu0
    %v1542 = vadd.f32 %v1165, %v1541
    %1543 = vmatmul.f32.gmra.mxu0 %v206
    %v1544 = vpop.f32.mrf.mxu0
    %v1545 = vadd.f32 %v1168, %v1544
    %1546 = vmatmul.f32.gmra.mxu0 %v210
    %v1547 = vpop.f32.mrf.mxu0
    %v1548 = vadd.f32 %v1171, %v1547
    %1549 = vmatmul.f32.gmra.mxu0 %v214
    %v1550 = vpop.f32.mrf.mxu0
    %v1551 = vadd.f32 %v1174, %v1550
    %1552 = vdwg.mxu0
    %1553 = vmatpush.msra.mxu0 %v344
    %1554 = vmatpush.msra.mxu0 %v340
    %1555 = vmatpush.msra.mxu0 %v336
    %1556 = vmatpush.msra.mxu0 %v332
    %1557 = vmatpush.msra.mxu0 %v328
    %1558 = vmatpush.msra.mxu0 %v324
    %1559 = vmatpush.msra.mxu0 %v320
    %1560 = vmatpush.msra.mxu0 %v316
    %1561 = vmatpush.msra.mxu0 %v312
    %1562 = vmatpush.msra.mxu0 %v308
    %1563 = vmatpush.msra.mxu0 %v304
    %1564 = vmatpush.msra.mxu0 %v300
    %1565 = vmatpush.msra.mxu0 %v296
    %1566 = vmatpush.msra.mxu0 %v292
    %1567 = vmatpush.msra.mxu0 %v288
    %1568 = vmatpush.msra.mxu0 %v284
    %1569 = vmatmul.f32.gmra.mxu0 %v203
    %v1570 = vpop.f32.mrf.mxu0
    %v1571 = vadd.f32 %v1542, %v1570
    %1572 = vmatmul.f32.gmra.mxu0 %v207
    %v1573 = vpop.f32.mrf.mxu0
    %v1574 = vadd.f32 %v1545, %v1573
    %1575 = vmatmul.f32.gmra.mxu0 %v211
    %v1576 = vpop.f32.mrf.mxu0
    %v1577 = vadd.f32 %v1548, %v1576
    %1578 = vmatmul.f32.gmra.mxu0 %v215
    %v1579 = vpop.f32.mrf.mxu0
    %v1580 = vadd.f32 %v1551, %v1579
    %1581 = vdwg.mxu0
    %1582 = vmatpush.msra.mxu0 %v408
    %1583 = vmatpush.msra.mxu0 %v404
    %1584 = vmatpush.msra.mxu0 %v400
    %1585 = vmatpush.msra.mxu0 %v396
    %1586 = vmatpush.msra.mxu0 %v392
    %1587 = vmatpush.msra.mxu0 %v388
    %1588 = vmatpush.msra.mxu0 %v384
    %1589 = vmatpush.msra.mxu0 %v380
    %1590 = vmatpush.msra.mxu0 %v376
    %1591 = vmatpush.msra.mxu0 %v372
    %1592 = vmatpush.msra.mxu0 %v368
    %1593 = vmatpush.msra.mxu0 %v364
    %1594 = vmatpush.msra.mxu0 %v360
    %1595 = vmatpush.msra.mxu0 %v356
    %1596 = vmatpush.msra.mxu0 %v352
    %1597 = vmatpush.msra.mxu0 %v348
    %1598 = vmatmul.f32.gmra.mxu0 %v204
    %v1599 = vpop.f32.mrf.mxu0
    %v1600 = vadd.f32 %v1571, %v1599
    %1601 = vmatmul.f32.gmra.mxu0 %v208
    %v1602 = vpop.f32.mrf.mxu0
    %v1603 = vadd.f32 %v1574, %v1602
    %1604 = vmatmul.f32.gmra.mxu0 %v212
    %v1605 = vpop.f32.mrf.mxu0
    %v1606 = vadd.f32 %v1577, %v1605
    %1607 = vmatmul.f32.gmra.mxu0 %v216
    %v1608 = vpop.f32.mrf.mxu0
    %v1609 = vadd.f32 %v1580, %v1608
    %1610 = vdwg.mxu0
    %1611 = vmatpush.msra.mxu0 %v472
    %1612 = vmatpush.msra.mxu0 %v468
    %1613 = vmatpush.msra.mxu0 %v464
    %1614 = vmatpush.msra.mxu0 %v460
    %1615 = vmatpush.msra.mxu0 %v456
    %1616 = vmatpush.msra.mxu0 %v452
    %1617 = vmatpush.msra.mxu0 %v448
    %1618 = vmatpush.msra.mxu0 %v444
    %1619 = vmatpush.msra.mxu0 %v440
    %1620 = vmatpush.msra.mxu0 %v436
    %1621 = vmatpush.msra.mxu0 %v432
    %1622 = vmatpush.msra.mxu0 %v428
    %1623 = vmatpush.msra.mxu0 %v424
    %1624 = vmatpush.msra.mxu0 %v420
    %1625 = vmatpush.msra.mxu0 %v416
    %1626 = vmatpush.msra.mxu0 %v412
    %1627 = vmatmul.f32.gmra.mxu0 %v205
    %v1628 = vpop.f32.mrf.mxu0
    %v1629 = vadd.f32 %v1600, %v1628
    %1630 = vmatmul.f32.gmra.mxu0 %v209
    %v1631 = vpop.f32.mrf.mxu0
    %v1632 = vadd.f32 %v1603, %v1631
    %1633 = vmatmul.f32.gmra.mxu0 %v213
    %v1634 = vpop.f32.mrf.mxu0
    %v1635 = vadd.f32 %v1606, %v1634
    %1636 = vmatmul.f32.gmra.mxu0 %v217
    %v1637 = vpop.f32.mrf.mxu0
    %v1638 = vadd.f32 %v1609, %v1637
    %1639 = vdwg.mxu0
    %1640 = vmatpush.msra.mxu0 %v281
    %1641 = vmatpush.msra.mxu0 %v277
    %1642 = vmatpush.msra.mxu0 %v273
    %1643 = vmatpush.msra.mxu0 %v269
    %1644 = vmatpush.msra.mxu0 %v265
    %1645 = vmatpush.msra.mxu0 %v261
    %1646 = vmatpush.msra.mxu0 %v257
    %1647 = vmatpush.msra.mxu0 %v253
    %1648 = vmatpush.msra.mxu0 %v249
    %1649 = vmatpush.msra.mxu0 %v245
    %1650 = vmatpush.msra.mxu0 %v241
    %1651 = vmatpush.msra.mxu0 %v237
    %1652 = vmatpush.msra.mxu0 %v233
    %1653 = vmatpush.msra.mxu0 %v229
    %1654 = vmatpush.msra.mxu0 %v225
    %1655 = vmatpush.msra.mxu0 %v221
    %1656 = vmatmul.f32.gmra.mxu0 %v202
    %v1657 = vpop.f32.mrf.mxu0
    %v1658 = vadd.f32 %v1281, %v1657
    %1659 = vmatmul.f32.gmra.mxu0 %v206
    %v1660 = vpop.f32.mrf.mxu0
    %v1661 = vadd.f32 %v1284, %v1660
    %1662 = vmatmul.f32.gmra.mxu0 %v210
    %v1663 = vpop.f32.mrf.mxu0
    %v1664 = vadd.f32 %v1287, %v1663
    %1665 = vmatmul.f32.gmra.mxu0 %v214
    %v1666 = vpop.f32.mrf.mxu0
    %v1667 = vadd.f32 %v1290, %v1666
    %1668 = vdwg.mxu0
    %1669 = vmatpush.msra.mxu0 %v345
    %1670 = vmatpush.msra.mxu0 %v341
    %1671 = vmatpush.msra.mxu0 %v337
    %1672 = vmatpush.msra.mxu0 %v333
    %1673 = vmatpush.msra.mxu0 %v329
    %1674 = vmatpush.msra.mxu0 %v325
    %1675 = vmatpush.msra.mxu0 %v321
    %1676 = vmatpush.msra.mxu0 %v317
    %1677 = vmatpush.msra.mxu0 %v313
    %1678 = vmatpush.msra.mxu0 %v309
    %1679 = vmatpush.msra.mxu0 %v305
    %1680 = vmatpush.msra.mxu0 %v301
    %1681 = vmatpush.msra.mxu0 %v297
    %1682 = vmatpush.msra.mxu0 %v293
    %1683 = vmatpush.msra.mxu0 %v289
    %1684 = vmatpush.msra.mxu0 %v285
    %1685 = vmatmul.f32.gmra.mxu0 %v203
    %v1686 = vpop.f32.mrf.mxu0
    %v1687 = vadd.f32 %v1658, %v1686
    %1688 = vmatmul.f32.gmra.mxu0 %v207
    %v1689 = vpop.f32.mrf.mxu0
    %v1690 = vadd.f32 %v1661, %v1689
    %1691 = vmatmul.f32.gmra.mxu0 %v211
    %v1692 = vpop.f32.mrf.mxu0
    %v1693 = vadd.f32 %v1664, %v1692
    %1694 = vmatmul.f32.gmra.mxu0 %v215
    %v1695 = vpop.f32.mrf.mxu0
    %v1696 = vadd.f32 %v1667, %v1695
    %1697 = vdwg.mxu0
    %1698 = vmatpush.msra.mxu0 %v409
    %1699 = vmatpush.msra.mxu0 %v405
    %1700 = vmatpush.msra.mxu0 %v401
    %1701 = vmatpush.msra.mxu0 %v397
    %1702 = vmatpush.msra.mxu0 %v393
    %1703 = vmatpush.msra.mxu0 %v389
    %1704 = vmatpush.msra.mxu0 %v385
    %1705 = vmatpush.msra.mxu0 %v381
    %1706 = vmatpush.msra.mxu0 %v377
    %1707 = vmatpush.msra.mxu0 %v373
    %1708 = vmatpush.msra.mxu0 %v369
    %1709 = vmatpush.msra.mxu0 %v365
    %1710 = vmatpush.msra.mxu0 %v361
    %1711 = vmatpush.msra.mxu0 %v357
    %1712 = vmatpush.msra.mxu0 %v353
    %1713 = vmatpush.msra.mxu0 %v349
    %1714 = vmatmul.f32.gmra.mxu0 %v204
    %v1715 = vpop.f32.mrf.mxu0
    %v1716 = vadd.f32 %v1687, %v1715
    %1717 = vmatmul.f32.gmra.mxu0 %v208
    %v1718 = vpop.f32.mrf.mxu0
    %v1719 = vadd.f32 %v1690, %v1718
    %1720 = vmatmul.f32.gmra.mxu0 %v212
    %v1721 = vpop.f32.mrf.mxu0
    %v1722 = vadd.f32 %v1693, %v1721
    %1723 = vmatmul.f32.gmra.mxu0 %v216
    %v1724 = vpop.f32.mrf.mxu0
    %v1725 = vadd.f32 %v1696, %v1724
    %1726 = vdwg.mxu0
    %1727 = vmatpush.msra.mxu0 %v473
    %1728 = vmatpush.msra.mxu0 %v469
    %1729 = vmatpush.msra.mxu0 %v465
    %1730 = vmatpush.msra.mxu0 %v461
    %1731 = vmatpush.msra.mxu0 %v457
    %1732 = vmatpush.msra.mxu0 %v453
    %1733 = vmatpush.msra.mxu0 %v449
    %1734 = vmatpush.msra.mxu0 %v445
    %1735 = vmatpush.msra.mxu0 %v441
    %1736 = vmatpush.msra.mxu0 %v437
    %1737 = vmatpush.msra.mxu0 %v433
    %1738 = vmatpush.msra.mxu0 %v429
    %1739 = vmatpush.msra.mxu0 %v425
    %1740 = vmatpush.msra.mxu0 %v421
    %1741 = vmatpush.msra.mxu0 %v417
    %1742 = vmatpush.msra.mxu0 %v413
    %1743 = vmatmul.f32.gmra.mxu0 %v205
    %v1744 = vpop.f32.mrf.mxu0
    %v1745 = vadd.f32 %v1716, %v1744
    %1746 = vmatmul.f32.gmra.mxu0 %v209
    %v1747 = vpop.f32.mrf.mxu0
    %v1748 = vadd.f32 %v1719, %v1747
    %1749 = vmatmul.f32.gmra.mxu0 %v213
    %v1750 = vpop.f32.mrf.mxu0
    %v1751 = vadd.f32 %v1722, %v1750
    %1752 = vmatmul.f32.gmra.mxu0 %v217
    %v1753 = vpop.f32.mrf.mxu0
    %v1754 = vadd.f32 %v1725, %v1753
    %1755 = vdwg.mxu0
    %v1756 = vld [vmem:[#allocation2] sm:$0xfc]
    %v1757 = vld [vmem:[#allocation2 + $0x8] sm:$0xfc]
    %v1758 = vld [vmem:[#allocation2 + $0x10] sm:$0xfc]
    %v1759 = vld [vmem:[#allocation2 + $0x18] sm:$0xfc]
    %v1760 = vld [vmem:[#allocation2 + $0x40] sm:$0x3]
    %v1761 = vld [vmem:[#allocation2 + $0x48] sm:$0x3]
    %v1762 = vld [vmem:[#allocation2 + $0x50] sm:$0x3]
    %v1763 = vld [vmem:[#allocation2 + $0x58] sm:$0x3]
    %v1764 = vld [vmem:[#allocation2 + $0x60] sm:$0xfc]
    %v1765 = vld [vmem:[#allocation2 + $0x68] sm:$0xfc]
    %v1766 = vld [vmem:[#allocation2 + $0x70] sm:$0xfc]
    %v1767 = vld [vmem:[#allocation2 + $0x78] sm:$0xfc]
    %v1768 = vld [vmem:[#allocation2 + $0xa0] sm:$0x3]
    %v1769 = vld [vmem:[#allocation2 + $0xa8] sm:$0x3]
    %v1770 = vld [vmem:[#allocation2 + $0xb0] sm:$0x3]
    %v1771 = vld [vmem:[#allocation2 + $0xb8] sm:$0x3]
    %vm1788 = vcmask 1045504
    %v1789 = vrot.slane %v1756, 2
    %v1790 = vrot.slane %v206, 2
    %v1791 = vsel %vm1788, %v1789, %v1790
    %v1792 = vrot.slane %v1757, 2
    %v1793 = vrot.slane %v207, 2
    %v1794 = vsel %vm1788, %v1792, %v1793
    %v1795 = vrot.slane %v1758, 2
    %v1796 = vrot.slane %v208, 2
    %v1797 = vsel %vm1788, %v1795, %v1796
    %v1798 = vrot.slane %v1759, 2
    %v1799 = vrot.slane %v209, 2
    %v1800 = vsel %vm1788, %v1798, %v1799
    %v1801 = vrot.slane %v1760, 2
    %v1802 = vsel %vm1788, %v1790, %v1801
    %v1803 = vrot.slane %v1761, 2
    %v1804 = vsel %vm1788, %v1793, %v1803
    %v1805 = vrot.slane %v1762, 2
    %v1806 = vsel %vm1788, %v1796, %v1805
    %v1807 = vrot.slane %v1763, 2
    %v1808 = vsel %vm1788, %v1799, %v1807
    %v1809 = vrot.slane %v1764, 2
    %v1810 = vrot.slane %v214, 2
    %v1811 = vsel %vm1788, %v1809, %v1810
    %v1812 = vrot.slane %v1765, 2
    %v1813 = vrot.slane %v215, 2
    %v1814 = vsel %vm1788, %v1812, %v1813
    %v1815 = vrot.slane %v1766, 2
    %v1816 = vrot.slane %v216, 2
    %v1817 = vsel %vm1788, %v1815, %v1816
    %v1818 = vrot.slane %v1767, 2
    %v1819 = vrot.slane %v217, 2
    %v1820 = vsel %vm1788, %v1818, %v1819
    %v1821 = vrot.slane %v1768, 2
    %v1822 = vsel %vm1788, %v1810, %v1821
    %v1823 = vrot.slane %v1769, 2
    %v1824 = vsel %vm1788, %v1813, %v1823
    %v1825 = vrot.slane %v1770, 2
    %v1826 = vsel %vm1788, %v1816, %v1825
    %v1827 = vrot.slane %v1771, 2
    %v1828 = vsel %vm1788, %v1819, %v1827
    %s1845 = scalar_lea.vmem [#allocation4], 4096
    %v1846 = vld [vmem:[%s1845] sm:$0xff]
    %v1847 = vld [vmem:[%s1845 + $0x8] sm:$0xff]
    %v1848 = vld [vmem:[%s1845 + $0x10] sm:$0xff]
    %v1849 = vld [vmem:[%s1845 + $0x18] sm:$0xff]
    %v1850 = vld [vmem:[%s1845 + $0x20] sm:$0xff]
    %v1851 = vld [vmem:[%s1845 + $0x28] sm:$0xff]
    %v1852 = vld [vmem:[%s1845 + $0x30] sm:$0xff]
    %v1853 = vld [vmem:[%s1845 + $0x38] sm:$0xff]
    %v1854 = vld [vmem:[%s1845 + $0x40] sm:$0xff]
    %v1855 = vld [vmem:[%s1845 + $0x48] sm:$0xff]
    %v1856 = vld [vmem:[%s1845 + $0x50] sm:$0xff]
    %v1857 = vld [vmem:[%s1845 + $0x58] sm:$0xff]
    %v1858 = vld [vmem:[%s1845 + $0x60] sm:$0xff]
    %v1859 = vld [vmem:[%s1845 + $0x68] sm:$0xff]
    %v1860 = vld [vmem:[%s1845 + $0x70] sm:$0xff]
    %v1861 = vld [vmem:[%s1845 + $0x78] sm:$0xff]
    %v1862 = vld [vmem:[%s1845 + $0x80] sm:$0xff]
    %v1863 = vld [vmem:[%s1845 + $0x88] sm:$0xff]
    %v1864 = vld [vmem:[%s1845 + $0x90] sm:$0xff]
    %v1865 = vld [vmem:[%s1845 + $0x98] sm:$0xff]
    %v1866 = vld [vmem:[%s1845 + $0xa0] sm:$0xff]
    %v1867 = vld [vmem:[%s1845 + $0xa8] sm:$0xff]
    %v1868 = vld [vmem:[%s1845 + $0xb0] sm:$0xff]
    %v1869 = vld [vmem:[%s1845 + $0xb8] sm:$0xff]
    %v1870 = vld [vmem:[%s1845 + $0xc0] sm:$0xff]
    %v1871 = vld [vmem:[%s1845 + $0xc8] sm:$0xff]
    %v1872 = vld [vmem:[%s1845 + $0xd0] sm:$0xff]
    %v1873 = vld [vmem:[%s1845 + $0xd8] sm:$0xff]
    %v1874 = vld [vmem:[%s1845 + $0xe0] sm:$0xff]
    %v1875 = vld [vmem:[%s1845 + $0xe8] sm:$0xff]
    %v1876 = vld [vmem:[%s1845 + $0xf0] sm:$0xff]
    %v1877 = vld [vmem:[%s1845 + $0xf8] sm:$0xff]
    %v1878 = vld [vmem:[%s1845 + $0x100] sm:$0xff]
    %v1879 = vld [vmem:[%s1845 + $0x108] sm:$0xff]
    %v1880 = vld [vmem:[%s1845 + $0x110] sm:$0xff]
    %v1881 = vld [vmem:[%s1845 + $0x118] sm:$0xff]
    %v1882 = vld [vmem:[%s1845 + $0x120] sm:$0xff]
    %v1883 = vld [vmem:[%s1845 + $0x128] sm:$0xff]
    %v1884 = vld [vmem:[%s1845 + $0x130] sm:$0xff]
    %v1885 = vld [vmem:[%s1845 + $0x138] sm:$0xff]
    %v1886 = vld [vmem:[%s1845 + $0x140] sm:$0xff]
    %v1887 = vld [vmem:[%s1845 + $0x148] sm:$0xff]
    %v1888 = vld [vmem:[%s1845 + $0x150] sm:$0xff]
    %v1889 = vld [vmem:[%s1845 + $0x158] sm:$0xff]
    %v1890 = vld [vmem:[%s1845 + $0x160] sm:$0xff]
    %v1891 = vld [vmem:[%s1845 + $0x168] sm:$0xff]
    %v1892 = vld [vmem:[%s1845 + $0x170] sm:$0xff]
    %v1893 = vld [vmem:[%s1845 + $0x178] sm:$0xff]
    %v1894 = vld [vmem:[%s1845 + $0x180] sm:$0xff]
    %v1895 = vld [vmem:[%s1845 + $0x188] sm:$0xff]
    %v1896 = vld [vmem:[%s1845 + $0x190] sm:$0xff]
    %v1897 = vld [vmem:[%s1845 + $0x198] sm:$0xff]
    %v1898 = vld [vmem:[%s1845 + $0x1a0] sm:$0xff]
    %v1899 = vld [vmem:[%s1845 + $0x1a8] sm:$0xff]
    %v1900 = vld [vmem:[%s1845 + $0x1b0] sm:$0xff]
    %v1901 = vld [vmem:[%s1845 + $0x1b8] sm:$0xff]
    %v1902 = vld [vmem:[%s1845 + $0x1c0] sm:$0xff]
    %v1903 = vld [vmem:[%s1845 + $0x1c8] sm:$0xff]
    %v1904 = vld [vmem:[%s1845 + $0x1d0] sm:$0xff]
    %v1905 = vld [vmem:[%s1845 + $0x1d8] sm:$0xff]
    %v1906 = vld [vmem:[%s1845 + $0x1e0] sm:$0xff]
    %v1907 = vld [vmem:[%s1845 + $0x1e8] sm:$0xff]
    %v1908 = vld [vmem:[%s1845 + $0x1f0] sm:$0xff]
    %v1909 = vld [vmem:[%s1845 + $0x1f8] sm:$0xff]
    %v1910 = vld [vmem:[%s1845 + $0x200] sm:$0xff]
    %v1911 = vld [vmem:[%s1845 + $0x208] sm:$0xff]
    %v1912 = vld [vmem:[%s1845 + $0x210] sm:$0xff]
    %v1913 = vld [vmem:[%s1845 + $0x218] sm:$0xff]
    %v1914 = vld [vmem:[%s1845 + $0x220] sm:$0xff]
    %v1915 = vld [vmem:[%s1845 + $0x228] sm:$0xff]
    %v1916 = vld [vmem:[%s1845 + $0x230] sm:$0xff]
    %v1917 = vld [vmem:[%s1845 + $0x238] sm:$0xff]
    %v1918 = vld [vmem:[%s1845 + $0x240] sm:$0xff]
    %v1919 = vld [vmem:[%s1845 + $0x248] sm:$0xff]
    %v1920 = vld [vmem:[%s1845 + $0x250] sm:$0xff]
    %v1921 = vld [vmem:[%s1845 + $0x258] sm:$0xff]
    %v1922 = vld [vmem:[%s1845 + $0x260] sm:$0xff]
    %v1923 = vld [vmem:[%s1845 + $0x268] sm:$0xff]
    %v1924 = vld [vmem:[%s1845 + $0x270] sm:$0xff]
    %v1925 = vld [vmem:[%s1845 + $0x278] sm:$0xff]
    %v1926 = vld [vmem:[%s1845 + $0x280] sm:$0xff]
    %v1927 = vld [vmem:[%s1845 + $0x288] sm:$0xff]
    %v1928 = vld [vmem:[%s1845 + $0x290] sm:$0xff]
    %v1929 = vld [vmem:[%s1845 + $0x298] sm:$0xff]
    %v1930 = vld [vmem:[%s1845 + $0x2a0] sm:$0xff]
    %v1931 = vld [vmem:[%s1845 + $0x2a8] sm:$0xff]
    %v1932 = vld [vmem:[%s1845 + $0x2b0] sm:$0xff]
    %v1933 = vld [vmem:[%s1845 + $0x2b8] sm:$0xff]
    %v1934 = vld [vmem:[%s1845 + $0x2c0] sm:$0xff]
    %v1935 = vld [vmem:[%s1845 + $0x2c8] sm:$0xff]
    %v1936 = vld [vmem:[%s1845 + $0x2d0] sm:$0xff]
    %v1937 = vld [vmem:[%s1845 + $0x2d8] sm:$0xff]
    %v1938 = vld [vmem:[%s1845 + $0x2e0] sm:$0xff]
    %v1939 = vld [vmem:[%s1845 + $0x2e8] sm:$0xff]
    %v1940 = vld [vmem:[%s1845 + $0x2f0] sm:$0xff]
    %v1941 = vld [vmem:[%s1845 + $0x2f8] sm:$0xff]
    %v1942 = vld [vmem:[%s1845 + $0x300] sm:$0xff]
    %v1943 = vld [vmem:[%s1845 + $0x308] sm:$0xff]
    %v1944 = vld [vmem:[%s1845 + $0x310] sm:$0xff]
    %v1945 = vld [vmem:[%s1845 + $0x318] sm:$0xff]
    %v1946 = vld [vmem:[%s1845 + $0x320] sm:$0xff]
    %v1947 = vld [vmem:[%s1845 + $0x328] sm:$0xff]
    %v1948 = vld [vmem:[%s1845 + $0x330] sm:$0xff]
    %v1949 = vld [vmem:[%s1845 + $0x338] sm:$0xff]
    %v1950 = vld [vmem:[%s1845 + $0x340] sm:$0xff]
    %v1951 = vld [vmem:[%s1845 + $0x348] sm:$0xff]
    %v1952 = vld [vmem:[%s1845 + $0x350] sm:$0xff]
    %v1953 = vld [vmem:[%s1845 + $0x358] sm:$0xff]
    %v1954 = vld [vmem:[%s1845 + $0x360] sm:$0xff]
    %v1955 = vld [vmem:[%s1845 + $0x368] sm:$0xff]
    %v1956 = vld [vmem:[%s1845 + $0x370] sm:$0xff]
    %v1957 = vld [vmem:[%s1845 + $0x378] sm:$0xff]
    %v1958 = vld [vmem:[%s1845 + $0x380] sm:$0xff]
    %v1959 = vld [vmem:[%s1845 + $0x388] sm:$0xff]
    %v1960 = vld [vmem:[%s1845 + $0x390] sm:$0xff]
    %v1961 = vld [vmem:[%s1845 + $0x398] sm:$0xff]
    %v1962 = vld [vmem:[%s1845 + $0x3a0] sm:$0xff]
    %v1963 = vld [vmem:[%s1845 + $0x3a8] sm:$0xff]
    %v1964 = vld [vmem:[%s1845 + $0x3b0] sm:$0xff]
    %v1965 = vld [vmem:[%s1845 + $0x3b8] sm:$0xff]
    %v1966 = vld [vmem:[%s1845 + $0x3c0] sm:$0xff]
    %v1967 = vld [vmem:[%s1845 + $0x3c8] sm:$0xff]
    %v1968 = vld [vmem:[%s1845 + $0x3d0] sm:$0xff]
    %v1969 = vld [vmem:[%s1845 + $0x3d8] sm:$0xff]
    %v1970 = vld [vmem:[%s1845 + $0x3e0] sm:$0xff]
    %v1971 = vld [vmem:[%s1845 + $0x3e8] sm:$0xff]
    %v1972 = vld [vmem:[%s1845 + $0x3f0] sm:$0xff]
    %v1973 = vld [vmem:[%s1845 + $0x3f8] sm:$0xff]
    %v1974 = vld [vmem:[%s1845 + $0x400] sm:$0xff]
    %v1975 = vld [vmem:[%s1845 + $0x408] sm:$0xff]
    %v1976 = vld [vmem:[%s1845 + $0x410] sm:$0xff]
    %v1977 = vld [vmem:[%s1845 + $0x418] sm:$0xff]
    %v1978 = vld [vmem:[%s1845 + $0x420] sm:$0xff]
    %v1979 = vld [vmem:[%s1845 + $0x428] sm:$0xff]
    %v1980 = vld [vmem:[%s1845 + $0x430] sm:$0xff]
    %v1981 = vld [vmem:[%s1845 + $0x438] sm:$0xff]
    %v1982 = vld [vmem:[%s1845 + $0x440] sm:$0xff]
    %v1983 = vld [vmem:[%s1845 + $0x448] sm:$0xff]
    %v1984 = vld [vmem:[%s1845 + $0x450] sm:$0xff]
    %v1985 = vld [vmem:[%s1845 + $0x458] sm:$0xff]
    %v1986 = vld [vmem:[%s1845 + $0x460] sm:$0xff]
    %v1987 = vld [vmem:[%s1845 + $0x468] sm:$0xff]
    %v1988 = vld [vmem:[%s1845 + $0x470] sm:$0xff]
    %v1989 = vld [vmem:[%s1845 + $0x478] sm:$0xff]
    %v1990 = vld [vmem:[%s1845 + $0x480] sm:$0xff]
    %v1991 = vld [vmem:[%s1845 + $0x488] sm:$0xff]
    %v1992 = vld [vmem:[%s1845 + $0x490] sm:$0xff]
    %v1993 = vld [vmem:[%s1845 + $0x498] sm:$0xff]
    %v1994 = vld [vmem:[%s1845 + $0x4a0] sm:$0xff]
    %v1995 = vld [vmem:[%s1845 + $0x4a8] sm:$0xff]
    %v1996 = vld [vmem:[%s1845 + $0x4b0] sm:$0xff]
    %v1997 = vld [vmem:[%s1845 + $0x4b8] sm:$0xff]
    %v1998 = vld [vmem:[%s1845 + $0x4c0] sm:$0xff]
    %v1999 = vld [vmem:[%s1845 + $0x4c8] sm:$0xff]
    %v2000 = vld [vmem:[%s1845 + $0x4d0] sm:$0xff]
    %v2001 = vld [vmem:[%s1845 + $0x4d8] sm:$0xff]
    %v2002 = vld [vmem:[%s1845 + $0x4e0] sm:$0xff]
    %v2003 = vld [vmem:[%s1845 + $0x4e8] sm:$0xff]
    %v2004 = vld [vmem:[%s1845 + $0x4f0] sm:$0xff]
    %v2005 = vld [vmem:[%s1845 + $0x4f8] sm:$0xff]
    %v2006 = vld [vmem:[%s1845 + $0x500] sm:$0xff]
    %v2007 = vld [vmem:[%s1845 + $0x508] sm:$0xff]
    %v2008 = vld [vmem:[%s1845 + $0x510] sm:$0xff]
    %v2009 = vld [vmem:[%s1845 + $0x518] sm:$0xff]
    %v2010 = vld [vmem:[%s1845 + $0x520] sm:$0xff]
    %v2011 = vld [vmem:[%s1845 + $0x528] sm:$0xff]
    %v2012 = vld [vmem:[%s1845 + $0x530] sm:$0xff]
    %v2013 = vld [vmem:[%s1845 + $0x538] sm:$0xff]
    %v2014 = vld [vmem:[%s1845 + $0x540] sm:$0xff]
    %v2015 = vld [vmem:[%s1845 + $0x548] sm:$0xff]
    %v2016 = vld [vmem:[%s1845 + $0x550] sm:$0xff]
    %v2017 = vld [vmem:[%s1845 + $0x558] sm:$0xff]
    %v2018 = vld [vmem:[%s1845 + $0x560] sm:$0xff]
    %v2019 = vld [vmem:[%s1845 + $0x568] sm:$0xff]
    %v2020 = vld [vmem:[%s1845 + $0x570] sm:$0xff]
    %v2021 = vld [vmem:[%s1845 + $0x578] sm:$0xff]
    %v2022 = vld [vmem:[%s1845 + $0x580] sm:$0xff]
    %v2023 = vld [vmem:[%s1845 + $0x588] sm:$0xff]
    %v2024 = vld [vmem:[%s1845 + $0x590] sm:$0xff]
    %v2025 = vld [vmem:[%s1845 + $0x598] sm:$0xff]
    %v2026 = vld [vmem:[%s1845 + $0x5a0] sm:$0xff]
    %v2027 = vld [vmem:[%s1845 + $0x5a8] sm:$0xff]
    %v2028 = vld [vmem:[%s1845 + $0x5b0] sm:$0xff]
    %v2029 = vld [vmem:[%s1845 + $0x5b8] sm:$0xff]
    %v2030 = vld [vmem:[%s1845 + $0x5c0] sm:$0xff]
    %v2031 = vld [vmem:[%s1845 + $0x5c8] sm:$0xff]
    %v2032 = vld [vmem:[%s1845 + $0x5d0] sm:$0xff]
    %v2033 = vld [vmem:[%s1845 + $0x5d8] sm:$0xff]
    %v2034 = vld [vmem:[%s1845 + $0x5e0] sm:$0xff]
    %v2035 = vld [vmem:[%s1845 + $0x5e8] sm:$0xff]
    %v2036 = vld [vmem:[%s1845 + $0x5f0] sm:$0xff]
    %v2037 = vld [vmem:[%s1845 + $0x5f8] sm:$0xff]
    %v2038 = vld [vmem:[%s1845 + $0x600] sm:$0xff]
    %v2039 = vld [vmem:[%s1845 + $0x608] sm:$0xff]
    %v2040 = vld [vmem:[%s1845 + $0x610] sm:$0xff]
    %v2041 = vld [vmem:[%s1845 + $0x618] sm:$0xff]
    %v2042 = vld [vmem:[%s1845 + $0x620] sm:$0xff]
    %v2043 = vld [vmem:[%s1845 + $0x628] sm:$0xff]
    %v2044 = vld [vmem:[%s1845 + $0x630] sm:$0xff]
    %v2045 = vld [vmem:[%s1845 + $0x638] sm:$0xff]
    %v2046 = vld [vmem:[%s1845 + $0x640] sm:$0xff]
    %v2047 = vld [vmem:[%s1845 + $0x648] sm:$0xff]
    %v2048 = vld [vmem:[%s1845 + $0x650] sm:$0xff]
    %v2049 = vld [vmem:[%s1845 + $0x658] sm:$0xff]
    %v2050 = vld [vmem:[%s1845 + $0x660] sm:$0xff]
    %v2051 = vld [vmem:[%s1845 + $0x668] sm:$0xff]
    %v2052 = vld [vmem:[%s1845 + $0x670] sm:$0xff]
    %v2053 = vld [vmem:[%s1845 + $0x678] sm:$0xff]
    %v2054 = vld [vmem:[%s1845 + $0x680] sm:$0xff]
    %v2055 = vld [vmem:[%s1845 + $0x688] sm:$0xff]
    %v2056 = vld [vmem:[%s1845 + $0x690] sm:$0xff]
    %v2057 = vld [vmem:[%s1845 + $0x698] sm:$0xff]
    %v2058 = vld [vmem:[%s1845 + $0x6a0] sm:$0xff]
    %v2059 = vld [vmem:[%s1845 + $0x6a8] sm:$0xff]
    %v2060 = vld [vmem:[%s1845 + $0x6b0] sm:$0xff]
    %v2061 = vld [vmem:[%s1845 + $0x6b8] sm:$0xff]
    %v2062 = vld [vmem:[%s1845 + $0x6c0] sm:$0xff]
    %v2063 = vld [vmem:[%s1845 + $0x6c8] sm:$0xff]
    %v2064 = vld [vmem:[%s1845 + $0x6d0] sm:$0xff]
    %v2065 = vld [vmem:[%s1845 + $0x6d8] sm:$0xff]
    %v2066 = vld [vmem:[%s1845 + $0x6e0] sm:$0xff]
    %v2067 = vld [vmem:[%s1845 + $0x6e8] sm:$0xff]
    %v2068 = vld [vmem:[%s1845 + $0x6f0] sm:$0xff]
    %v2069 = vld [vmem:[%s1845 + $0x6f8] sm:$0xff]
    %v2070 = vld [vmem:[%s1845 + $0x700] sm:$0xff]
    %v2071 = vld [vmem:[%s1845 + $0x708] sm:$0xff]
    %v2072 = vld [vmem:[%s1845 + $0x710] sm:$0xff]
    %v2073 = vld [vmem:[%s1845 + $0x718] sm:$0xff]
    %v2074 = vld [vmem:[%s1845 + $0x720] sm:$0xff]
    %v2075 = vld [vmem:[%s1845 + $0x728] sm:$0xff]
    %v2076 = vld [vmem:[%s1845 + $0x730] sm:$0xff]
    %v2077 = vld [vmem:[%s1845 + $0x738] sm:$0xff]
    %v2078 = vld [vmem:[%s1845 + $0x740] sm:$0xff]
    %v2079 = vld [vmem:[%s1845 + $0x748] sm:$0xff]
    %v2080 = vld [vmem:[%s1845 + $0x750] sm:$0xff]
    %v2081 = vld [vmem:[%s1845 + $0x758] sm:$0xff]
    %v2082 = vld [vmem:[%s1845 + $0x760] sm:$0xff]
    %v2083 = vld [vmem:[%s1845 + $0x768] sm:$0xff]
    %v2084 = vld [vmem:[%s1845 + $0x770] sm:$0xff]
    %v2085 = vld [vmem:[%s1845 + $0x778] sm:$0xff]
    %v2086 = vld [vmem:[%s1845 + $0x780] sm:$0xff]
    %v2087 = vld [vmem:[%s1845 + $0x788] sm:$0xff]
    %v2088 = vld [vmem:[%s1845 + $0x790] sm:$0xff]
    %v2089 = vld [vmem:[%s1845 + $0x798] sm:$0xff]
    %v2090 = vld [vmem:[%s1845 + $0x7a0] sm:$0xff]
    %v2091 = vld [vmem:[%s1845 + $0x7a8] sm:$0xff]
    %v2092 = vld [vmem:[%s1845 + $0x7b0] sm:$0xff]
    %v2093 = vld [vmem:[%s1845 + $0x7b8] sm:$0xff]
    %v2094 = vld [vmem:[%s1845 + $0x7c0] sm:$0xff]
    %v2095 = vld [vmem:[%s1845 + $0x7c8] sm:$0xff]
    %v2096 = vld [vmem:[%s1845 + $0x7d0] sm:$0xff]
    %v2097 = vld [vmem:[%s1845 + $0x7d8] sm:$0xff]
    %v2098 = vld [vmem:[%s1845 + $0x7e0] sm:$0xff]
    %v2099 = vld [vmem:[%s1845 + $0x7e8] sm:$0xff]
    %v2100 = vld [vmem:[%s1845 + $0x7f0] sm:$0xff]
    %v2101 = vld [vmem:[%s1845 + $0x7f8] sm:$0xff]
    %2102 = vmatpush.msra.mxu0 %v1906
    %2103 = vmatpush.msra.mxu0 %v1902
    %2104 = vmatpush.msra.mxu0 %v1898
    %2105 = vmatpush.msra.mxu0 %v1894
    %2106 = vmatpush.msra.mxu0 %v1890
    %2107 = vmatpush.msra.mxu0 %v1886
    %2108 = vmatpush.msra.mxu0 %v1882
    %2109 = vmatpush.msra.mxu0 %v1878
    %2110 = vmatpush.msra.mxu0 %v1874
    %2111 = vmatpush.msra.mxu0 %v1870
    %2112 = vmatpush.msra.mxu0 %v1866
    %2113 = vmatpush.msra.mxu0 %v1862
    %2114 = vmatpush.msra.mxu0 %v1858
    %2115 = vmatpush.msra.mxu0 %v1854
    %2116 = vmatpush.msra.mxu0 %v1850
    %2117 = vmatpush.msra.mxu0 %v1846
    %2118 = vmatmul.f32.gmra.mxu0 %v1791
    %v2119 = vpop.f32.mrf.mxu0
    %v2120 = vadd.f32 0.0, %v2119
    %2121 = vmatmul.f32.gmra.mxu0 %v1802
    %v2122 = vpop.f32.mrf.mxu0
    %v2123 = vadd.f32 0.0, %v2122
    %2124 = vmatmul.f32.gmra.mxu0 %v1811
    %v2125 = vpop.f32.mrf.mxu0
    %v2126 = vadd.f32 0.0, %v2125
    %2127 = vmatmul.f32.gmra.mxu0 %v1822
    %v2128 = vpop.f32.mrf.mxu0
    %v2129 = vadd.f32 0.0, %v2128
    %2130 = vdwg.mxu0
    %2131 = vmatpush.msra.mxu0 %v1970
    %2132 = vmatpush.msra.mxu0 %v1966
    %2133 = vmatpush.msra.mxu0 %v1962
    %2134 = vmatpush.msra.mxu0 %v1958
    %2135 = vmatpush.msra.mxu0 %v1954
    %2136 = vmatpush.msra.mxu0 %v1950
    %2137 = vmatpush.msra.mxu0 %v1946
    %2138 = vmatpush.msra.mxu0 %v1942
    %2139 = vmatpush.msra.mxu0 %v1938
    %2140 = vmatpush.msra.mxu0 %v1934
    %2141 = vmatpush.msra.mxu0 %v1930
    %2142 = vmatpush.msra.mxu0 %v1926
    %2143 = vmatpush.msra.mxu0 %v1922
    %2144 = vmatpush.msra.mxu0 %v1918
    %2145 = vmatpush.msra.mxu0 %v1914
    %2146 = vmatpush.msra.mxu0 %v1910
    %2147 = vmatmul.f32.gmra.mxu0 %v1794
    %v2148 = vpop.f32.mrf.mxu0
    %v2149 = vadd.f32 %v2120, %v2148
    %2150 = vmatmul.f32.gmra.mxu0 %v1804
    %v2151 = vpop.f32.mrf.mxu0
    %v2152 = vadd.f32 %v2123, %v2151
    %2153 = vmatmul.f32.gmra.mxu0 %v1814
    %v2154 = vpop.f32.mrf.mxu0
    %v2155 = vadd.f32 %v2126, %v2154
    %2156 = vmatmul.f32.gmra.mxu0 %v1824
    %v2157 = vpop.f32.mrf.mxu0
    %v2158 = vadd.f32 %v2129, %v2157
    %2159 = vdwg.mxu0
    %2160 = vmatpush.msra.mxu0 %v2034
    %2161 = vmatpush.msra.mxu0 %v2030
    %2162 = vmatpush.msra.mxu0 %v2026
    %2163 = vmatpush.msra.mxu0 %v2022
    %2164 = vmatpush.msra.mxu0 %v2018
    %2165 = vmatpush.msra.mxu0 %v2014
    %2166 = vmatpush.msra.mxu0 %v2010
    %2167 = vmatpush.msra.mxu0 %v2006
    %2168 = vmatpush.msra.mxu0 %v2002
    %2169 = vmatpush.msra.mxu0 %v1998
    %2170 = vmatpush.msra.mxu0 %v1994
    %2171 = vmatpush.msra.mxu0 %v1990
    %2172 = vmatpush.msra.mxu0 %v1986
    %2173 = vmatpush.msra.mxu0 %v1982
    %2174 = vmatpush.msra.mxu0 %v1978
    %2175 = vmatpush.msra.mxu0 %v1974
    %2176 = vmatmul.f32.gmra.mxu0 %v1797
    %v2177 = vpop.f32.mrf.mxu0
    %v2178 = vadd.f32 %v2149, %v2177
    %2179 = vmatmul.f32.gmra.mxu0 %v1806
    %v2180 = vpop.f32.mrf.mxu0
    %v2181 = vadd.f32 %v2152, %v2180
    %2182 = vmatmul.f32.gmra.mxu0 %v1817
    %v2183 = vpop.f32.mrf.mxu0
    %v2184 = vadd.f32 %v2155, %v2183
    %2185 = vmatmul.f32.gmra.mxu0 %v1826
    %v2186 = vpop.f32.mrf.mxu0
    %v2187 = vadd.f32 %v2158, %v2186
    %2188 = vdwg.mxu0
    %2189 = vmatpush.msra.mxu0 %v2098
    %2190 = vmatpush.msra.mxu0 %v2094
    %2191 = vmatpush.msra.mxu0 %v2090
    %2192 = vmatpush.msra.mxu0 %v2086
    %2193 = vmatpush.msra.mxu0 %v2082
    %2194 = vmatpush.msra.mxu0 %v2078
    %2195 = vmatpush.msra.mxu0 %v2074
    %2196 = vmatpush.msra.mxu0 %v2070
    %2197 = vmatpush.msra.mxu0 %v2066
    %2198 = vmatpush.msra.mxu0 %v2062
    %2199 = vmatpush.msra.mxu0 %v2058
    %2200 = vmatpush.msra.mxu0 %v2054
    %2201 = vmatpush.msra.mxu0 %v2050
    %2202 = vmatpush.msra.mxu0 %v2046
    %2203 = vmatpush.msra.mxu0 %v2042
    %2204 = vmatpush.msra.mxu0 %v2038
    %2205 = vmatmul.f32.gmra.mxu0 %v1800
    %v2206 = vpop.f32.mrf.mxu0
    %v2207 = vadd.f32 %v2178, %v2206
    %2208 = vmatmul.f32.gmra.mxu0 %v1808
    %v2209 = vpop.f32.mrf.mxu0
    %v2210 = vadd.f32 %v2181, %v2209
    %2211 = vmatmul.f32.gmra.mxu0 %v1820
    %v2212 = vpop.f32.mrf.mxu0
    %v2213 = vadd.f32 %v2184, %v2212
    %2214 = vmatmul.f32.gmra.mxu0 %v1828
    %v2215 = vpop.f32.mrf.mxu0
    %v2216 = vadd.f32 %v2187, %v2215
    %2217 = vdwg.mxu0
    %2218 = vmatpush.msra.mxu0 %v1907
    %2219 = vmatpush.msra.mxu0 %v1903
    %2220 = vmatpush.msra.mxu0 %v1899
    %2221 = vmatpush.msra.mxu0 %v1895
    %2222 = vmatpush.msra.mxu0 %v1891
    %2223 = vmatpush.msra.mxu0 %v1887
    %2224 = vmatpush.msra.mxu0 %v1883
    %2225 = vmatpush.msra.mxu0 %v1879
    %2226 = vmatpush.msra.mxu0 %v1875
    %2227 = vmatpush.msra.mxu0 %v1871
    %2228 = vmatpush.msra.mxu0 %v1867
    %2229 = vmatpush.msra.mxu0 %v1863
    %2230 = vmatpush.msra.mxu0 %v1859
    %2231 = vmatpush.msra.mxu0 %v1855
    %2232 = vmatpush.msra.mxu0 %v1851
    %2233 = vmatpush.msra.mxu0 %v1847
    %2234 = vmatmul.f32.gmra.mxu0 %v1791
    %v2235 = vpop.f32.mrf.mxu0
    %v2236 = vadd.f32 0.0, %v2235
    %2237 = vmatmul.f32.gmra.mxu0 %v1802
    %v2238 = vpop.f32.mrf.mxu0
    %v2239 = vadd.f32 0.0, %v2238
    %2240 = vmatmul.f32.gmra.mxu0 %v1811
    %v2241 = vpop.f32.mrf.mxu0
    %v2242 = vadd.f32 0.0, %v2241
    %2243 = vmatmul.f32.gmra.mxu0 %v1822
    %v2244 = vpop.f32.mrf.mxu0
    %v2245 = vadd.f32 0.0, %v2244
    %2246 = vdwg.mxu0
    %2247 = vmatpush.msra.mxu0 %v1971
    %2248 = vmatpush.msra.mxu0 %v1967
    %2249 = vmatpush.msra.mxu0 %v1963
    %2250 = vmatpush.msra.mxu0 %v1959
    %2251 = vmatpush.msra.mxu0 %v1955
    %2252 = vmatpush.msra.mxu0 %v1951
    %2253 = vmatpush.msra.mxu0 %v1947
    %2254 = vmatpush.msra.mxu0 %v1943
    %2255 = vmatpush.msra.mxu0 %v1939
    %2256 = vmatpush.msra.mxu0 %v1935
    %2257 = vmatpush.msra.mxu0 %v1931
    %2258 = vmatpush.msra.mxu0 %v1927
    %2259 = vmatpush.msra.mxu0 %v1923
    %2260 = vmatpush.msra.mxu0 %v1919
    %2261 = vmatpush.msra.mxu0 %v1915
    %2262 = vmatpush.msra.mxu0 %v1911
    %2263 = vmatmul.f32.gmra.mxu0 %v1794
    %v2264 = vpop.f32.mrf.mxu0
    %v2265 = vadd.f32 %v2236, %v2264
    %2266 = vmatmul.f32.gmra.mxu0 %v1804
    %v2267 = vpop.f32.mrf.mxu0
    %v2268 = vadd.f32 %v2239, %v2267
    %2269 = vmatmul.f32.gmra.mxu0 %v1814
    %v2270 = vpop.f32.mrf.mxu0
    %v2271 = vadd.f32 %v2242, %v2270
    %2272 = vmatmul.f32.gmra.mxu0 %v1824
    %v2273 = vpop.f32.mrf.mxu0
    %v2274 = vadd.f32 %v2245, %v2273
    %2275 = vdwg.mxu0
    %2276 = vmatpush.msra.mxu0 %v2035
    %2277 = vmatpush.msra.mxu0 %v2031
    %2278 = vmatpush.msra.mxu0 %v2027
    %2279 = vmatpush.msra.mxu0 %v2023
    %2280 = vmatpush.msra.mxu0 %v2019
    %2281 = vmatpush.msra.mxu0 %v2015
    %2282 = vmatpush.msra.mxu0 %v2011
    %2283 = vmatpush.msra.mxu0 %v2007
    %2284 = vmatpush.msra.mxu0 %v2003
    %2285 = vmatpush.msra.mxu0 %v1999
    %2286 = vmatpush.msra.mxu0 %v1995
    %2287 = vmatpush.msra.mxu0 %v1991
    %2288 = vmatpush.msra.mxu0 %v1987
    %2289 = vmatpush.msra.mxu0 %v1983
    %2290 = vmatpush.msra.mxu0 %v1979
    %2291 = vmatpush.msra.mxu0 %v1975
    %2292 = vmatmul.f32.gmra.mxu0 %v1797
    %v2293 = vpop.f32.mrf.mxu0
    %v2294 = vadd.f32 %v2265, %v2293
    %2295 = vmatmul.f32.gmra.mxu0 %v1806
    %v2296 = vpop.f32.mrf.mxu0
    %v2297 = vadd.f32 %v2268, %v2296
    %2298 = vmatmul.f32.gmra.mxu0 %v1817
    %v2299 = vpop.f32.mrf.mxu0
    %v2300 = vadd.f32 %v2271, %v2299
    %2301 = vmatmul.f32.gmra.mxu0 %v1826
    %v2302 = vpop.f32.mrf.mxu0
    %v2303 = vadd.f32 %v2274, %v2302
    %2304 = vdwg.mxu0
    %2305 = vmatpush.msra.mxu0 %v2099
    %2306 = vmatpush.msra.mxu0 %v2095
    %2307 = vmatpush.msra.mxu0 %v2091
    %2308 = vmatpush.msra.mxu0 %v2087
    %2309 = vmatpush.msra.mxu0 %v2083
    %2310 = vmatpush.msra.mxu0 %v2079
    %2311 = vmatpush.msra.mxu0 %v2075
    %2312 = vmatpush.msra.mxu0 %v2071
    %2313 = vmatpush.msra.mxu0 %v2067
    %2314 = vmatpush.msra.mxu0 %v2063
    %2315 = vmatpush.msra.mxu0 %v2059
    %2316 = vmatpush.msra.mxu0 %v2055
    %2317 = vmatpush.msra.mxu0 %v2051
    %2318 = vmatpush.msra.mxu0 %v2047
    %2319 = vmatpush.msra.mxu0 %v2043
    %2320 = vmatpush.msra.mxu0 %v2039
    %2321 = vmatmul.f32.gmra.mxu0 %v1800
    %v2322 = vpop.f32.mrf.mxu0
    %v2323 = vadd.f32 %v2294, %v2322
    %2324 = vmatmul.f32.gmra.mxu0 %v1808
    %v2325 = vpop.f32.mrf.mxu0
    %v2326 = vadd.f32 %v2297, %v2325
    %2327 = vmatmul.f32.gmra.mxu0 %v1820
    %v2328 = vpop.f32.mrf.mxu0
    %v2329 = vadd.f32 %v2300, %v2328
    %2330 = vmatmul.f32.gmra.mxu0 %v1828
    %v2331 = vpop.f32.mrf.mxu0
    %v2332 = vadd.f32 %v2303, %v2331
    %2333 = vdwg.mxu0
    %2334 = vmatpush.msra.mxu0 %v1908
    %2335 = vmatpush.msra.mxu0 %v1904
    %2336 = vmatpush.msra.mxu0 %v1900
    %2337 = vmatpush.msra.mxu0 %v1896
    %2338 = vmatpush.msra.mxu0 %v1892
    %2339 = vmatpush.msra.mxu0 %v1888
    %2340 = vmatpush.msra.mxu0 %v1884
    %2341 = vmatpush.msra.mxu0 %v1880
    %2342 = vmatpush.msra.mxu0 %v1876
    %2343 = vmatpush.msra.mxu0 %v1872
    %2344 = vmatpush.msra.mxu0 %v1868
    %2345 = vmatpush.msra.mxu0 %v1864
    %2346 = vmatpush.msra.mxu0 %v1860
    %2347 = vmatpush.msra.mxu0 %v1856
    %2348 = vmatpush.msra.mxu0 %v1852
    %2349 = vmatpush.msra.mxu0 %v1848
    %2350 = vmatmul.f32.gmra.mxu0 %v1791
    %v2351 = vpop.f32.mrf.mxu0
    %v2352 = vadd.f32 0.0, %v2351
    %2353 = vmatmul.f32.gmra.mxu0 %v1802
    %v2354 = vpop.f32.mrf.mxu0
    %v2355 = vadd.f32 0.0, %v2354
    %2356 = vmatmul.f32.gmra.mxu0 %v1811
    %v2357 = vpop.f32.mrf.mxu0
    %v2358 = vadd.f32 0.0, %v2357
    %2359 = vmatmul.f32.gmra.mxu0 %v1822
    %v2360 = vpop.f32.mrf.mxu0
    %v2361 = vadd.f32 0.0, %v2360
    %2362 = vdwg.mxu0
    %2363 = vmatpush.msra.mxu0 %v1972
    %2364 = vmatpush.msra.mxu0 %v1968
    %2365 = vmatpush.msra.mxu0 %v1964
    %2366 = vmatpush.msra.mxu0 %v1960
    %2367 = vmatpush.msra.mxu0 %v1956
    %2368 = vmatpush.msra.mxu0 %v1952
    %2369 = vmatpush.msra.mxu0 %v1948
    %2370 = vmatpush.msra.mxu0 %v1944
    %2371 = vmatpush.msra.mxu0 %v1940
    %2372 = vmatpush.msra.mxu0 %v1936
    %2373 = vmatpush.msra.mxu0 %v1932
    %2374 = vmatpush.msra.mxu0 %v1928
    %2375 = vmatpush.msra.mxu0 %v1924
    %2376 = vmatpush.msra.mxu0 %v1920
    %2377 = vmatpush.msra.mxu0 %v1916
    %2378 = vmatpush.msra.mxu0 %v1912
    %2379 = vmatmul.f32.gmra.mxu0 %v1794
    %v2380 = vpop.f32.mrf.mxu0
    %v2381 = vadd.f32 %v2352, %v2380
    %2382 = vmatmul.f32.gmra.mxu0 %v1804
    %v2383 = vpop.f32.mrf.mxu0
    %v2384 = vadd.f32 %v2355, %v2383
    %2385 = vmatmul.f32.gmra.mxu0 %v1814
    %v2386 = vpop.f32.mrf.mxu0
    %v2387 = vadd.f32 %v2358, %v2386
    %2388 = vmatmul.f32.gmra.mxu0 %v1824
    %v2389 = vpop.f32.mrf.mxu0
    %v2390 = vadd.f32 %v2361, %v2389
    %2391 = vdwg.mxu0
    %2392 = vmatpush.msra.mxu0 %v2036
    %2393 = vmatpush.msra.mxu0 %v2032
    %2394 = vmatpush.msra.mxu0 %v2028
    %2395 = vmatpush.msra.mxu0 %v2024
    %2396 = vmatpush.msra.mxu0 %v2020
    %2397 = vmatpush.msra.mxu0 %v2016
    %2398 = vmatpush.msra.mxu0 %v2012
    %2399 = vmatpush.msra.mxu0 %v2008
    %2400 = vmatpush.msra.mxu0 %v2004
    %2401 = vmatpush.msra.mxu0 %v2000
    %2402 = vmatpush.msra.mxu0 %v1996
    %2403 = vmatpush.msra.mxu0 %v1992
    %2404 = vmatpush.msra.mxu0 %v1988
    %2405 = vmatpush.msra.mxu0 %v1984
    %2406 = vmatpush.msra.mxu0 %v1980
    %2407 = vmatpush.msra.mxu0 %v1976
    %2408 = vmatmul.f32.gmra.mxu0 %v1797
    %v2409 = vpop.f32.mrf.mxu0
    %v2410 = vadd.f32 %v2381, %v2409
    %2411 = vmatmul.f32.gmra.mxu0 %v1806
    %v2412 = vpop.f32.mrf.mxu0
    %v2413 = vadd.f32 %v2384, %v2412
    %2414 = vmatmul.f32.gmra.mxu0 %v1817
    %v2415 = vpop.f32.mrf.mxu0
    %v2416 = vadd.f32 %v2387, %v2415
    %2417 = vmatmul.f32.gmra.mxu0 %v1826
    %v2418 = vpop.f32.mrf.mxu0
    %v2419 = vadd.f32 %v2390, %v2418
    %2420 = vdwg.mxu0
    %2421 = vmatpush.msra.mxu0 %v2100
    %2422 = vmatpush.msra.mxu0 %v2096
    %2423 = vmatpush.msra.mxu0 %v2092
    %2424 = vmatpush.msra.mxu0 %v2088
    %2425 = vmatpush.msra.mxu0 %v2084
    %2426 = vmatpush.msra.mxu0 %v2080
    %2427 = vmatpush.msra.mxu0 %v2076
    %2428 = vmatpush.msra.mxu0 %v2072
    %2429 = vmatpush.msra.mxu0 %v2068
    %2430 = vmatpush.msra.mxu0 %v2064
    %2431 = vmatpush.msra.mxu0 %v2060
    %2432 = vmatpush.msra.mxu0 %v2056
    %2433 = vmatpush.msra.mxu0 %v2052
    %2434 = vmatpush.msra.mxu0 %v2048
    %2435 = vmatpush.msra.mxu0 %v2044
    %2436 = vmatpush.msra.mxu0 %v2040
    %2437 = vmatmul.f32.gmra.mxu0 %v1800
    %v2438 = vpop.f32.mrf.mxu0
    %v2439 = vadd.f32 %v2410, %v2438
    %2440 = vmatmul.f32.gmra.mxu0 %v1808
    %v2441 = vpop.f32.mrf.mxu0
    %v2442 = vadd.f32 %v2413, %v2441
    %2443 = vmatmul.f32.gmra.mxu0 %v1820
    %v2444 = vpop.f32.mrf.mxu0
    %v2445 = vadd.f32 %v2416, %v2444
    %2446 = vmatmul.f32.gmra.mxu0 %v1828
    %v2447 = vpop.f32.mrf.mxu0
    %v2448 = vadd.f32 %v2419, %v2447
    %2449 = vdwg.mxu0
    %2450 = vmatpush.msra.mxu0 %v1909
    %2451 = vmatpush.msra.mxu0 %v1905
    %2452 = vmatpush.msra.mxu0 %v1901
    %2453 = vmatpush.msra.mxu0 %v1897
    %2454 = vmatpush.msra.mxu0 %v1893
    %2455 = vmatpush.msra.mxu0 %v1889
    %2456 = vmatpush.msra.mxu0 %v1885
    %2457 = vmatpush.msra.mxu0 %v1881
    %2458 = vmatpush.msra.mxu0 %v1877
    %2459 = vmatpush.msra.mxu0 %v1873
    %2460 = vmatpush.msra.mxu0 %v1869
    %2461 = vmatpush.msra.mxu0 %v1865
    %2462 = vmatpush.msra.mxu0 %v1861
    %2463 = vmatpush.msra.mxu0 %v1857
    %2464 = vmatpush.msra.mxu0 %v1853
    %2465 = vmatpush.msra.mxu0 %v1849
    %2466 = vmatmul.f32.gmra.mxu0 %v1791
    %v2467 = vpop.f32.mrf.mxu0
    %v2468 = vadd.f32 0.0, %v2467
    %2469 = vmatmul.f32.gmra.mxu0 %v1802
    %v2470 = vpop.f32.mrf.mxu0
    %v2471 = vadd.f32 0.0, %v2470
    %2472 = vmatmul.f32.gmra.mxu0 %v1811
    %v2473 = vpop.f32.mrf.mxu0
    %v2474 = vadd.f32 0.0, %v2473
    %2475 = vmatmul.f32.gmra.mxu0 %v1822
    %v2476 = vpop.f32.mrf.mxu0
    %v2477 = vadd.f32 0.0, %v2476
    %2478 = vdwg.mxu0
    %2479 = vmatpush.msra.mxu0 %v1973
    %2480 = vmatpush.msra.mxu0 %v1969
    %2481 = vmatpush.msra.mxu0 %v1965
    %2482 = vmatpush.msra.mxu0 %v1961
    %2483 = vmatpush.msra.mxu0 %v1957
    %2484 = vmatpush.msra.mxu0 %v1953
    %2485 = vmatpush.msra.mxu0 %v1949
    %2486 = vmatpush.msra.mxu0 %v1945
    %2487 = vmatpush.msra.mxu0 %v1941
    %2488 = vmatpush.msra.mxu0 %v1937
    %2489 = vmatpush.msra.mxu0 %v1933
    %2490 = vmatpush.msra.mxu0 %v1929
    %2491 = vmatpush.msra.mxu0 %v1925
    %2492 = vmatpush.msra.mxu0 %v1921
    %2493 = vmatpush.msra.mxu0 %v1917
    %2494 = vmatpush.msra.mxu0 %v1913
    %2495 = vmatmul.f32.gmra.mxu0 %v1794
    %v2496 = vpop.f32.mrf.mxu0
    %v2497 = vadd.f32 %v2468, %v2496
    %2498 = vmatmul.f32.gmra.mxu0 %v1804
    %v2499 = vpop.f32.mrf.mxu0
    %v2500 = vadd.f32 %v2471, %v2499
    %2501 = vmatmul.f32.gmra.mxu0 %v1814
    %v2502 = vpop.f32.mrf.mxu0
    %v2503 = vadd.f32 %v2474, %v2502
    %2504 = vmatmul.f32.gmra.mxu0 %v1824
    %v2505 = vpop.f32.mrf.mxu0
    %v2506 = vadd.f32 %v2477, %v2505
    %2507 = vdwg.mxu0
    %2508 = vmatpush.msra.mxu0 %v2037
    %2509 = vmatpush.msra.mxu0 %v2033
    %2510 = vmatpush.msra.mxu0 %v2029
    %2511 = vmatpush.msra.mxu0 %v2025
    %2512 = vmatpush.msra.mxu0 %v2021
    %2513 = vmatpush.msra.mxu0 %v2017
    %2514 = vmatpush.msra.mxu0 %v2013
    %2515 = vmatpush.msra.mxu0 %v2009
    %2516 = vmatpush.msra.mxu0 %v2005
    %2517 = vmatpush.msra.mxu0 %v2001
    %2518 = vmatpush.msra.mxu0 %v1997
    %2519 = vmatpush.msra.mxu0 %v1993
    %2520 = vmatpush.msra.mxu0 %v1989
    %2521 = vmatpush.msra.mxu0 %v1985
    %2522 = vmatpush.msra.mxu0 %v1981
    %2523 = vmatpush.msra.mxu0 %v1977
    %2524 = vmatmul.f32.gmra.mxu0 %v1797
    %v2525 = vpop.f32.mrf.mxu0
    %v2526 = vadd.f32 %v2497, %v2525
    %2527 = vmatmul.f32.gmra.mxu0 %v1806
    %v2528 = vpop.f32.mrf.mxu0
    %v2529 = vadd.f32 %v2500, %v2528
    %2530 = vmatmul.f32.gmra.mxu0 %v1817
    %v2531 = vpop.f32.mrf.mxu0
    %v2532 = vadd.f32 %v2503, %v2531
    %2533 = vmatmul.f32.gmra.mxu0 %v1826
    %v2534 = vpop.f32.mrf.mxu0
    %v2535 = vadd.f32 %v2506, %v2534
    %2536 = vdwg.mxu0
    %2537 = vmatpush.msra.mxu0 %v2101
    %2538 = vmatpush.msra.mxu0 %v2097
    %2539 = vmatpush.msra.mxu0 %v2093
    %2540 = vmatpush.msra.mxu0 %v2089
    %2541 = vmatpush.msra.mxu0 %v2085
    %2542 = vmatpush.msra.mxu0 %v2081
    %2543 = vmatpush.msra.mxu0 %v2077
    %2544 = vmatpush.msra.mxu0 %v2073
    %2545 = vmatpush.msra.mxu0 %v2069
    %2546 = vmatpush.msra.mxu0 %v2065
    %2547 = vmatpush.msra.mxu0 %v2061
    %2548 = vmatpush.msra.mxu0 %v2057
    %2549 = vmatpush.msra.mxu0 %v2053
    %2550 = vmatpush.msra.mxu0 %v2049
    %2551 = vmatpush.msra.mxu0 %v2045
    %2552 = vmatpush.msra.mxu0 %v2041
    %2553 = vmatmul.f32.gmra.mxu0 %v1800
    %v2554 = vpop.f32.mrf.mxu0
    %v2555 = vadd.f32 %v2526, %v2554
    %2556 = vmatmul.f32.gmra.mxu0 %v1808
    %v2557 = vpop.f32.mrf.mxu0
    %v2558 = vadd.f32 %v2529, %v2557
    %2559 = vmatmul.f32.gmra.mxu0 %v1820
    %v2560 = vpop.f32.mrf.mxu0
    %v2561 = vadd.f32 %v2532, %v2560
    %2562 = vmatmul.f32.gmra.mxu0 %v1828
    %v2563 = vpop.f32.mrf.mxu0
    %v2564 = vadd.f32 %v2535, %v2563
    %2565 = vdwg.mxu0
    %v2566 = vadd.f32 %v1397, %v2207
    %v2567 = vadd.f32 %v1513, %v2323
    %v2568 = vadd.f32 %v1629, %v2439
    %v2569 = vadd.f32 %v1745, %v2555
    %v2570 = vadd.f32 %v1400, %v2210
    %v2571 = vadd.f32 %v1516, %v2326
    %v2572 = vadd.f32 %v1632, %v2442
    %v2573 = vadd.f32 %v1748, %v2558
    %v2574 = vadd.f32 %v1403, %v2213
    %v2575 = vadd.f32 %v1519, %v2329
    %v2576 = vadd.f32 %v1635, %v2445
    %v2577 = vadd.f32 %v1751, %v2561
    %v2578 = vadd.f32 %v1406, %v2216
    %v2579 = vadd.f32 %v1522, %v2332
    %v2580 = vadd.f32 %v1638, %v2448
    %v2581 = vadd.f32 %v1754, %v2564
    %v2582 = vld [vmem:[#allocation8] ss:$4 sm:$0xf]
    %v2584 = vperm.slane %v2582, 0
    %v2585 = vperm.slane %v2582, 1
    %v2586 = vperm.slane %v2582, 2
    %v2587 = vperm.slane %v2582, 3
    %v2592 = vadd.f32 %v2566, %v2584
    %v2593 = vadd.f32 %v2567, %v2585
    %v2594 = vadd.f32 %v2568, %v2586
    %v2595 = vadd.f32 %v2569, %v2587
    %v2596 = vadd.f32 %v2570, %v2584
    %v2597 = vadd.f32 %v2571, %v2585
    %v2598 = vadd.f32 %v2572, %v2586
    %v2599 = vadd.f32 %v2573, %v2587
    %v2600 = vadd.f32 %v2574, %v2584
    %v2601 = vadd.f32 %v2575, %v2585
    %v2602 = vadd.f32 %v2576, %v2586
    %v2603 = vadd.f32 %v2577, %v2587
    %v2604 = vadd.f32 %v2578, %v2584
    %v2605 = vadd.f32 %v2579, %v2585
    %v2606 = vadd.f32 %v2580, %v2586
    %v2607 = vadd.f32 %v2581, %v2587
    %v2608 = vmax.f32 %v2592, 0.0
    %v2609 = vmax.f32 %v2593, 0.0
    %v2610 = vmax.f32 %v2594, 0.0
    %v2611 = vmax.f32 %v2595, 0.0
    %v2612 = vmax.f32 %v2596, 0.0
    %v2613 = vmax.f32 %v2597, 0.0
    %v2614 = vmax.f32 %v2598, 0.0
    %v2615 = vmax.f32 %v2599, 0.0
    %v2616 = vmax.f32 %v2600, 0.0
    %v2617 = vmax.f32 %v2601, 0.0
    %v2618 = vmax.f32 %v2602, 0.0
    %v2619 = vmax.f32 %v2603, 0.0
    %v2620 = vmax.f32 %v2604, 0.0
    %v2621 = vmax.f32 %v2605, 0.0
    %v2622 = vmax.f32 %v2606, 0.0
    %v2623 = vmax.f32 %v2607, 0.0
    %v2640 = vrot.slane %v2608, 7
    %v2641 = vrot.slane %v2609, 7
    %v2642 = vrot.slane %v2610, 7
    %v2643 = vrot.slane %v2611, 7
    %v2644 = vrot.slane %v2612, 7
    %v2645 = vsel %vm129, %v2640, %v2644
    %v2646 = vrot.slane %v2613, 7
    %v2647 = vsel %vm129, %v2641, %v2646
    %v2648 = vrot.slane %v2614, 7
    %v2649 = vsel %vm129, %v2642, %v2648
    %v2650 = vrot.slane %v2615, 7
    %v2651 = vsel %vm129, %v2643, %v2650
    %v2652 = vrot.slane %v2616, 7
    %v2653 = vrot.slane %v2617, 7
    %v2654 = vrot.slane %v2618, 7
    %v2655 = vrot.slane %v2619, 7
    %v2656 = vrot.slane %v2620, 7
    %v2657 = vsel %vm129, %v2652, %v2656
    %v2658 = vrot.slane %v2621, 7
    %v2659 = vsel %vm129, %v2653, %v2658
    %v2660 = vrot.slane %v2622, 7
    %v2661 = vsel %vm129, %v2654, %v2660
    %v2662 = vrot.slane %v2623, 7
    %v2663 = vsel %vm129, %v2655, %v2662
    %2688 = vst [vmem:[#allocation2] sm:$0xfe] %v2640
    %2689 = vst [vmem:[#allocation2 + $0x8] sm:$0xfe] %v2641
    %2690 = vst [vmem:[#allocation2 + $0x10] sm:$0xfe] %v2642
    %2691 = vst [vmem:[#allocation2 + $0x18] sm:$0xfe] %v2643
    %2692 = vst [vmem:[#allocation2 + $0x20] sm:$0xff] %v2645
    %2693 = vst [vmem:[#allocation2 + $0x28] sm:$0xff] %v2647
    %2694 = vst [vmem:[#allocation2 + $0x30] sm:$0xff] %v2649
    %2695 = vst [vmem:[#allocation2 + $0x38] sm:$0xff] %v2651
    %2696 = vst [vmem:[#allocation2 + $0x40] sm:$0x1] %v2644
    %2697 = vst [vmem:[#allocation2 + $0x48] sm:$0x1] %v2646
    %2698 = vst [vmem:[#allocation2 + $0x50] sm:$0x1] %v2648
    %2699 = vst [vmem:[#allocation2 + $0x58] sm:$0x1] %v2650
    %2700 = vst [vmem:[#allocation2 + $0x60] sm:$0xfe] %v2652
    %2701 = vst [vmem:[#allocation2 + $0x68] sm:$0xfe] %v2653
    %2702 = vst [vmem:[#allocation2 + $0x70] sm:$0xfe] %v2654
    %2703 = vst [vmem:[#allocation2 + $0x78] sm:$0xfe] %v2655
    %2704 = vst [vmem:[#allocation2 + $0x80] sm:$0xff] %v2657
    %2705 = vst [vmem:[#allocation2 + $0x88] sm:$0xff] %v2659
    %2706 = vst [vmem:[#allocation2 + $0x90] sm:$0xff] %v2661
    %2707 = vst [vmem:[#allocation2 + $0x98] sm:$0xff] %v2663
    %2708 = vst [vmem:[#allocation2 + $0xa0] sm:$0x1] %v2656
    %2709 = vst [vmem:[#allocation2 + $0xa8] sm:$0x1] %v2658
    %2710 = vst [vmem:[#allocation2 + $0xb0] sm:$0x1] %v2660
    %2711 = vst [vmem:[#allocation2 + $0xb8] sm:$0x1] %v2662
    %v2712 = vld [vmem:[#allocation2] sm:$0xff]
    %v2713 = vld [vmem:[#allocation2 + $0x8] sm:$0xff]
    %v2714 = vld [vmem:[#allocation2 + $0x10] sm:$0xff]
    %v2715 = vld [vmem:[#allocation2 + $0x18] sm:$0xff]
    %v2716 = vld [vmem:[#allocation2 + $0x20] sm:$0xff]
    %v2717 = vld [vmem:[#allocation2 + $0x28] sm:$0xff]
    %v2718 = vld [vmem:[#allocation2 + $0x30] sm:$0xff]
    %v2719 = vld [vmem:[#allocation2 + $0x38] sm:$0xff]
    %v2720 = vld [vmem:[#allocation2 + $0x60] sm:$0xff]
    %v2721 = vld [vmem:[#allocation2 + $0x68] sm:$0xff]
    %v2722 = vld [vmem:[#allocation2 + $0x70] sm:$0xff]
    %v2723 = vld [vmem:[#allocation2 + $0x78] sm:$0xff]
    %v2724 = vld [vmem:[#allocation2 + $0x80] sm:$0xff]
    %v2725 = vld [vmem:[#allocation2 + $0x88] sm:$0xff]
    %v2726 = vld [vmem:[#allocation2 + $0x90] sm:$0xff]
    %v2727 = vld [vmem:[#allocation2 + $0x98] sm:$0xff]
    %v2728 = vld [vmem:[#allocation6] sm:$0xff]
    %v2729 = vld [vmem:[#allocation6 + $0x8] sm:$0xff]
    %v2730 = vld [vmem:[#allocation6 + $0x10] sm:$0xff]
    %v2731 = vld [vmem:[#allocation6 + $0x18] sm:$0xff]
    %v2732 = vld [vmem:[#allocation6 + $0x20] sm:$0xff]
    %v2733 = vld [vmem:[#allocation6 + $0x28] sm:$0xff]
    %v2734 = vld [vmem:[#allocation6 + $0x30] sm:$0xff]
    %v2735 = vld [vmem:[#allocation6 + $0x38] sm:$0xff]
    %v2736 = vld [vmem:[#allocation6 + $0x40] sm:$0xff]
    %v2737 = vld [vmem:[#allocation6 + $0x48] sm:$0xff]
    %v2738 = vld [vmem:[#allocation6 + $0x50] sm:$0xff]
    %v2739 = vld [vmem:[#allocation6 + $0x58] sm:$0xff]
    %v2740 = vld [vmem:[#allocation6 + $0x60] sm:$0xff]
    %v2741 = vld [vmem:[#allocation6 + $0x68] sm:$0xff]
    %v2742 = vld [vmem:[#allocation6 + $0x70] sm:$0xff]
    %v2743 = vld [vmem:[#allocation6 + $0x78] sm:$0xff]
    %v2744 = vld [vmem:[#allocation6 + $0x80] sm:$0xff]
    %v2745 = vld [vmem:[#allocation6 + $0x88] sm:$0xff]
    %v2746 = vld [vmem:[#allocation6 + $0x90] sm:$0xff]
    %v2747 = vld [vmem:[#allocation6 + $0x98] sm:$0xff]
    %v2748 = vld [vmem:[#allocation6 + $0xa0] sm:$0xff]
    %v2749 = vld [vmem:[#allocation6 + $0xa8] sm:$0xff]
    %v2750 = vld [vmem:[#allocation6 + $0xb0] sm:$0xff]
    %v2751 = vld [vmem:[#allocation6 + $0xb8] sm:$0xff]
    %v2752 = vld [vmem:[#allocation6 + $0xc0] sm:$0xff]
    %v2753 = vld [vmem:[#allocation6 + $0xc8] sm:$0xff]
    %v2754 = vld [vmem:[#allocation6 + $0xd0] sm:$0xff]
    %v2755 = vld [vmem:[#allocation6 + $0xd8] sm:$0xff]
    %v2756 = vld [vmem:[#allocation6 + $0xe0] sm:$0xff]
    %v2757 = vld [vmem:[#allocation6 + $0xe8] sm:$0xff]
    %v2758 = vld [vmem:[#allocation6 + $0xf0] sm:$0xff]
    %v2759 = vld [vmem:[#allocation6 + $0xf8] sm:$0xff]
    %v2760 = vld [vmem:[#allocation6 + $0x100] sm:$0xff]
    %v2761 = vld [vmem:[#allocation6 + $0x108] sm:$0xff]
    %v2762 = vld [vmem:[#allocation6 + $0x110] sm:$0xff]
    %v2763 = vld [vmem:[#allocation6 + $0x118] sm:$0xff]
    %v2764 = vld [vmem:[#allocation6 + $0x120] sm:$0xff]
    %v2765 = vld [vmem:[#allocation6 + $0x128] sm:$0xff]
    %v2766 = vld [vmem:[#allocation6 + $0x130] sm:$0xff]
    %v2767 = vld [vmem:[#allocation6 + $0x138] sm:$0xff]
    %v2768 = vld [vmem:[#allocation6 + $0x140] sm:$0xff]
    %v2769 = vld [vmem:[#allocation6 + $0x148] sm:$0xff]
    %v2770 = vld [vmem:[#allocation6 + $0x150] sm:$0xff]
    %v2771 = vld [vmem:[#allocation6 + $0x158] sm:$0xff]
    %v2772 = vld [vmem:[#allocation6 + $0x160] sm:$0xff]
    %v2773 = vld [vmem:[#allocation6 + $0x168] sm:$0xff]
    %v2774 = vld [vmem:[#allocation6 + $0x170] sm:$0xff]
    %v2775 = vld [vmem:[#allocation6 + $0x178] sm:$0xff]
    %v2776 = vld [vmem:[#allocation6 + $0x180] sm:$0xff]
    %v2777 = vld [vmem:[#allocation6 + $0x188] sm:$0xff]
    %v2778 = vld [vmem:[#allocation6 + $0x190] sm:$0xff]
    %v2779 = vld [vmem:[#allocation6 + $0x198] sm:$0xff]
    %v2780 = vld [vmem:[#allocation6 + $0x1a0] sm:$0xff]
    %v2781 = vld [vmem:[#allocation6 + $0x1a8] sm:$0xff]
    %v2782 = vld [vmem:[#allocation6 + $0x1b0] sm:$0xff]
    %v2783 = vld [vmem:[#allocation6 + $0x1b8] sm:$0xff]
    %v2784 = vld [vmem:[#allocation6 + $0x1c0] sm:$0xff]
    %v2785 = vld [vmem:[#allocation6 + $0x1c8] sm:$0xff]
    %v2786 = vld [vmem:[#allocation6 + $0x1d0] sm:$0xff]
    %v2787 = vld [vmem:[#allocation6 + $0x1d8] sm:$0xff]
    %v2788 = vld [vmem:[#allocation6 + $0x1e0] sm:$0xff]
    %v2789 = vld [vmem:[#allocation6 + $0x1e8] sm:$0xff]
    %v2790 = vld [vmem:[#allocation6 + $0x1f0] sm:$0xff]
    %v2791 = vld [vmem:[#allocation6 + $0x1f8] sm:$0xff]
    %v2792 = vld [vmem:[#allocation6 + $0x200] sm:$0xff]
    %v2793 = vld [vmem:[#allocation6 + $0x208] sm:$0xff]
    %v2794 = vld [vmem:[#allocation6 + $0x210] sm:$0xff]
    %v2795 = vld [vmem:[#allocation6 + $0x218] sm:$0xff]
    %v2796 = vld [vmem:[#allocation6 + $0x220] sm:$0xff]
    %v2797 = vld [vmem:[#allocation6 + $0x228] sm:$0xff]
    %v2798 = vld [vmem:[#allocation6 + $0x230] sm:$0xff]
    %v2799 = vld [vmem:[#allocation6 + $0x238] sm:$0xff]
    %v2800 = vld [vmem:[#allocation6 + $0x240] sm:$0xff]
    %v2801 = vld [vmem:[#allocation6 + $0x248] sm:$0xff]
    %v2802 = vld [vmem:[#allocation6 + $0x250] sm:$0xff]
    %v2803 = vld [vmem:[#allocation6 + $0x258] sm:$0xff]
    %v2804 = vld [vmem:[#allocation6 + $0x260] sm:$0xff]
    %v2805 = vld [vmem:[#allocation6 + $0x268] sm:$0xff]
    %v2806 = vld [vmem:[#allocation6 + $0x270] sm:$0xff]
    %v2807 = vld [vmem:[#allocation6 + $0x278] sm:$0xff]
    %v2808 = vld [vmem:[#allocation6 + $0x280] sm:$0xff]
    %v2809 = vld [vmem:[#allocation6 + $0x288] sm:$0xff]
    %v2810 = vld [vmem:[#allocation6 + $0x290] sm:$0xff]
    %v2811 = vld [vmem:[#allocation6 + $0x298] sm:$0xff]
    %v2812 = vld [vmem:[#allocation6 + $0x2a0] sm:$0xff]
    %v2813 = vld [vmem:[#allocation6 + $0x2a8] sm:$0xff]
    %v2814 = vld [vmem:[#allocation6 + $0x2b0] sm:$0xff]
    %v2815 = vld [vmem:[#allocation6 + $0x2b8] sm:$0xff]
    %v2816 = vld [vmem:[#allocation6 + $0x2c0] sm:$0xff]
    %v2817 = vld [vmem:[#allocation6 + $0x2c8] sm:$0xff]
    %v2818 = vld [vmem:[#allocation6 + $0x2d0] sm:$0xff]
    %v2819 = vld [vmem:[#allocation6 + $0x2d8] sm:$0xff]
    %v2820 = vld [vmem:[#allocation6 + $0x2e0] sm:$0xff]
    %v2821 = vld [vmem:[#allocation6 + $0x2e8] sm:$0xff]
    %v2822 = vld [vmem:[#allocation6 + $0x2f0] sm:$0xff]
    %v2823 = vld [vmem:[#allocation6 + $0x2f8] sm:$0xff]
    %v2824 = vld [vmem:[#allocation6 + $0x300] sm:$0xff]
    %v2825 = vld [vmem:[#allocation6 + $0x308] sm:$0xff]
    %v2826 = vld [vmem:[#allocation6 + $0x310] sm:$0xff]
    %v2827 = vld [vmem:[#allocation6 + $0x318] sm:$0xff]
    %v2828 = vld [vmem:[#allocation6 + $0x320] sm:$0xff]
    %v2829 = vld [vmem:[#allocation6 + $0x328] sm:$0xff]
    %v2830 = vld [vmem:[#allocation6 + $0x330] sm:$0xff]
    %v2831 = vld [vmem:[#allocation6 + $0x338] sm:$0xff]
    %v2832 = vld [vmem:[#allocation6 + $0x340] sm:$0xff]
    %v2833 = vld [vmem:[#allocation6 + $0x348] sm:$0xff]
    %v2834 = vld [vmem:[#allocation6 + $0x350] sm:$0xff]
    %v2835 = vld [vmem:[#allocation6 + $0x358] sm:$0xff]
    %v2836 = vld [vmem:[#allocation6 + $0x360] sm:$0xff]
    %v2837 = vld [vmem:[#allocation6 + $0x368] sm:$0xff]
    %v2838 = vld [vmem:[#allocation6 + $0x370] sm:$0xff]
    %v2839 = vld [vmem:[#allocation6 + $0x378] sm:$0xff]
    %v2840 = vld [vmem:[#allocation6 + $0x380] sm:$0xff]
    %v2841 = vld [vmem:[#allocation6 + $0x388] sm:$0xff]
    %v2842 = vld [vmem:[#allocation6 + $0x390] sm:$0xff]
    %v2843 = vld [vmem:[#allocation6 + $0x398] sm:$0xff]
    %v2844 = vld [vmem:[#allocation6 + $0x3a0] sm:$0xff]
    %v2845 = vld [vmem:[#allocation6 + $0x3a8] sm:$0xff]
    %v2846 = vld [vmem:[#allocation6 + $0x3b0] sm:$0xff]
    %v2847 = vld [vmem:[#allocation6 + $0x3b8] sm:$0xff]
    %v2848 = vld [vmem:[#allocation6 + $0x3c0] sm:$0xff]
    %v2849 = vld [vmem:[#allocation6 + $0x3c8] sm:$0xff]
    %v2850 = vld [vmem:[#allocation6 + $0x3d0] sm:$0xff]
    %v2851 = vld [vmem:[#allocation6 + $0x3d8] sm:$0xff]
    %v2852 = vld [vmem:[#allocation6 + $0x3e0] sm:$0xff]
    %v2853 = vld [vmem:[#allocation6 + $0x3e8] sm:$0xff]
    %v2854 = vld [vmem:[#allocation6 + $0x3f0] sm:$0xff]
    %v2855 = vld [vmem:[#allocation6 + $0x3f8] sm:$0xff]
    %v2856 = vld [vmem:[#allocation6 + $0x400] sm:$0xff]
    %v2857 = vld [vmem:[#allocation6 + $0x408] sm:$0xff]
    %v2858 = vld [vmem:[#allocation6 + $0x410] sm:$0xff]
    %v2859 = vld [vmem:[#allocation6 + $0x418] sm:$0xff]
    %v2860 = vld [vmem:[#allocation6 + $0x420] sm:$0xff]
    %v2861 = vld [vmem:[#allocation6 + $0x428] sm:$0xff]
    %v2862 = vld [vmem:[#allocation6 + $0x430] sm:$0xff]
    %v2863 = vld [vmem:[#allocation6 + $0x438] sm:$0xff]
    %v2864 = vld [vmem:[#allocation6 + $0x440] sm:$0xff]
    %v2865 = vld [vmem:[#allocation6 + $0x448] sm:$0xff]
    %v2866 = vld [vmem:[#allocation6 + $0x450] sm:$0xff]
    %v2867 = vld [vmem:[#allocation6 + $0x458] sm:$0xff]
    %v2868 = vld [vmem:[#allocation6 + $0x460] sm:$0xff]
    %v2869 = vld [vmem:[#allocation6 + $0x468] sm:$0xff]
    %v2870 = vld [vmem:[#allocation6 + $0x470] sm:$0xff]
    %v2871 = vld [vmem:[#allocation6 + $0x478] sm:$0xff]
    %v2872 = vld [vmem:[#allocation6 + $0x480] sm:$0xff]
    %v2873 = vld [vmem:[#allocation6 + $0x488] sm:$0xff]
    %v2874 = vld [vmem:[#allocation6 + $0x490] sm:$0xff]
    %v2875 = vld [vmem:[#allocation6 + $0x498] sm:$0xff]
    %v2876 = vld [vmem:[#allocation6 + $0x4a0] sm:$0xff]
    %v2877 = vld [vmem:[#allocation6 + $0x4a8] sm:$0xff]
    %v2878 = vld [vmem:[#allocation6 + $0x4b0] sm:$0xff]
    %v2879 = vld [vmem:[#allocation6 + $0x4b8] sm:$0xff]
    %v2880 = vld [vmem:[#allocation6 + $0x4c0] sm:$0xff]
    %v2881 = vld [vmem:[#allocation6 + $0x4c8] sm:$0xff]
    %v2882 = vld [vmem:[#allocation6 + $0x4d0] sm:$0xff]
    %v2883 = vld [vmem:[#allocation6 + $0x4d8] sm:$0xff]
    %v2884 = vld [vmem:[#allocation6 + $0x4e0] sm:$0xff]
    %v2885 = vld [vmem:[#allocation6 + $0x4e8] sm:$0xff]
    %v2886 = vld [vmem:[#allocation6 + $0x4f0] sm:$0xff]
    %v2887 = vld [vmem:[#allocation6 + $0x4f8] sm:$0xff]
    %v2888 = vld [vmem:[#allocation6 + $0x500] sm:$0xff]
    %v2889 = vld [vmem:[#allocation6 + $0x508] sm:$0xff]
    %v2890 = vld [vmem:[#allocation6 + $0x510] sm:$0xff]
    %v2891 = vld [vmem:[#allocation6 + $0x518] sm:$0xff]
    %v2892 = vld [vmem:[#allocation6 + $0x520] sm:$0xff]
    %v2893 = vld [vmem:[#allocation6 + $0x528] sm:$0xff]
    %v2894 = vld [vmem:[#allocation6 + $0x530] sm:$0xff]
    %v2895 = vld [vmem:[#allocation6 + $0x538] sm:$0xff]
    %v2896 = vld [vmem:[#allocation6 + $0x540] sm:$0xff]
    %v2897 = vld [vmem:[#allocation6 + $0x548] sm:$0xff]
    %v2898 = vld [vmem:[#allocation6 + $0x550] sm:$0xff]
    %v2899 = vld [vmem:[#allocation6 + $0x558] sm:$0xff]
    %v2900 = vld [vmem:[#allocation6 + $0x560] sm:$0xff]
    %v2901 = vld [vmem:[#allocation6 + $0x568] sm:$0xff]
    %v2902 = vld [vmem:[#allocation6 + $0x570] sm:$0xff]
    %v2903 = vld [vmem:[#allocation6 + $0x578] sm:$0xff]
    %v2904 = vld [vmem:[#allocation6 + $0x580] sm:$0xff]
    %v2905 = vld [vmem:[#allocation6 + $0x588] sm:$0xff]
    %v2906 = vld [vmem:[#allocation6 + $0x590] sm:$0xff]
    %v2907 = vld [vmem:[#allocation6 + $0x598] sm:$0xff]
    %v2908 = vld [vmem:[#allocation6 + $0x5a0] sm:$0xff]
    %v2909 = vld [vmem:[#allocation6 + $0x5a8] sm:$0xff]
    %v2910 = vld [vmem:[#allocation6 + $0x5b0] sm:$0xff]
    %v2911 = vld [vmem:[#allocation6 + $0x5b8] sm:$0xff]
    %v2912 = vld [vmem:[#allocation6 + $0x5c0] sm:$0xff]
    %v2913 = vld [vmem:[#allocation6 + $0x5c8] sm:$0xff]
    %v2914 = vld [vmem:[#allocation6 + $0x5d0] sm:$0xff]
    %v2915 = vld [vmem:[#allocation6 + $0x5d8] sm:$0xff]
    %v2916 = vld [vmem:[#allocation6 + $0x5e0] sm:$0xff]
    %v2917 = vld [vmem:[#allocation6 + $0x5e8] sm:$0xff]
    %v2918 = vld [vmem:[#allocation6 + $0x5f0] sm:$0xff]
    %v2919 = vld [vmem:[#allocation6 + $0x5f8] sm:$0xff]
    %v2920 = vld [vmem:[#allocation6 + $0x600] sm:$0xff]
    %v2921 = vld [vmem:[#allocation6 + $0x608] sm:$0xff]
    %v2922 = vld [vmem:[#allocation6 + $0x610] sm:$0xff]
    %v2923 = vld [vmem:[#allocation6 + $0x618] sm:$0xff]
    %v2924 = vld [vmem:[#allocation6 + $0x620] sm:$0xff]
    %v2925 = vld [vmem:[#allocation6 + $0x628] sm:$0xff]
    %v2926 = vld [vmem:[#allocation6 + $0x630] sm:$0xff]
    %v2927 = vld [vmem:[#allocation6 + $0x638] sm:$0xff]
    %v2928 = vld [vmem:[#allocation6 + $0x640] sm:$0xff]
    %v2929 = vld [vmem:[#allocation6 + $0x648] sm:$0xff]
    %v2930 = vld [vmem:[#allocation6 + $0x650] sm:$0xff]
    %v2931 = vld [vmem:[#allocation6 + $0x658] sm:$0xff]
    %v2932 = vld [vmem:[#allocation6 + $0x660] sm:$0xff]
    %v2933 = vld [vmem:[#allocation6 + $0x668] sm:$0xff]
    %v2934 = vld [vmem:[#allocation6 + $0x670] sm:$0xff]
    %v2935 = vld [vmem:[#allocation6 + $0x678] sm:$0xff]
    %v2936 = vld [vmem:[#allocation6 + $0x680] sm:$0xff]
    %v2937 = vld [vmem:[#allocation6 + $0x688] sm:$0xff]
    %v2938 = vld [vmem:[#allocation6 + $0x690] sm:$0xff]
    %v2939 = vld [vmem:[#allocation6 + $0x698] sm:$0xff]
    %v2940 = vld [vmem:[#allocation6 + $0x6a0] sm:$0xff]
    %v2941 = vld [vmem:[#allocation6 + $0x6a8] sm:$0xff]
    %v2942 = vld [vmem:[#allocation6 + $0x6b0] sm:$0xff]
    %v2943 = vld [vmem:[#allocation6 + $0x6b8] sm:$0xff]
    %v2944 = vld [vmem:[#allocation6 + $0x6c0] sm:$0xff]
    %v2945 = vld [vmem:[#allocation6 + $0x6c8] sm:$0xff]
    %v2946 = vld [vmem:[#allocation6 + $0x6d0] sm:$0xff]
    %v2947 = vld [vmem:[#allocation6 + $0x6d8] sm:$0xff]
    %v2948 = vld [vmem:[#allocation6 + $0x6e0] sm:$0xff]
    %v2949 = vld [vmem:[#allocation6 + $0x6e8] sm:$0xff]
    %v2950 = vld [vmem:[#allocation6 + $0x6f0] sm:$0xff]
    %v2951 = vld [vmem:[#allocation6 + $0x6f8] sm:$0xff]
    %v2952 = vld [vmem:[#allocation6 + $0x700] sm:$0xff]
    %v2953 = vld [vmem:[#allocation6 + $0x708] sm:$0xff]
    %v2954 = vld [vmem:[#allocation6 + $0x710] sm:$0xff]
    %v2955 = vld [vmem:[#allocation6 + $0x718] sm:$0xff]
    %v2956 = vld [vmem:[#allocation6 + $0x720] sm:$0xff]
    %v2957 = vld [vmem:[#allocation6 + $0x728] sm:$0xff]
    %v2958 = vld [vmem:[#allocation6 + $0x730] sm:$0xff]
    %v2959 = vld [vmem:[#allocation6 + $0x738] sm:$0xff]
    %v2960 = vld [vmem:[#allocation6 + $0x740] sm:$0xff]
    %v2961 = vld [vmem:[#allocation6 + $0x748] sm:$0xff]
    %v2962 = vld [vmem:[#allocation6 + $0x750] sm:$0xff]
    %v2963 = vld [vmem:[#allocation6 + $0x758] sm:$0xff]
    %v2964 = vld [vmem:[#allocation6 + $0x760] sm:$0xff]
    %v2965 = vld [vmem:[#allocation6 + $0x768] sm:$0xff]
    %v2966 = vld [vmem:[#allocation6 + $0x770] sm:$0xff]
    %v2967 = vld [vmem:[#allocation6 + $0x778] sm:$0xff]
    %v2968 = vld [vmem:[#allocation6 + $0x780] sm:$0xff]
    %v2969 = vld [vmem:[#allocation6 + $0x788] sm:$0xff]
    %v2970 = vld [vmem:[#allocation6 + $0x790] sm:$0xff]
    %v2971 = vld [vmem:[#allocation6 + $0x798] sm:$0xff]
    %v2972 = vld [vmem:[#allocation6 + $0x7a0] sm:$0xff]
    %v2973 = vld [vmem:[#allocation6 + $0x7a8] sm:$0xff]
    %v2974 = vld [vmem:[#allocation6 + $0x7b0] sm:$0xff]
    %v2975 = vld [vmem:[#allocation6 + $0x7b8] sm:$0xff]
    %v2976 = vld [vmem:[#allocation6 + $0x7c0] sm:$0xff]
    %v2977 = vld [vmem:[#allocation6 + $0x7c8] sm:$0xff]
    %v2978 = vld [vmem:[#allocation6 + $0x7d0] sm:$0xff]
    %v2979 = vld [vmem:[#allocation6 + $0x7d8] sm:$0xff]
    %v2980 = vld [vmem:[#allocation6 + $0x7e0] sm:$0xff]
    %v2981 = vld [vmem:[#allocation6 + $0x7e8] sm:$0xff]
    %v2982 = vld [vmem:[#allocation6 + $0x7f0] sm:$0xff]
    %v2983 = vld [vmem:[#allocation6 + $0x7f8] sm:$0xff]
    %v2984 = vld [vmem:[#allocation2] sm:$0xfe]
    %v2985 = vld [vmem:[#allocation2 + $0x8] sm:$0xfe]
    %v2986 = vld [vmem:[#allocation2 + $0x10] sm:$0xfe]
    %v2987 = vld [vmem:[#allocation2 + $0x18] sm:$0xfe]
    %v2988 = vld [vmem:[#allocation2 + $0x40] sm:$0x1]
    %v2989 = vld [vmem:[#allocation2 + $0x48] sm:$0x1]
    %v2990 = vld [vmem:[#allocation2 + $0x50] sm:$0x1]
    %v2991 = vld [vmem:[#allocation2 + $0x58] sm:$0x1]
    %v2992 = vld [vmem:[#allocation2 + $0x60] sm:$0xfe]
    %v2993 = vld [vmem:[#allocation2 + $0x68] sm:$0xfe]
    %v2994 = vld [vmem:[#allocation2 + $0x70] sm:$0xfe]
    %v2995 = vld [vmem:[#allocation2 + $0x78] sm:$0xfe]
    %v2996 = vld [vmem:[#allocation2 + $0xa0] sm:$0x1]
    %v2997 = vld [vmem:[#allocation2 + $0xa8] sm:$0x1]
    %v2998 = vld [vmem:[#allocation2 + $0xb0] sm:$0x1]
    %v2999 = vld [vmem:[#allocation2 + $0xb8] sm:$0x1]
    %v3024 = vrot.slane %v2984, 1
    %v3025 = vrot.slane %v2716, 1
    %v3026 = vsel %vm514, %v3024, %v3025
    %v3027 = vrot.slane %v2985, 1
    %v3028 = vrot.slane %v2717, 1
    %v3029 = vsel %vm514, %v3027, %v3028
    %v3030 = vrot.slane %v2986, 1
    %v3031 = vrot.slane %v2718, 1
    %v3032 = vsel %vm514, %v3030, %v3031
    %v3033 = vrot.slane %v2987, 1
    %v3034 = vrot.slane %v2719, 1
    %v3035 = vsel %vm514, %v3033, %v3034
    %v3036 = vrot.slane %v2988, 1
    %v3037 = vsel %vm514, %v3025, %v3036
    %v3038 = vrot.slane %v2989, 1
    %v3039 = vsel %vm514, %v3028, %v3038
    %v3040 = vrot.slane %v2990, 1
    %v3041 = vsel %vm514, %v3031, %v3040
    %v3042 = vrot.slane %v2991, 1
    %v3043 = vsel %vm514, %v3034, %v3042
    %v3044 = vrot.slane %v2992, 1
    %v3045 = vrot.slane %v2724, 1
    %v3046 = vsel %vm514, %v3044, %v3045
    %v3047 = vrot.slane %v2993, 1
    %v3048 = vrot.slane %v2725, 1
    %v3049 = vsel %vm514, %v3047, %v3048
    %v3050 = vrot.slane %v2994, 1
    %v3051 = vrot.slane %v2726, 1
    %v3052 = vsel %vm514, %v3050, %v3051
    %v3053 = vrot.slane %v2995, 1
    %v3054 = vrot.slane %v2727, 1
    %v3055 = vsel %vm514, %v3053, %v3054
    %v3056 = vrot.slane %v2996, 1
    %v3057 = vsel %vm514, %v3045, %v3056
    %v3058 = vrot.slane %v2997, 1
    %v3059 = vsel %vm514, %v3048, %v3058
    %v3060 = vrot.slane %v2998, 1
    %v3061 = vsel %vm514, %v3051, %v3060
    %v3062 = vrot.slane %v2999, 1
    %v3063 = vsel %vm514, %v3054, %v3062
    %s3080 = scalar_lea.vmem [#allocation6], 2048
    %v3081 = vld [vmem:[%s3080] sm:$0xff]
    %v3082 = vld [vmem:[%s3080 + $0x8] sm:$0xff]
    %v3083 = vld [vmem:[%s3080 + $0x10] sm:$0xff]
    %v3084 = vld [vmem:[%s3080 + $0x18] sm:$0xff]
    %v3085 = vld [vmem:[%s3080 + $0x20] sm:$0xff]
    %v3086 = vld [vmem:[%s3080 + $0x28] sm:$0xff]
    %v3087 = vld [vmem:[%s3080 + $0x30] sm:$0xff]
    %v3088 = vld [vmem:[%s3080 + $0x38] sm:$0xff]
    %v3089 = vld [vmem:[%s3080 + $0x40] sm:$0xff]
    %v3090 = vld [vmem:[%s3080 + $0x48] sm:$0xff]
    %v3091 = vld [vmem:[%s3080 + $0x50] sm:$0xff]
    %v3092 = vld [vmem:[%s3080 + $0x58] sm:$0xff]
    %v3093 = vld [vmem:[%s3080 + $0x60] sm:$0xff]
    %v3094 = vld [vmem:[%s3080 + $0x68] sm:$0xff]
    %v3095 = vld [vmem:[%s3080 + $0x70] sm:$0xff]
    %v3096 = vld [vmem:[%s3080 + $0x78] sm:$0xff]
    %v3097 = vld [vmem:[%s3080 + $0x80] sm:$0xff]
    %v3098 = vld [vmem:[%s3080 + $0x88] sm:$0xff]
    %v3099 = vld [vmem:[%s3080 + $0x90] sm:$0xff]
    %v3100 = vld [vmem:[%s3080 + $0x98] sm:$0xff]
    %v3101 = vld [vmem:[%s3080 + $0xa0] sm:$0xff]
    %v3102 = vld [vmem:[%s3080 + $0xa8] sm:$0xff]
    %v3103 = vld [vmem:[%s3080 + $0xb0] sm:$0xff]
    %v3104 = vld [vmem:[%s3080 + $0xb8] sm:$0xff]
    %v3105 = vld [vmem:[%s3080 + $0xc0] sm:$0xff]
    %v3106 = vld [vmem:[%s3080 + $0xc8] sm:$0xff]
    %v3107 = vld [vmem:[%s3080 + $0xd0] sm:$0xff]
    %v3108 = vld [vmem:[%s3080 + $0xd8] sm:$0xff]
    %v3109 = vld [vmem:[%s3080 + $0xe0] sm:$0xff]
    %v3110 = vld [vmem:[%s3080 + $0xe8] sm:$0xff]
    %v3111 = vld [vmem:[%s3080 + $0xf0] sm:$0xff]
    %v3112 = vld [vmem:[%s3080 + $0xf8] sm:$0xff]
    %v3113 = vld [vmem:[%s3080 + $0x100] sm:$0xff]
    %v3114 = vld [vmem:[%s3080 + $0x108] sm:$0xff]
    %v3115 = vld [vmem:[%s3080 + $0x110] sm:$0xff]
    %v3116 = vld [vmem:[%s3080 + $0x118] sm:$0xff]
    %v3117 = vld [vmem:[%s3080 + $0x120] sm:$0xff]
    %v3118 = vld [vmem:[%s3080 + $0x128] sm:$0xff]
    %v3119 = vld [vmem:[%s3080 + $0x130] sm:$0xff]
    %v3120 = vld [vmem:[%s3080 + $0x138] sm:$0xff]
    %v3121 = vld [vmem:[%s3080 + $0x140] sm:$0xff]
    %v3122 = vld [vmem:[%s3080 + $0x148] sm:$0xff]
    %v3123 = vld [vmem:[%s3080 + $0x150] sm:$0xff]
    %v3124 = vld [vmem:[%s3080 + $0x158] sm:$0xff]
    %v3125 = vld [vmem:[%s3080 + $0x160] sm:$0xff]
    %v3126 = vld [vmem:[%s3080 + $0x168] sm:$0xff]
    %v3127 = vld [vmem:[%s3080 + $0x170] sm:$0xff]
    %v3128 = vld [vmem:[%s3080 + $0x178] sm:$0xff]
    %v3129 = vld [vmem:[%s3080 + $0x180] sm:$0xff]
    %v3130 = vld [vmem:[%s3080 + $0x188] sm:$0xff]
    %v3131 = vld [vmem:[%s3080 + $0x190] sm:$0xff]
    %v3132 = vld [vmem:[%s3080 + $0x198] sm:$0xff]
    %v3133 = vld [vmem:[%s3080 + $0x1a0] sm:$0xff]
    %v3134 = vld [vmem:[%s3080 + $0x1a8] sm:$0xff]
    %v3135 = vld [vmem:[%s3080 + $0x1b0] sm:$0xff]
    %v3136 = vld [vmem:[%s3080 + $0x1b8] sm:$0xff]
    %v3137 = vld [vmem:[%s3080 + $0x1c0] sm:$0xff]
    %v3138 = vld [vmem:[%s3080 + $0x1c8] sm:$0xff]
    %v3139 = vld [vmem:[%s3080 + $0x1d0] sm:$0xff]
    %v3140 = vld [vmem:[%s3080 + $0x1d8] sm:$0xff]
    %v3141 = vld [vmem:[%s3080 + $0x1e0] sm:$0xff]
    %v3142 = vld [vmem:[%s3080 + $0x1e8] sm:$0xff]
    %v3143 = vld [vmem:[%s3080 + $0x1f0] sm:$0xff]
    %v3144 = vld [vmem:[%s3080 + $0x1f8] sm:$0xff]
    %v3145 = vld [vmem:[%s3080 + $0x200] sm:$0xff]
    %v3146 = vld [vmem:[%s3080 + $0x208] sm:$0xff]
    %v3147 = vld [vmem:[%s3080 + $0x210] sm:$0xff]
    %v3148 = vld [vmem:[%s3080 + $0x218] sm:$0xff]
    %v3149 = vld [vmem:[%s3080 + $0x220] sm:$0xff]
    %v3150 = vld [vmem:[%s3080 + $0x228] sm:$0xff]
    %v3151 = vld [vmem:[%s3080 + $0x230] sm:$0xff]
    %v3152 = vld [vmem:[%s3080 + $0x238] sm:$0xff]
    %v3153 = vld [vmem:[%s3080 + $0x240] sm:$0xff]
    %v3154 = vld [vmem:[%s3080 + $0x248] sm:$0xff]
    %v3155 = vld [vmem:[%s3080 + $0x250] sm:$0xff]
    %v3156 = vld [vmem:[%s3080 + $0x258] sm:$0xff]
    %v3157 = vld [vmem:[%s3080 + $0x260] sm:$0xff]
    %v3158 = vld [vmem:[%s3080 + $0x268] sm:$0xff]
    %v3159 = vld [vmem:[%s3080 + $0x270] sm:$0xff]
    %v3160 = vld [vmem:[%s3080 + $0x278] sm:$0xff]
    %v3161 = vld [vmem:[%s3080 + $0x280] sm:$0xff]
    %v3162 = vld [vmem:[%s3080 + $0x288] sm:$0xff]
    %v3163 = vld [vmem:[%s3080 + $0x290] sm:$0xff]
    %v3164 = vld [vmem:[%s3080 + $0x298] sm:$0xff]
    %v3165 = vld [vmem:[%s3080 + $0x2a0] sm:$0xff]
    %v3166 = vld [vmem:[%s3080 + $0x2a8] sm:$0xff]
    %v3167 = vld [vmem:[%s3080 + $0x2b0] sm:$0xff]
    %v3168 = vld [vmem:[%s3080 + $0x2b8] sm:$0xff]
    %v3169 = vld [vmem:[%s3080 + $0x2c0] sm:$0xff]
    %v3170 = vld [vmem:[%s3080 + $0x2c8] sm:$0xff]
    %v3171 = vld [vmem:[%s3080 + $0x2d0] sm:$0xff]
    %v3172 = vld [vmem:[%s3080 + $0x2d8] sm:$0xff]
    %v3173 = vld [vmem:[%s3080 + $0x2e0] sm:$0xff]
    %v3174 = vld [vmem:[%s3080 + $0x2e8] sm:$0xff]
    %v3175 = vld [vmem:[%s3080 + $0x2f0] sm:$0xff]
    %v3176 = vld [vmem:[%s3080 + $0x2f8] sm:$0xff]
    %v3177 = vld [vmem:[%s3080 + $0x300] sm:$0xff]
    %v3178 = vld [vmem:[%s3080 + $0x308] sm:$0xff]
    %v3179 = vld [vmem:[%s3080 + $0x310] sm:$0xff]
    %v3180 = vld [vmem:[%s3080 + $0x318] sm:$0xff]
    %v3181 = vld [vmem:[%s3080 + $0x320] sm:$0xff]
    %v3182 = vld [vmem:[%s3080 + $0x328] sm:$0xff]
    %v3183 = vld [vmem:[%s3080 + $0x330] sm:$0xff]
    %v3184 = vld [vmem:[%s3080 + $0x338] sm:$0xff]
    %v3185 = vld [vmem:[%s3080 + $0x340] sm:$0xff]
    %v3186 = vld [vmem:[%s3080 + $0x348] sm:$0xff]
    %v3187 = vld [vmem:[%s3080 + $0x350] sm:$0xff]
    %v3188 = vld [vmem:[%s3080 + $0x358] sm:$0xff]
    %v3189 = vld [vmem:[%s3080 + $0x360] sm:$0xff]
    %v3190 = vld [vmem:[%s3080 + $0x368] sm:$0xff]
    %v3191 = vld [vmem:[%s3080 + $0x370] sm:$0xff]
    %v3192 = vld [vmem:[%s3080 + $0x378] sm:$0xff]
    %v3193 = vld [vmem:[%s3080 + $0x380] sm:$0xff]
    %v3194 = vld [vmem:[%s3080 + $0x388] sm:$0xff]
    %v3195 = vld [vmem:[%s3080 + $0x390] sm:$0xff]
    %v3196 = vld [vmem:[%s3080 + $0x398] sm:$0xff]
    %v3197 = vld [vmem:[%s3080 + $0x3a0] sm:$0xff]
    %v3198 = vld [vmem:[%s3080 + $0x3a8] sm:$0xff]
    %v3199 = vld [vmem:[%s3080 + $0x3b0] sm:$0xff]
    %v3200 = vld [vmem:[%s3080 + $0x3b8] sm:$0xff]
    %v3201 = vld [vmem:[%s3080 + $0x3c0] sm:$0xff]
    %v3202 = vld [vmem:[%s3080 + $0x3c8] sm:$0xff]
    %v3203 = vld [vmem:[%s3080 + $0x3d0] sm:$0xff]
    %v3204 = vld [vmem:[%s3080 + $0x3d8] sm:$0xff]
    %v3205 = vld [vmem:[%s3080 + $0x3e0] sm:$0xff]
    %v3206 = vld [vmem:[%s3080 + $0x3e8] sm:$0xff]
    %v3207 = vld [vmem:[%s3080 + $0x3f0] sm:$0xff]
    %v3208 = vld [vmem:[%s3080 + $0x3f8] sm:$0xff]
    %v3209 = vld [vmem:[%s3080 + $0x400] sm:$0xff]
    %v3210 = vld [vmem:[%s3080 + $0x408] sm:$0xff]
    %v3211 = vld [vmem:[%s3080 + $0x410] sm:$0xff]
    %v3212 = vld [vmem:[%s3080 + $0x418] sm:$0xff]
    %v3213 = vld [vmem:[%s3080 + $0x420] sm:$0xff]
    %v3214 = vld [vmem:[%s3080 + $0x428] sm:$0xff]
    %v3215 = vld [vmem:[%s3080 + $0x430] sm:$0xff]
    %v3216 = vld [vmem:[%s3080 + $0x438] sm:$0xff]
    %v3217 = vld [vmem:[%s3080 + $0x440] sm:$0xff]
    %v3218 = vld [vmem:[%s3080 + $0x448] sm:$0xff]
    %v3219 = vld [vmem:[%s3080 + $0x450] sm:$0xff]
    %v3220 = vld [vmem:[%s3080 + $0x458] sm:$0xff]
    %v3221 = vld [vmem:[%s3080 + $0x460] sm:$0xff]
    %v3222 = vld [vmem:[%s3080 + $0x468] sm:$0xff]
    %v3223 = vld [vmem:[%s3080 + $0x470] sm:$0xff]
    %v3224 = vld [vmem:[%s3080 + $0x478] sm:$0xff]
    %v3225 = vld [vmem:[%s3080 + $0x480] sm:$0xff]
    %v3226 = vld [vmem:[%s3080 + $0x488] sm:$0xff]
    %v3227 = vld [vmem:[%s3080 + $0x490] sm:$0xff]
    %v3228 = vld [vmem:[%s3080 + $0x498] sm:$0xff]
    %v3229 = vld [vmem:[%s3080 + $0x4a0] sm:$0xff]
    %v3230 = vld [vmem:[%s3080 + $0x4a8] sm:$0xff]
    %v3231 = vld [vmem:[%s3080 + $0x4b0] sm:$0xff]
    %v3232 = vld [vmem:[%s3080 + $0x4b8] sm:$0xff]
    %v3233 = vld [vmem:[%s3080 + $0x4c0] sm:$0xff]
    %v3234 = vld [vmem:[%s3080 + $0x4c8] sm:$0xff]
    %v3235 = vld [vmem:[%s3080 + $0x4d0] sm:$0xff]
    %v3236 = vld [vmem:[%s3080 + $0x4d8] sm:$0xff]
    %v3237 = vld [vmem:[%s3080 + $0x4e0] sm:$0xff]
    %v3238 = vld [vmem:[%s3080 + $0x4e8] sm:$0xff]
    %v3239 = vld [vmem:[%s3080 + $0x4f0] sm:$0xff]
    %v3240 = vld [vmem:[%s3080 + $0x4f8] sm:$0xff]
    %v3241 = vld [vmem:[%s3080 + $0x500] sm:$0xff]
    %v3242 = vld [vmem:[%s3080 + $0x508] sm:$0xff]
    %v3243 = vld [vmem:[%s3080 + $0x510] sm:$0xff]
    %v3244 = vld [vmem:[%s3080 + $0x518] sm:$0xff]
    %v3245 = vld [vmem:[%s3080 + $0x520] sm:$0xff]
    %v3246 = vld [vmem:[%s3080 + $0x528] sm:$0xff]
    %v3247 = vld [vmem:[%s3080 + $0x530] sm:$0xff]
    %v3248 = vld [vmem:[%s3080 + $0x538] sm:$0xff]
    %v3249 = vld [vmem:[%s3080 + $0x540] sm:$0xff]
    %v3250 = vld [vmem:[%s3080 + $0x548] sm:$0xff]
    %v3251 = vld [vmem:[%s3080 + $0x550] sm:$0xff]
    %v3252 = vld [vmem:[%s3080 + $0x558] sm:$0xff]
    %v3253 = vld [vmem:[%s3080 + $0x560] sm:$0xff]
    %v3254 = vld [vmem:[%s3080 + $0x568] sm:$0xff]
    %v3255 = vld [vmem:[%s3080 + $0x570] sm:$0xff]
    %v3256 = vld [vmem:[%s3080 + $0x578] sm:$0xff]
    %v3257 = vld [vmem:[%s3080 + $0x580] sm:$0xff]
    %v3258 = vld [vmem:[%s3080 + $0x588] sm:$0xff]
    %v3259 = vld [vmem:[%s3080 + $0x590] sm:$0xff]
    %v3260 = vld [vmem:[%s3080 + $0x598] sm:$0xff]
    %v3261 = vld [vmem:[%s3080 + $0x5a0] sm:$0xff]
    %v3262 = vld [vmem:[%s3080 + $0x5a8] sm:$0xff]
    %v3263 = vld [vmem:[%s3080 + $0x5b0] sm:$0xff]
    %v3264 = vld [vmem:[%s3080 + $0x5b8] sm:$0xff]
    %v3265 = vld [vmem:[%s3080 + $0x5c0] sm:$0xff]
    %v3266 = vld [vmem:[%s3080 + $0x5c8] sm:$0xff]
    %v3267 = vld [vmem:[%s3080 + $0x5d0] sm:$0xff]
    %v3268 = vld [vmem:[%s3080 + $0x5d8] sm:$0xff]
    %v3269 = vld [vmem:[%s3080 + $0x5e0] sm:$0xff]
    %v3270 = vld [vmem:[%s3080 + $0x5e8] sm:$0xff]
    %v3271 = vld [vmem:[%s3080 + $0x5f0] sm:$0xff]
    %v3272 = vld [vmem:[%s3080 + $0x5f8] sm:$0xff]
    %v3273 = vld [vmem:[%s3080 + $0x600] sm:$0xff]
    %v3274 = vld [vmem:[%s3080 + $0x608] sm:$0xff]
    %v3275 = vld [vmem:[%s3080 + $0x610] sm:$0xff]
    %v3276 = vld [vmem:[%s3080 + $0x618] sm:$0xff]
    %v3277 = vld [vmem:[%s3080 + $0x620] sm:$0xff]
    %v3278 = vld [vmem:[%s3080 + $0x628] sm:$0xff]
    %v3279 = vld [vmem:[%s3080 + $0x630] sm:$0xff]
    %v3280 = vld [vmem:[%s3080 + $0x638] sm:$0xff]
    %v3281 = vld [vmem:[%s3080 + $0x640] sm:$0xff]
    %v3282 = vld [vmem:[%s3080 + $0x648] sm:$0xff]
    %v3283 = vld [vmem:[%s3080 + $0x650] sm:$0xff]
    %v3284 = vld [vmem:[%s3080 + $0x658] sm:$0xff]
    %v3285 = vld [vmem:[%s3080 + $0x660] sm:$0xff]
    %v3286 = vld [vmem:[%s3080 + $0x668] sm:$0xff]
    %v3287 = vld [vmem:[%s3080 + $0x670] sm:$0xff]
    %v3288 = vld [vmem:[%s3080 + $0x678] sm:$0xff]
    %v3289 = vld [vmem:[%s3080 + $0x680] sm:$0xff]
    %v3290 = vld [vmem:[%s3080 + $0x688] sm:$0xff]
    %v3291 = vld [vmem:[%s3080 + $0x690] sm:$0xff]
    %v3292 = vld [vmem:[%s3080 + $0x698] sm:$0xff]
    %v3293 = vld [vmem:[%s3080 + $0x6a0] sm:$0xff]
    %v3294 = vld [vmem:[%s3080 + $0x6a8] sm:$0xff]
    %v3295 = vld [vmem:[%s3080 + $0x6b0] sm:$0xff]
    %v3296 = vld [vmem:[%s3080 + $0x6b8] sm:$0xff]
    %v3297 = vld [vmem:[%s3080 + $0x6c0] sm:$0xff]
    %v3298 = vld [vmem:[%s3080 + $0x6c8] sm:$0xff]
    %v3299 = vld [vmem:[%s3080 + $0x6d0] sm:$0xff]
    %v3300 = vld [vmem:[%s3080 + $0x6d8] sm:$0xff]
    %v3301 = vld [vmem:[%s3080 + $0x6e0] sm:$0xff]
    %v3302 = vld [vmem:[%s3080 + $0x6e8] sm:$0xff]
    %v3303 = vld [vmem:[%s3080 + $0x6f0] sm:$0xff]
    %v3304 = vld [vmem:[%s3080 + $0x6f8] sm:$0xff]
    %v3305 = vld [vmem:[%s3080 + $0x700] sm:$0xff]
    %v3306 = vld [vmem:[%s3080 + $0x708] sm:$0xff]
    %v3307 = vld [vmem:[%s3080 + $0x710] sm:$0xff]
    %v3308 = vld [vmem:[%s3080 + $0x718] sm:$0xff]
    %v3309 = vld [vmem:[%s3080 + $0x720] sm:$0xff]
    %v3310 = vld [vmem:[%s3080 + $0x728] sm:$0xff]
    %v3311 = vld [vmem:[%s3080 + $0x730] sm:$0xff]
    %v3312 = vld [vmem:[%s3080 + $0x738] sm:$0xff]
    %v3313 = vld [vmem:[%s3080 + $0x740] sm:$0xff]
    %v3314 = vld [vmem:[%s3080 + $0x748] sm:$0xff]
    %v3315 = vld [vmem:[%s3080 + $0x750] sm:$0xff]
    %v3316 = vld [vmem:[%s3080 + $0x758] sm:$0xff]
    %v3317 = vld [vmem:[%s3080 + $0x760] sm:$0xff]
    %v3318 = vld [vmem:[%s3080 + $0x768] sm:$0xff]
    %v3319 = vld [vmem:[%s3080 + $0x770] sm:$0xff]
    %v3320 = vld [vmem:[%s3080 + $0x778] sm:$0xff]
    %v3321 = vld [vmem:[%s3080 + $0x780] sm:$0xff]
    %v3322 = vld [vmem:[%s3080 + $0x788] sm:$0xff]
    %v3323 = vld [vmem:[%s3080 + $0x790] sm:$0xff]
    %v3324 = vld [vmem:[%s3080 + $0x798] sm:$0xff]
    %v3325 = vld [vmem:[%s3080 + $0x7a0] sm:$0xff]
    %v3326 = vld [vmem:[%s3080 + $0x7a8] sm:$0xff]
    %v3327 = vld [vmem:[%s3080 + $0x7b0] sm:$0xff]
    %v3328 = vld [vmem:[%s3080 + $0x7b8] sm:$0xff]
    %v3329 = vld [vmem:[%s3080 + $0x7c0] sm:$0xff]
    %v3330 = vld [vmem:[%s3080 + $0x7c8] sm:$0xff]
    %v3331 = vld [vmem:[%s3080 + $0x7d0] sm:$0xff]
    %v3332 = vld [vmem:[%s3080 + $0x7d8] sm:$0xff]
    %v3333 = vld [vmem:[%s3080 + $0x7e0] sm:$0xff]
    %v3334 = vld [vmem:[%s3080 + $0x7e8] sm:$0xff]
    %v3335 = vld [vmem:[%s3080 + $0x7f0] sm:$0xff]
    %v3336 = vld [vmem:[%s3080 + $0x7f8] sm:$0xff]
    %3337 = vmatpush.msra.mxu0 %v3141
    %3338 = vmatpush.msra.mxu0 %v3137
    %3339 = vmatpush.msra.mxu0 %v3133
    %3340 = vmatpush.msra.mxu0 %v3129
    %3341 = vmatpush.msra.mxu0 %v3125
    %3342 = vmatpush.msra.mxu0 %v3121
    %3343 = vmatpush.msra.mxu0 %v3117
    %3344 = vmatpush.msra.mxu0 %v3113
    %3345 = vmatpush.msra.mxu0 %v3109
    %3346 = vmatpush.msra.mxu0 %v3105
    %3347 = vmatpush.msra.mxu0 %v3101
    %3348 = vmatpush.msra.mxu0 %v3097
    %3349 = vmatpush.msra.mxu0 %v3093
    %3350 = vmatpush.msra.mxu0 %v3089
    %3351 = vmatpush.msra.mxu0 %v3085
    %3352 = vmatpush.msra.mxu0 %v3081
    %3353 = vmatmul.f32.gmra.mxu0 %v3026
    %v3354 = vpop.f32.mrf.mxu0
    %v3355 = vadd.f32 0.0, %v3354
    %3356 = vmatmul.f32.gmra.mxu0 %v3037
    %v3357 = vpop.f32.mrf.mxu0
    %v3358 = vadd.f32 0.0, %v3357
    %3359 = vmatmul.f32.gmra.mxu0 %v3046
    %v3360 = vpop.f32.mrf.mxu0
    %v3361 = vadd.f32 0.0, %v3360
    %3362 = vmatmul.f32.gmra.mxu0 %v3057
    %v3363 = vpop.f32.mrf.mxu0
    %v3364 = vadd.f32 0.0, %v3363
    %3365 = vdwg.mxu0
    %3366 = vmatpush.msra.mxu0 %v3205
    %3367 = vmatpush.msra.mxu0 %v3201
    %3368 = vmatpush.msra.mxu0 %v3197
    %3369 = vmatpush.msra.mxu0 %v3193
    %3370 = vmatpush.msra.mxu0 %v3189
    %3371 = vmatpush.msra.mxu0 %v3185
    %3372 = vmatpush.msra.mxu0 %v3181
    %3373 = vmatpush.msra.mxu0 %v3177
    %3374 = vmatpush.msra.mxu0 %v3173
    %3375 = vmatpush.msra.mxu0 %v3169
    %3376 = vmatpush.msra.mxu0 %v3165
    %3377 = vmatpush.msra.mxu0 %v3161
    %3378 = vmatpush.msra.mxu0 %v3157
    %3379 = vmatpush.msra.mxu0 %v3153
    %3380 = vmatpush.msra.mxu0 %v3149
    %3381 = vmatpush.msra.mxu0 %v3145
    %3382 = vmatmul.f32.gmra.mxu0 %v3029
    %v3383 = vpop.f32.mrf.mxu0
    %v3384 = vadd.f32 %v3355, %v3383
    %3385 = vmatmul.f32.gmra.mxu0 %v3039
    %v3386 = vpop.f32.mrf.mxu0
    %v3387 = vadd.f32 %v3358, %v3386
    %3388 = vmatmul.f32.gmra.mxu0 %v3049
    %v3389 = vpop.f32.mrf.mxu0
    %v3390 = vadd.f32 %v3361, %v3389
    %3391 = vmatmul.f32.gmra.mxu0 %v3059
    %v3392 = vpop.f32.mrf.mxu0
    %v3393 = vadd.f32 %v3364, %v3392
    %3394 = vdwg.mxu0
    %3395 = vmatpush.msra.mxu0 %v3269
    %3396 = vmatpush.msra.mxu0 %v3265
    %3397 = vmatpush.msra.mxu0 %v3261
    %3398 = vmatpush.msra.mxu0 %v3257
    %3399 = vmatpush.msra.mxu0 %v3253
    %3400 = vmatpush.msra.mxu0 %v3249
    %3401 = vmatpush.msra.mxu0 %v3245
    %3402 = vmatpush.msra.mxu0 %v3241
    %3403 = vmatpush.msra.mxu0 %v3237
    %3404 = vmatpush.msra.mxu0 %v3233
    %3405 = vmatpush.msra.mxu0 %v3229
    %3406 = vmatpush.msra.mxu0 %v3225
    %3407 = vmatpush.msra.mxu0 %v3221
    %3408 = vmatpush.msra.mxu0 %v3217
    %3409 = vmatpush.msra.mxu0 %v3213
    %3410 = vmatpush.msra.mxu0 %v3209
    %3411 = vmatmul.f32.gmra.mxu0 %v3032
    %v3412 = vpop.f32.mrf.mxu0
    %v3413 = vadd.f32 %v3384, %v3412
    %3414 = vmatmul.f32.gmra.mxu0 %v3041
    %v3415 = vpop.f32.mrf.mxu0
    %v3416 = vadd.f32 %v3387, %v3415
    %3417 = vmatmul.f32.gmra.mxu0 %v3052
    %v3418 = vpop.f32.mrf.mxu0
    %v3419 = vadd.f32 %v3390, %v3418
    %3420 = vmatmul.f32.gmra.mxu0 %v3061
    %v3421 = vpop.f32.mrf.mxu0
    %v3422 = vadd.f32 %v3393, %v3421
    %3423 = vdwg.mxu0
    %3424 = vmatpush.msra.mxu0 %v3333
    %3425 = vmatpush.msra.mxu0 %v3329
    %3426 = vmatpush.msra.mxu0 %v3325
    %3427 = vmatpush.msra.mxu0 %v3321
    %3428 = vmatpush.msra.mxu0 %v3317
    %3429 = vmatpush.msra.mxu0 %v3313
    %3430 = vmatpush.msra.mxu0 %v3309
    %3431 = vmatpush.msra.mxu0 %v3305
    %3432 = vmatpush.msra.mxu0 %v3301
    %3433 = vmatpush.msra.mxu0 %v3297
    %3434 = vmatpush.msra.mxu0 %v3293
    %3435 = vmatpush.msra.mxu0 %v3289
    %3436 = vmatpush.msra.mxu0 %v3285
    %3437 = vmatpush.msra.mxu0 %v3281
    %3438 = vmatpush.msra.mxu0 %v3277
    %3439 = vmatpush.msra.mxu0 %v3273
    %3440 = vmatmul.f32.gmra.mxu0 %v3035
    %v3441 = vpop.f32.mrf.mxu0
    %v3442 = vadd.f32 %v3413, %v3441
    %3443 = vmatmul.f32.gmra.mxu0 %v3043
    %v3444 = vpop.f32.mrf.mxu0
    %v3445 = vadd.f32 %v3416, %v3444
    %3446 = vmatmul.f32.gmra.mxu0 %v3055
    %v3447 = vpop.f32.mrf.mxu0
    %v3448 = vadd.f32 %v3419, %v3447
    %3449 = vmatmul.f32.gmra.mxu0 %v3063
    %v3450 = vpop.f32.mrf.mxu0
    %v3451 = vadd.f32 %v3422, %v3450
    %3452 = vdwg.mxu0
    %3453 = vmatpush.msra.mxu0 %v3142
    %3454 = vmatpush.msra.mxu0 %v3138
    %3455 = vmatpush.msra.mxu0 %v3134
    %3456 = vmatpush.msra.mxu0 %v3130
    %3457 = vmatpush.msra.mxu0 %v3126
    %3458 = vmatpush.msra.mxu0 %v3122
    %3459 = vmatpush.msra.mxu0 %v3118
    %3460 = vmatpush.msra.mxu0 %v3114
    %3461 = vmatpush.msra.mxu0 %v3110
    %3462 = vmatpush.msra.mxu0 %v3106
    %3463 = vmatpush.msra.mxu0 %v3102
    %3464 = vmatpush.msra.mxu0 %v3098
    %3465 = vmatpush.msra.mxu0 %v3094
    %3466 = vmatpush.msra.mxu0 %v3090
    %3467 = vmatpush.msra.mxu0 %v3086
    %3468 = vmatpush.msra.mxu0 %v3082
    %3469 = vmatmul.f32.gmra.mxu0 %v3026
    %v3470 = vpop.f32.mrf.mxu0
    %v3471 = vadd.f32 0.0, %v3470
    %3472 = vmatmul.f32.gmra.mxu0 %v3037
    %v3473 = vpop.f32.mrf.mxu0
    %v3474 = vadd.f32 0.0, %v3473
    %3475 = vmatmul.f32.gmra.mxu0 %v3046
    %v3476 = vpop.f32.mrf.mxu0
    %v3477 = vadd.f32 0.0, %v3476
    %3478 = vmatmul.f32.gmra.mxu0 %v3057
    %v3479 = vpop.f32.mrf.mxu0
    %v3480 = vadd.f32 0.0, %v3479
    %3481 = vdwg.mxu0
    %3482 = vmatpush.msra.mxu0 %v3206
    %3483 = vmatpush.msra.mxu0 %v3202
    %3484 = vmatpush.msra.mxu0 %v3198
    %3485 = vmatpush.msra.mxu0 %v3194
    %3486 = vmatpush.msra.mxu0 %v3190
    %3487 = vmatpush.msra.mxu0 %v3186
    %3488 = vmatpush.msra.mxu0 %v3182
    %3489 = vmatpush.msra.mxu0 %v3178
    %3490 = vmatpush.msra.mxu0 %v3174
    %3491 = vmatpush.msra.mxu0 %v3170
    %3492 = vmatpush.msra.mxu0 %v3166
    %3493 = vmatpush.msra.mxu0 %v3162
    %3494 = vmatpush.msra.mxu0 %v3158
    %3495 = vmatpush.msra.mxu0 %v3154
    %3496 = vmatpush.msra.mxu0 %v3150
    %3497 = vmatpush.msra.mxu0 %v3146
    %3498 = vmatmul.f32.gmra.mxu0 %v3029
    %v3499 = vpop.f32.mrf.mxu0
    %v3500 = vadd.f32 %v3471, %v3499
    %3501 = vmatmul.f32.gmra.mxu0 %v3039
    %v3502 = vpop.f32.mrf.mxu0
    %v3503 = vadd.f32 %v3474, %v3502
    %3504 = vmatmul.f32.gmra.mxu0 %v3049
    %v3505 = vpop.f32.mrf.mxu0
    %v3506 = vadd.f32 %v3477, %v3505
    %3507 = vmatmul.f32.gmra.mxu0 %v3059
    %v3508 = vpop.f32.mrf.mxu0
    %v3509 = vadd.f32 %v3480, %v3508
    %3510 = vdwg.mxu0
    %3511 = vmatpush.msra.mxu0 %v3270
    %3512 = vmatpush.msra.mxu0 %v3266
    %3513 = vmatpush.msra.mxu0 %v3262
    %3514 = vmatpush.msra.mxu0 %v3258
    %3515 = vmatpush.msra.mxu0 %v3254
    %3516 = vmatpush.msra.mxu0 %v3250
    %3517 = vmatpush.msra.mxu0 %v3246
    %3518 = vmatpush.msra.mxu0 %v3242
    %3519 = vmatpush.msra.mxu0 %v3238
    %3520 = vmatpush.msra.mxu0 %v3234
    %3521 = vmatpush.msra.mxu0 %v3230
    %3522 = vmatpush.msra.mxu0 %v3226
    %3523 = vmatpush.msra.mxu0 %v3222
    %3524 = vmatpush.msra.mxu0 %v3218
    %3525 = vmatpush.msra.mxu0 %v3214
    %3526 = vmatpush.msra.mxu0 %v3210
    %3527 = vmatmul.f32.gmra.mxu0 %v3032
    %v3528 = vpop.f32.mrf.mxu0
    %v3529 = vadd.f32 %v3500, %v3528
    %3530 = vmatmul.f32.gmra.mxu0 %v3041
    %v3531 = vpop.f32.mrf.mxu0
    %v3532 = vadd.f32 %v3503, %v3531
    %3533 = vmatmul.f32.gmra.mxu0 %v3052
    %v3534 = vpop.f32.mrf.mxu0
    %v3535 = vadd.f32 %v3506, %v3534
    %3536 = vmatmul.f32.gmra.mxu0 %v3061
    %v3537 = vpop.f32.mrf.mxu0
    %v3538 = vadd.f32 %v3509, %v3537
    %3539 = vdwg.mxu0
    %3540 = vmatpush.msra.mxu0 %v3334
    %3541 = vmatpush.msra.mxu0 %v3330
    %3542 = vmatpush.msra.mxu0 %v3326
    %3543 = vmatpush.msra.mxu0 %v3322
    %3544 = vmatpush.msra.mxu0 %v3318
    %3545 = vmatpush.msra.mxu0 %v3314
    %3546 = vmatpush.msra.mxu0 %v3310
    %3547 = vmatpush.msra.mxu0 %v3306
    %3548 = vmatpush.msra.mxu0 %v3302
    %3549 = vmatpush.msra.mxu0 %v3298
    %3550 = vmatpush.msra.mxu0 %v3294
    %3551 = vmatpush.msra.mxu0 %v3290
    %3552 = vmatpush.msra.mxu0 %v3286
    %3553 = vmatpush.msra.mxu0 %v3282
    %3554 = vmatpush.msra.mxu0 %v3278
    %3555 = vmatpush.msra.mxu0 %v3274
    %3556 = vmatmul.f32.gmra.mxu0 %v3035
    %v3557 = vpop.f32.mrf.mxu0
    %v3558 = vadd.f32 %v3529, %v3557
    %3559 = vmatmul.f32.gmra.mxu0 %v3043
    %v3560 = vpop.f32.mrf.mxu0
    %v3561 = vadd.f32 %v3532, %v3560
    %3562 = vmatmul.f32.gmra.mxu0 %v3055
    %v3563 = vpop.f32.mrf.mxu0
    %v3564 = vadd.f32 %v3535, %v3563
    %3565 = vmatmul.f32.gmra.mxu0 %v3063
    %v3566 = vpop.f32.mrf.mxu0
    %v3567 = vadd.f32 %v3538, %v3566
    %3568 = vdwg.mxu0
    %3569 = vmatpush.msra.mxu0 %v3143
    %3570 = vmatpush.msra.mxu0 %v3139
    %3571 = vmatpush.msra.mxu0 %v3135
    %3572 = vmatpush.msra.mxu0 %v3131
    %3573 = vmatpush.msra.mxu0 %v3127
    %3574 = vmatpush.msra.mxu0 %v3123
    %3575 = vmatpush.msra.mxu0 %v3119
    %3576 = vmatpush.msra.mxu0 %v3115
    %3577 = vmatpush.msra.mxu0 %v3111
    %3578 = vmatpush.msra.mxu0 %v3107
    %3579 = vmatpush.msra.mxu0 %v3103
    %3580 = vmatpush.msra.mxu0 %v3099
    %3581 = vmatpush.msra.mxu0 %v3095
    %3582 = vmatpush.msra.mxu0 %v3091
    %3583 = vmatpush.msra.mxu0 %v3087
    %3584 = vmatpush.msra.mxu0 %v3083
    %3585 = vmatmul.f32.gmra.mxu0 %v3026
    %v3586 = vpop.f32.mrf.mxu0
    %v3587 = vadd.f32 0.0, %v3586
    %3588 = vmatmul.f32.gmra.mxu0 %v3037
    %v3589 = vpop.f32.mrf.mxu0
    %v3590 = vadd.f32 0.0, %v3589
    %3591 = vmatmul.f32.gmra.mxu0 %v3046
    %v3592 = vpop.f32.mrf.mxu0
    %v3593 = vadd.f32 0.0, %v3592
    %3594 = vmatmul.f32.gmra.mxu0 %v3057
    %v3595 = vpop.f32.mrf.mxu0
    %v3596 = vadd.f32 0.0, %v3595
    %3597 = vdwg.mxu0
    %3598 = vmatpush.msra.mxu0 %v3207
    %3599 = vmatpush.msra.mxu0 %v3203
    %3600 = vmatpush.msra.mxu0 %v3199
    %3601 = vmatpush.msra.mxu0 %v3195
    %3602 = vmatpush.msra.mxu0 %v3191
    %3603 = vmatpush.msra.mxu0 %v3187
    %3604 = vmatpush.msra.mxu0 %v3183
    %3605 = vmatpush.msra.mxu0 %v3179
    %3606 = vmatpush.msra.mxu0 %v3175
    %3607 = vmatpush.msra.mxu0 %v3171
    %3608 = vmatpush.msra.mxu0 %v3167
    %3609 = vmatpush.msra.mxu0 %v3163
    %3610 = vmatpush.msra.mxu0 %v3159
    %3611 = vmatpush.msra.mxu0 %v3155
    %3612 = vmatpush.msra.mxu0 %v3151
    %3613 = vmatpush.msra.mxu0 %v3147
    %3614 = vmatmul.f32.gmra.mxu0 %v3029
    %v3615 = vpop.f32.mrf.mxu0
    %v3616 = vadd.f32 %v3587, %v3615
    %3617 = vmatmul.f32.gmra.mxu0 %v3039
    %v3618 = vpop.f32.mrf.mxu0
    %v3619 = vadd.f32 %v3590, %v3618
    %3620 = vmatmul.f32.gmra.mxu0 %v3049
    %v3621 = vpop.f32.mrf.mxu0
    %v3622 = vadd.f32 %v3593, %v3621
    %3623 = vmatmul.f32.gmra.mxu0 %v3059
    %v3624 = vpop.f32.mrf.mxu0
    %v3625 = vadd.f32 %v3596, %v3624
    %3626 = vdwg.mxu0
    %3627 = vmatpush.msra.mxu0 %v3271
    %3628 = vmatpush.msra.mxu0 %v3267
    %3629 = vmatpush.msra.mxu0 %v3263
    %3630 = vmatpush.msra.mxu0 %v3259
    %3631 = vmatpush.msra.mxu0 %v3255
    %3632 = vmatpush.msra.mxu0 %v3251
    %3633 = vmatpush.msra.mxu0 %v3247
    %3634 = vmatpush.msra.mxu0 %v3243
    %3635 = vmatpush.msra.mxu0 %v3239
    %3636 = vmatpush.msra.mxu0 %v3235
    %3637 = vmatpush.msra.mxu0 %v3231
    %3638 = vmatpush.msra.mxu0 %v3227
    %3639 = vmatpush.msra.mxu0 %v3223
    %3640 = vmatpush.msra.mxu0 %v3219
    %3641 = vmatpush.msra.mxu0 %v3215
    %3642 = vmatpush.msra.mxu0 %v3211
    %3643 = vmatmul.f32.gmra.mxu0 %v3032
    %v3644 = vpop.f32.mrf.mxu0
    %v3645 = vadd.f32 %v3616, %v3644
    %3646 = vmatmul.f32.gmra.mxu0 %v3041
    %v3647 = vpop.f32.mrf.mxu0
    %v3648 = vadd.f32 %v3619, %v3647
    %3649 = vmatmul.f32.gmra.mxu0 %v3052
    %v3650 = vpop.f32.mrf.mxu0
    %v3651 = vadd.f32 %v3622, %v3650
    %3652 = vmatmul.f32.gmra.mxu0 %v3061
    %v3653 = vpop.f32.mrf.mxu0
    %v3654 = vadd.f32 %v3625, %v3653
    %3655 = vdwg.mxu0
    %3656 = vmatpush.msra.mxu0 %v3335
    %3657 = vmatpush.msra.mxu0 %v3331
    %3658 = vmatpush.msra.mxu0 %v3327
    %3659 = vmatpush.msra.mxu0 %v3323
    %3660 = vmatpush.msra.mxu0 %v3319
    %3661 = vmatpush.msra.mxu0 %v3315
    %3662 = vmatpush.msra.mxu0 %v3311
    %3663 = vmatpush.msra.mxu0 %v3307
    %3664 = vmatpush.msra.mxu0 %v3303
    %3665 = vmatpush.msra.mxu0 %v3299
    %3666 = vmatpush.msra.mxu0 %v3295
    %3667 = vmatpush.msra.mxu0 %v3291
    %3668 = vmatpush.msra.mxu0 %v3287
    %3669 = vmatpush.msra.mxu0 %v3283
    %3670 = vmatpush.msra.mxu0 %v3279
    %3671 = vmatpush.msra.mxu0 %v3275
    %3672 = vmatmul.f32.gmra.mxu0 %v3035
    %v3673 = vpop.f32.mrf.mxu0
    %v3674 = vadd.f32 %v3645, %v3673
    %3675 = vmatmul.f32.gmra.mxu0 %v3043
    %v3676 = vpop.f32.mrf.mxu0
    %v3677 = vadd.f32 %v3648, %v3676
    %3678 = vmatmul.f32.gmra.mxu0 %v3055
    %v3679 = vpop.f32.mrf.mxu0
    %v3680 = vadd.f32 %v3651, %v3679
    %3681 = vmatmul.f32.gmra.mxu0 %v3063
    %v3682 = vpop.f32.mrf.mxu0
    %v3683 = vadd.f32 %v3654, %v3682
    %3684 = vdwg.mxu0
    %3685 = vmatpush.msra.mxu0 %v3144
    %3686 = vmatpush.msra.mxu0 %v3140
    %3687 = vmatpush.msra.mxu0 %v3136
    %3688 = vmatpush.msra.mxu0 %v3132
    %3689 = vmatpush.msra.mxu0 %v3128
    %3690 = vmatpush.msra.mxu0 %v3124
    %3691 = vmatpush.msra.mxu0 %v3120
    %3692 = vmatpush.msra.mxu0 %v3116
    %3693 = vmatpush.msra.mxu0 %v3112
    %3694 = vmatpush.msra.mxu0 %v3108
    %3695 = vmatpush.msra.mxu0 %v3104
    %3696 = vmatpush.msra.mxu0 %v3100
    %3697 = vmatpush.msra.mxu0 %v3096
    %3698 = vmatpush.msra.mxu0 %v3092
    %3699 = vmatpush.msra.mxu0 %v3088
    %3700 = vmatpush.msra.mxu0 %v3084
    %3701 = vmatmul.f32.gmra.mxu0 %v3026
    %v3702 = vpop.f32.mrf.mxu0
    %v3703 = vadd.f32 0.0, %v3702
    %3704 = vmatmul.f32.gmra.mxu0 %v3037
    %v3705 = vpop.f32.mrf.mxu0
    %v3706 = vadd.f32 0.0, %v3705
    %3707 = vmatmul.f32.gmra.mxu0 %v3046
    %v3708 = vpop.f32.mrf.mxu0
    %v3709 = vadd.f32 0.0, %v3708
    %3710 = vmatmul.f32.gmra.mxu0 %v3057
    %v3711 = vpop.f32.mrf.mxu0
    %v3712 = vadd.f32 0.0, %v3711
    %3713 = vdwg.mxu0
    %3714 = vmatpush.msra.mxu0 %v3208
    %3715 = vmatpush.msra.mxu0 %v3204
    %3716 = vmatpush.msra.mxu0 %v3200
    %3717 = vmatpush.msra.mxu0 %v3196
    %3718 = vmatpush.msra.mxu0 %v3192
    %3719 = vmatpush.msra.mxu0 %v3188
    %3720 = vmatpush.msra.mxu0 %v3184
    %3721 = vmatpush.msra.mxu0 %v3180
    %3722 = vmatpush.msra.mxu0 %v3176
    %3723 = vmatpush.msra.mxu0 %v3172
    %3724 = vmatpush.msra.mxu0 %v3168
    %3725 = vmatpush.msra.mxu0 %v3164
    %3726 = vmatpush.msra.mxu0 %v3160
    %3727 = vmatpush.msra.mxu0 %v3156
    %3728 = vmatpush.msra.mxu0 %v3152
    %3729 = vmatpush.msra.mxu0 %v3148
    %3730 = vmatmul.f32.gmra.mxu0 %v3029
    %v3731 = vpop.f32.mrf.mxu0
    %v3732 = vadd.f32 %v3703, %v3731
    %3733 = vmatmul.f32.gmra.mxu0 %v3039
    %v3734 = vpop.f32.mrf.mxu0
    %v3735 = vadd.f32 %v3706, %v3734
    %3736 = vmatmul.f32.gmra.mxu0 %v3049
    %v3737 = vpop.f32.mrf.mxu0
    %v3738 = vadd.f32 %v3709, %v3737
    %3739 = vmatmul.f32.gmra.mxu0 %v3059
    %v3740 = vpop.f32.mrf.mxu0
    %v3741 = vadd.f32 %v3712, %v3740
    %3742 = vdwg.mxu0
    %3743 = vmatpush.msra.mxu0 %v3272
    %3744 = vmatpush.msra.mxu0 %v3268
    %3745 = vmatpush.msra.mxu0 %v3264
    %3746 = vmatpush.msra.mxu0 %v3260
    %3747 = vmatpush.msra.mxu0 %v3256
    %3748 = vmatpush.msra.mxu0 %v3252
    %3749 = vmatpush.msra.mxu0 %v3248
    %3750 = vmatpush.msra.mxu0 %v3244
    %3751 = vmatpush.msra.mxu0 %v3240
    %3752 = vmatpush.msra.mxu0 %v3236
    %3753 = vmatpush.msra.mxu0 %v3232
    %3754 = vmatpush.msra.mxu0 %v3228
    %3755 = vmatpush.msra.mxu0 %v3224
    %3756 = vmatpush.msra.mxu0 %v3220
    %3757 = vmatpush.msra.mxu0 %v3216
    %3758 = vmatpush.msra.mxu0 %v3212
    %3759 = vmatmul.f32.gmra.mxu0 %v3032
    %v3760 = vpop.f32.mrf.mxu0
    %v3761 = vadd.f32 %v3732, %v3760
    %3762 = vmatmul.f32.gmra.mxu0 %v3041
    %v3763 = vpop.f32.mrf.mxu0
    %v3764 = vadd.f32 %v3735, %v3763
    %3765 = vmatmul.f32.gmra.mxu0 %v3052
    %v3766 = vpop.f32.mrf.mxu0
    %v3767 = vadd.f32 %v3738, %v3766
    %3768 = vmatmul.f32.gmra.mxu0 %v3061
    %v3769 = vpop.f32.mrf.mxu0
    %v3770 = vadd.f32 %v3741, %v3769
    %3771 = vdwg.mxu0
    %3772 = vmatpush.msra.mxu0 %v3336
    %3773 = vmatpush.msra.mxu0 %v3332
    %3774 = vmatpush.msra.mxu0 %v3328
    %3775 = vmatpush.msra.mxu0 %v3324
    %3776 = vmatpush.msra.mxu0 %v3320
    %3777 = vmatpush.msra.mxu0 %v3316
    %3778 = vmatpush.msra.mxu0 %v3312
    %3779 = vmatpush.msra.mxu0 %v3308
    %3780 = vmatpush.msra.mxu0 %v3304
    %3781 = vmatpush.msra.mxu0 %v3300
    %3782 = vmatpush.msra.mxu0 %v3296
    %3783 = vmatpush.msra.mxu0 %v3292
    %3784 = vmatpush.msra.mxu0 %v3288
    %3785 = vmatpush.msra.mxu0 %v3284
    %3786 = vmatpush.msra.mxu0 %v3280
    %3787 = vmatpush.msra.mxu0 %v3276
    %3788 = vmatmul.f32.gmra.mxu0 %v3035
    %v3789 = vpop.f32.mrf.mxu0
    %v3790 = vadd.f32 %v3761, %v3789
    %3791 = vmatmul.f32.gmra.mxu0 %v3043
    %v3792 = vpop.f32.mrf.mxu0
    %v3793 = vadd.f32 %v3764, %v3792
    %3794 = vmatmul.f32.gmra.mxu0 %v3055
    %v3795 = vpop.f32.mrf.mxu0
    %v3796 = vadd.f32 %v3767, %v3795
    %3797 = vmatmul.f32.gmra.mxu0 %v3063
    %v3798 = vpop.f32.mrf.mxu0
    %v3799 = vadd.f32 %v3770, %v3798
    %3800 = vdwg.mxu0
    %3801 = vmatpush.msra.mxu0 %v2788
    %3802 = vmatpush.msra.mxu0 %v2784
    %3803 = vmatpush.msra.mxu0 %v2780
    %3804 = vmatpush.msra.mxu0 %v2776
    %3805 = vmatpush.msra.mxu0 %v2772
    %3806 = vmatpush.msra.mxu0 %v2768
    %3807 = vmatpush.msra.mxu0 %v2764
    %3808 = vmatpush.msra.mxu0 %v2760
    %3809 = vmatpush.msra.mxu0 %v2756
    %3810 = vmatpush.msra.mxu0 %v2752
    %3811 = vmatpush.msra.mxu0 %v2748
    %3812 = vmatpush.msra.mxu0 %v2744
    %3813 = vmatpush.msra.mxu0 %v2740
    %3814 = vmatpush.msra.mxu0 %v2736
    %3815 = vmatpush.msra.mxu0 %v2732
    %3816 = vmatpush.msra.mxu0 %v2728
    %3817 = vmatmul.f32.gmra.mxu0 %v2712
    %v3818 = vpop.f32.mrf.mxu0
    %v3819 = vadd.f32 %v3442, %v3818
    %3820 = vmatmul.f32.gmra.mxu0 %v2716
    %v3821 = vpop.f32.mrf.mxu0
    %v3822 = vadd.f32 %v3445, %v3821
    %3823 = vmatmul.f32.gmra.mxu0 %v2720
    %v3824 = vpop.f32.mrf.mxu0
    %v3825 = vadd.f32 %v3448, %v3824
    %3826 = vmatmul.f32.gmra.mxu0 %v2724
    %v3827 = vpop.f32.mrf.mxu0
    %v3828 = vadd.f32 %v3451, %v3827
    %3829 = vdwg.mxu0
    %3830 = vmatpush.msra.mxu0 %v2852
    %3831 = vmatpush.msra.mxu0 %v2848
    %3832 = vmatpush.msra.mxu0 %v2844
    %3833 = vmatpush.msra.mxu0 %v2840
    %3834 = vmatpush.msra.mxu0 %v2836
    %3835 = vmatpush.msra.mxu0 %v2832
    %3836 = vmatpush.msra.mxu0 %v2828
    %3837 = vmatpush.msra.mxu0 %v2824
    %3838 = vmatpush.msra.mxu0 %v2820
    %3839 = vmatpush.msra.mxu0 %v2816
    %3840 = vmatpush.msra.mxu0 %v2812
    %3841 = vmatpush.msra.mxu0 %v2808
    %3842 = vmatpush.msra.mxu0 %v2804
    %3843 = vmatpush.msra.mxu0 %v2800
    %3844 = vmatpush.msra.mxu0 %v2796
    %3845 = vmatpush.msra.mxu0 %v2792
    %3846 = vmatmul.f32.gmra.mxu0 %v2713
    %v3847 = vpop.f32.mrf.mxu0
    %v3848 = vadd.f32 %v3819, %v3847
    %3849 = vmatmul.f32.gmra.mxu0 %v2717
    %v3850 = vpop.f32.mrf.mxu0
    %v3851 = vadd.f32 %v3822, %v3850
    %3852 = vmatmul.f32.gmra.mxu0 %v2721
    %v3853 = vpop.f32.mrf.mxu0
    %v3854 = vadd.f32 %v3825, %v3853
    %3855 = vmatmul.f32.gmra.mxu0 %v2725
    %v3856 = vpop.f32.mrf.mxu0
    %v3857 = vadd.f32 %v3828, %v3856
    %3858 = vdwg.mxu0
    %3859 = vmatpush.msra.mxu0 %v2916
    %3860 = vmatpush.msra.mxu0 %v2912
    %3861 = vmatpush.msra.mxu0 %v2908
    %3862 = vmatpush.msra.mxu0 %v2904
    %3863 = vmatpush.msra.mxu0 %v2900
    %3864 = vmatpush.msra.mxu0 %v2896
    %3865 = vmatpush.msra.mxu0 %v2892
    %3866 = vmatpush.msra.mxu0 %v2888
    %3867 = vmatpush.msra.mxu0 %v2884
    %3868 = vmatpush.msra.mxu0 %v2880
    %3869 = vmatpush.msra.mxu0 %v2876
    %3870 = vmatpush.msra.mxu0 %v2872
    %3871 = vmatpush.msra.mxu0 %v2868
    %3872 = vmatpush.msra.mxu0 %v2864
    %3873 = vmatpush.msra.mxu0 %v2860
    %3874 = vmatpush.msra.mxu0 %v2856
    %3875 = vmatmul.f32.gmra.mxu0 %v2714
    %v3876 = vpop.f32.mrf.mxu0
    %v3877 = vadd.f32 %v3848, %v3876
    %3878 = vmatmul.f32.gmra.mxu0 %v2718
    %v3879 = vpop.f32.mrf.mxu0
    %v3880 = vadd.f32 %v3851, %v3879
    %3881 = vmatmul.f32.gmra.mxu0 %v2722
    %v3882 = vpop.f32.mrf.mxu0
    %v3883 = vadd.f32 %v3854, %v3882
    %3884 = vmatmul.f32.gmra.mxu0 %v2726
    %v3885 = vpop.f32.mrf.mxu0
    %v3886 = vadd.f32 %v3857, %v3885
    %3887 = vdwg.mxu0
    %3888 = vmatpush.msra.mxu0 %v2980
    %3889 = vmatpush.msra.mxu0 %v2976
    %3890 = vmatpush.msra.mxu0 %v2972
    %3891 = vmatpush.msra.mxu0 %v2968
    %3892 = vmatpush.msra.mxu0 %v2964
    %3893 = vmatpush.msra.mxu0 %v2960
    %3894 = vmatpush.msra.mxu0 %v2956
    %3895 = vmatpush.msra.mxu0 %v2952
    %3896 = vmatpush.msra.mxu0 %v2948
    %3897 = vmatpush.msra.mxu0 %v2944
    %3898 = vmatpush.msra.mxu0 %v2940
    %3899 = vmatpush.msra.mxu0 %v2936
    %3900 = vmatpush.msra.mxu0 %v2932
    %3901 = vmatpush.msra.mxu0 %v2928
    %3902 = vmatpush.msra.mxu0 %v2924
    %3903 = vmatpush.msra.mxu0 %v2920
    %3904 = vmatmul.f32.gmra.mxu0 %v2715
    %v3905 = vpop.f32.mrf.mxu0
    %v3906 = vadd.f32 %v3877, %v3905
    %3907 = vmatmul.f32.gmra.mxu0 %v2719
    %v3908 = vpop.f32.mrf.mxu0
    %v3909 = vadd.f32 %v3880, %v3908
    %3910 = vmatmul.f32.gmra.mxu0 %v2723
    %v3911 = vpop.f32.mrf.mxu0
    %v3912 = vadd.f32 %v3883, %v3911
    %3913 = vmatmul.f32.gmra.mxu0 %v2727
    %v3914 = vpop.f32.mrf.mxu0
    %v3915 = vadd.f32 %v3886, %v3914
    %3916 = vdwg.mxu0
    %3917 = vmatpush.msra.mxu0 %v2789
    %3918 = vmatpush.msra.mxu0 %v2785
    %3919 = vmatpush.msra.mxu0 %v2781
    %3920 = vmatpush.msra.mxu0 %v2777
    %3921 = vmatpush.msra.mxu0 %v2773
    %3922 = vmatpush.msra.mxu0 %v2769
    %3923 = vmatpush.msra.mxu0 %v2765
    %3924 = vmatpush.msra.mxu0 %v2761
    %3925 = vmatpush.msra.mxu0 %v2757
    %3926 = vmatpush.msra.mxu0 %v2753
    %3927 = vmatpush.msra.mxu0 %v2749
    %3928 = vmatpush.msra.mxu0 %v2745
    %3929 = vmatpush.msra.mxu0 %v2741
    %3930 = vmatpush.msra.mxu0 %v2737
    %3931 = vmatpush.msra.mxu0 %v2733
    %3932 = vmatpush.msra.mxu0 %v2729
    %3933 = vmatmul.f32.gmra.mxu0 %v2712
    %v3934 = vpop.f32.mrf.mxu0
    %v3935 = vadd.f32 %v3558, %v3934
    %3936 = vmatmul.f32.gmra.mxu0 %v2716
    %v3937 = vpop.f32.mrf.mxu0
    %v3938 = vadd.f32 %v3561, %v3937
    %3939 = vmatmul.f32.gmra.mxu0 %v2720
    %v3940 = vpop.f32.mrf.mxu0
    %v3941 = vadd.f32 %v3564, %v3940
    %3942 = vmatmul.f32.gmra.mxu0 %v2724
    %v3943 = vpop.f32.mrf.mxu0
    %v3944 = vadd.f32 %v3567, %v3943
    %3945 = vdwg.mxu0
    %3946 = vmatpush.msra.mxu0 %v2853
    %3947 = vmatpush.msra.mxu0 %v2849
    %3948 = vmatpush.msra.mxu0 %v2845
    %3949 = vmatpush.msra.mxu0 %v2841
    %3950 = vmatpush.msra.mxu0 %v2837
    %3951 = vmatpush.msra.mxu0 %v2833
    %3952 = vmatpush.msra.mxu0 %v2829
    %3953 = vmatpush.msra.mxu0 %v2825
    %3954 = vmatpush.msra.mxu0 %v2821
    %3955 = vmatpush.msra.mxu0 %v2817
    %3956 = vmatpush.msra.mxu0 %v2813
    %3957 = vmatpush.msra.mxu0 %v2809
    %3958 = vmatpush.msra.mxu0 %v2805
    %3959 = vmatpush.msra.mxu0 %v2801
    %3960 = vmatpush.msra.mxu0 %v2797
    %3961 = vmatpush.msra.mxu0 %v2793
    %3962 = vmatmul.f32.gmra.mxu0 %v2713
    %v3963 = vpop.f32.mrf.mxu0
    %v3964 = vadd.f32 %v3935, %v3963
    %3965 = vmatmul.f32.gmra.mxu0 %v2717
    %v3966 = vpop.f32.mrf.mxu0
    %v3967 = vadd.f32 %v3938, %v3966
    %3968 = vmatmul.f32.gmra.mxu0 %v2721
    %v3969 = vpop.f32.mrf.mxu0
    %v3970 = vadd.f32 %v3941, %v3969
    %3971 = vmatmul.f32.gmra.mxu0 %v2725
    %v3972 = vpop.f32.mrf.mxu0
    %v3973 = vadd.f32 %v3944, %v3972
    %3974 = vdwg.mxu0
    %3975 = vmatpush.msra.mxu0 %v2917
    %3976 = vmatpush.msra.mxu0 %v2913
    %3977 = vmatpush.msra.mxu0 %v2909
    %3978 = vmatpush.msra.mxu0 %v2905
    %3979 = vmatpush.msra.mxu0 %v2901
    %3980 = vmatpush.msra.mxu0 %v2897
    %3981 = vmatpush.msra.mxu0 %v2893
    %3982 = vmatpush.msra.mxu0 %v2889
    %3983 = vmatpush.msra.mxu0 %v2885
    %3984 = vmatpush.msra.mxu0 %v2881
    %3985 = vmatpush.msra.mxu0 %v2877
    %3986 = vmatpush.msra.mxu0 %v2873
    %3987 = vmatpush.msra.mxu0 %v2869
    %3988 = vmatpush.msra.mxu0 %v2865
    %3989 = vmatpush.msra.mxu0 %v2861
    %3990 = vmatpush.msra.mxu0 %v2857
    %3991 = vmatmul.f32.gmra.mxu0 %v2714
    %v3992 = vpop.f32.mrf.mxu0
    %v3993 = vadd.f32 %v3964, %v3992
    %3994 = vmatmul.f32.gmra.mxu0 %v2718
    %v3995 = vpop.f32.mrf.mxu0
    %v3996 = vadd.f32 %v3967, %v3995
    %3997 = vmatmul.f32.gmra.mxu0 %v2722
    %v3998 = vpop.f32.mrf.mxu0
    %v3999 = vadd.f32 %v3970, %v3998
    %4000 = vmatmul.f32.gmra.mxu0 %v2726
    %v4001 = vpop.f32.mrf.mxu0
    %v4002 = vadd.f32 %v3973, %v4001
    %4003 = vdwg.mxu0
    %4004 = vmatpush.msra.mxu0 %v2981
    %4005 = vmatpush.msra.mxu0 %v2977
    %4006 = vmatpush.msra.mxu0 %v2973
    %4007 = vmatpush.msra.mxu0 %v2969
    %4008 = vmatpush.msra.mxu0 %v2965
    %4009 = vmatpush.msra.mxu0 %v2961
    %4010 = vmatpush.msra.mxu0 %v2957
    %4011 = vmatpush.msra.mxu0 %v2953
    %4012 = vmatpush.msra.mxu0 %v2949
    %4013 = vmatpush.msra.mxu0 %v2945
    %4014 = vmatpush.msra.mxu0 %v2941
    %4015 = vmatpush.msra.mxu0 %v2937
    %4016 = vmatpush.msra.mxu0 %v2933
    %4017 = vmatpush.msra.mxu0 %v2929
    %4018 = vmatpush.msra.mxu0 %v2925
    %4019 = vmatpush.msra.mxu0 %v2921
    %4020 = vmatmul.f32.gmra.mxu0 %v2715
    %v4021 = vpop.f32.mrf.mxu0
    %v4022 = vadd.f32 %v3993, %v4021
    %4023 = vmatmul.f32.gmra.mxu0 %v2719
    %v4024 = vpop.f32.mrf.mxu0
    %v4025 = vadd.f32 %v3996, %v4024
    %4026 = vmatmul.f32.gmra.mxu0 %v2723
    %v4027 = vpop.f32.mrf.mxu0
    %v4028 = vadd.f32 %v3999, %v4027
    %4029 = vmatmul.f32.gmra.mxu0 %v2727
    %v4030 = vpop.f32.mrf.mxu0
    %v4031 = vadd.f32 %v4002, %v4030
    %4032 = vdwg.mxu0
    %4033 = vmatpush.msra.mxu0 %v2790
    %4034 = vmatpush.msra.mxu0 %v2786
    %4035 = vmatpush.msra.mxu0 %v2782
    %4036 = vmatpush.msra.mxu0 %v2778
    %4037 = vmatpush.msra.mxu0 %v2774
    %4038 = vmatpush.msra.mxu0 %v2770
    %4039 = vmatpush.msra.mxu0 %v2766
    %4040 = vmatpush.msra.mxu0 %v2762
    %4041 = vmatpush.msra.mxu0 %v2758
    %4042 = vmatpush.msra.mxu0 %v2754
    %4043 = vmatpush.msra.mxu0 %v2750
    %4044 = vmatpush.msra.mxu0 %v2746
    %4045 = vmatpush.msra.mxu0 %v2742
    %4046 = vmatpush.msra.mxu0 %v2738
    %4047 = vmatpush.msra.mxu0 %v2734
    %4048 = vmatpush.msra.mxu0 %v2730
    %4049 = vmatmul.f32.gmra.mxu0 %v2712
    %v4050 = vpop.f32.mrf.mxu0
    %v4051 = vadd.f32 %v3674, %v4050
    %4052 = vmatmul.f32.gmra.mxu0 %v2716
    %v4053 = vpop.f32.mrf.mxu0
    %v4054 = vadd.f32 %v3677, %v4053
    %4055 = vmatmul.f32.gmra.mxu0 %v2720
    %v4056 = vpop.f32.mrf.mxu0
    %v4057 = vadd.f32 %v3680, %v4056
    %4058 = vmatmul.f32.gmra.mxu0 %v2724
    %v4059 = vpop.f32.mrf.mxu0
    %v4060 = vadd.f32 %v3683, %v4059
    %4061 = vdwg.mxu0
    %4062 = vmatpush.msra.mxu0 %v2854
    %4063 = vmatpush.msra.mxu0 %v2850
    %4064 = vmatpush.msra.mxu0 %v2846
    %4065 = vmatpush.msra.mxu0 %v2842
    %4066 = vmatpush.msra.mxu0 %v2838
    %4067 = vmatpush.msra.mxu0 %v2834
    %4068 = vmatpush.msra.mxu0 %v2830
    %4069 = vmatpush.msra.mxu0 %v2826
    %4070 = vmatpush.msra.mxu0 %v2822
    %4071 = vmatpush.msra.mxu0 %v2818
    %4072 = vmatpush.msra.mxu0 %v2814
    %4073 = vmatpush.msra.mxu0 %v2810
    %4074 = vmatpush.msra.mxu0 %v2806
    %4075 = vmatpush.msra.mxu0 %v2802
    %4076 = vmatpush.msra.mxu0 %v2798
    %4077 = vmatpush.msra.mxu0 %v2794
    %4078 = vmatmul.f32.gmra.mxu0 %v2713
    %v4079 = vpop.f32.mrf.mxu0
    %v4080 = vadd.f32 %v4051, %v4079
    %4081 = vmatmul.f32.gmra.mxu0 %v2717
    %v4082 = vpop.f32.mrf.mxu0
    %v4083 = vadd.f32 %v4054, %v4082
    %4084 = vmatmul.f32.gmra.mxu0 %v2721
    %v4085 = vpop.f32.mrf.mxu0
    %v4086 = vadd.f32 %v4057, %v4085
    %4087 = vmatmul.f32.gmra.mxu0 %v2725
    %v4088 = vpop.f32.mrf.mxu0
    %v4089 = vadd.f32 %v4060, %v4088
    %4090 = vdwg.mxu0
    %4091 = vmatpush.msra.mxu0 %v2918
    %4092 = vmatpush.msra.mxu0 %v2914
    %4093 = vmatpush.msra.mxu0 %v2910
    %4094 = vmatpush.msra.mxu0 %v2906
    %4095 = vmatpush.msra.mxu0 %v2902
    %4096 = vmatpush.msra.mxu0 %v2898
    %4097 = vmatpush.msra.mxu0 %v2894
    %4098 = vmatpush.msra.mxu0 %v2890
    %4099 = vmatpush.msra.mxu0 %v2886
    %4100 = vmatpush.msra.mxu0 %v2882
    %4101 = vmatpush.msra.mxu0 %v2878
    %4102 = vmatpush.msra.mxu0 %v2874
    %4103 = vmatpush.msra.mxu0 %v2870
    %4104 = vmatpush.msra.mxu0 %v2866
    %4105 = vmatpush.msra.mxu0 %v2862
    %4106 = vmatpush.msra.mxu0 %v2858
    %4107 = vmatmul.f32.gmra.mxu0 %v2714
    %v4108 = vpop.f32.mrf.mxu0
    %v4109 = vadd.f32 %v4080, %v4108
    %4110 = vmatmul.f32.gmra.mxu0 %v2718
    %v4111 = vpop.f32.mrf.mxu0
    %v4112 = vadd.f32 %v4083, %v4111
    %4113 = vmatmul.f32.gmra.mxu0 %v2722
    %v4114 = vpop.f32.mrf.mxu0
    %v4115 = vadd.f32 %v4086, %v4114
    %4116 = vmatmul.f32.gmra.mxu0 %v2726
    %v4117 = vpop.f32.mrf.mxu0
    %v4118 = vadd.f32 %v4089, %v4117
    %4119 = vdwg.mxu0
    %4120 = vmatpush.msra.mxu0 %v2982
    %4121 = vmatpush.msra.mxu0 %v2978
    %4122 = vmatpush.msra.mxu0 %v2974
    %4123 = vmatpush.msra.mxu0 %v2970
    %4124 = vmatpush.msra.mxu0 %v2966
    %4125 = vmatpush.msra.mxu0 %v2962
    %4126 = vmatpush.msra.mxu0 %v2958
    %4127 = vmatpush.msra.mxu0 %v2954
    %4128 = vmatpush.msra.mxu0 %v2950
    %4129 = vmatpush.msra.mxu0 %v2946
    %4130 = vmatpush.msra.mxu0 %v2942
    %4131 = vmatpush.msra.mxu0 %v2938
    %4132 = vmatpush.msra.mxu0 %v2934
    %4133 = vmatpush.msra.mxu0 %v2930
    %4134 = vmatpush.msra.mxu0 %v2926
    %4135 = vmatpush.msra.mxu0 %v2922
    %4136 = vmatmul.f32.gmra.mxu0 %v2715
    %v4137 = vpop.f32.mrf.mxu0
    %v4138 = vadd.f32 %v4109, %v4137
    %4139 = vmatmul.f32.gmra.mxu0 %v2719
    %v4140 = vpop.f32.mrf.mxu0
    %v4141 = vadd.f32 %v4112, %v4140
    %4142 = vmatmul.f32.gmra.mxu0 %v2723
    %v4143 = vpop.f32.mrf.mxu0
    %v4144 = vadd.f32 %v4115, %v4143
    %4145 = vmatmul.f32.gmra.mxu0 %v2727
    %v4146 = vpop.f32.mrf.mxu0
    %v4147 = vadd.f32 %v4118, %v4146
    %4148 = vdwg.mxu0
    %4149 = vmatpush.msra.mxu0 %v2791
    %4150 = vmatpush.msra.mxu0 %v2787
    %4151 = vmatpush.msra.mxu0 %v2783
    %4152 = vmatpush.msra.mxu0 %v2779
    %4153 = vmatpush.msra.mxu0 %v2775
    %4154 = vmatpush.msra.mxu0 %v2771
    %4155 = vmatpush.msra.mxu0 %v2767
    %4156 = vmatpush.msra.mxu0 %v2763
    %4157 = vmatpush.msra.mxu0 %v2759
    %4158 = vmatpush.msra.mxu0 %v2755
    %4159 = vmatpush.msra.mxu0 %v2751
    %4160 = vmatpush.msra.mxu0 %v2747
    %4161 = vmatpush.msra.mxu0 %v2743
    %4162 = vmatpush.msra.mxu0 %v2739
    %4163 = vmatpush.msra.mxu0 %v2735
    %4164 = vmatpush.msra.mxu0 %v2731
    %4165 = vmatmul.f32.gmra.mxu0 %v2712
    %v4166 = vpop.f32.mrf.mxu0
    %v4167 = vadd.f32 %v3790, %v4166
    %4168 = vmatmul.f32.gmra.mxu0 %v2716
    %v4169 = vpop.f32.mrf.mxu0
    %v4170 = vadd.f32 %v3793, %v4169
    %4171 = vmatmul.f32.gmra.mxu0 %v2720
    %v4172 = vpop.f32.mrf.mxu0
    %v4173 = vadd.f32 %v3796, %v4172
    %4174 = vmatmul.f32.gmra.mxu0 %v2724
    %v4175 = vpop.f32.mrf.mxu0
    %v4176 = vadd.f32 %v3799, %v4175
    %4177 = vdwg.mxu0
    %4178 = vmatpush.msra.mxu0 %v2855
    %4179 = vmatpush.msra.mxu0 %v2851
    %4180 = vmatpush.msra.mxu0 %v2847
    %4181 = vmatpush.msra.mxu0 %v2843
    %4182 = vmatpush.msra.mxu0 %v2839
    %4183 = vmatpush.msra.mxu0 %v2835
    %4184 = vmatpush.msra.mxu0 %v2831
    %4185 = vmatpush.msra.mxu0 %v2827
    %4186 = vmatpush.msra.mxu0 %v2823
    %4187 = vmatpush.msra.mxu0 %v2819
    %4188 = vmatpush.msra.mxu0 %v2815
    %4189 = vmatpush.msra.mxu0 %v2811
    %4190 = vmatpush.msra.mxu0 %v2807
    %4191 = vmatpush.msra.mxu0 %v2803
    %4192 = vmatpush.msra.mxu0 %v2799
    %4193 = vmatpush.msra.mxu0 %v2795
    %4194 = vmatmul.f32.gmra.mxu0 %v2713
    %v4195 = vpop.f32.mrf.mxu0
    %v4196 = vadd.f32 %v4167, %v4195
    %4197 = vmatmul.f32.gmra.mxu0 %v2717
    %v4198 = vpop.f32.mrf.mxu0
    %v4199 = vadd.f32 %v4170, %v4198
    %4200 = vmatmul.f32.gmra.mxu0 %v2721
    %v4201 = vpop.f32.mrf.mxu0
    %v4202 = vadd.f32 %v4173, %v4201
    %4203 = vmatmul.f32.gmra.mxu0 %v2725
    %v4204 = vpop.f32.mrf.mxu0
    %v4205 = vadd.f32 %v4176, %v4204
    %4206 = vdwg.mxu0
    %4207 = vmatpush.msra.mxu0 %v2919
    %4208 = vmatpush.msra.mxu0 %v2915
    %4209 = vmatpush.msra.mxu0 %v2911
    %4210 = vmatpush.msra.mxu0 %v2907
    %4211 = vmatpush.msra.mxu0 %v2903
    %4212 = vmatpush.msra.mxu0 %v2899
    %4213 = vmatpush.msra.mxu0 %v2895
    %4214 = vmatpush.msra.mxu0 %v2891
    %4215 = vmatpush.msra.mxu0 %v2887
    %4216 = vmatpush.msra.mxu0 %v2883
    %4217 = vmatpush.msra.mxu0 %v2879
    %4218 = vmatpush.msra.mxu0 %v2875
    %4219 = vmatpush.msra.mxu0 %v2871
    %4220 = vmatpush.msra.mxu0 %v2867
    %4221 = vmatpush.msra.mxu0 %v2863
    %4222 = vmatpush.msra.mxu0 %v2859
    %4223 = vmatmul.f32.gmra.mxu0 %v2714
    %v4224 = vpop.f32.mrf.mxu0
    %v4225 = vadd.f32 %v4196, %v4224
    %4226 = vmatmul.f32.gmra.mxu0 %v2718
    %v4227 = vpop.f32.mrf.mxu0
    %v4228 = vadd.f32 %v4199, %v4227
    %4229 = vmatmul.f32.gmra.mxu0 %v2722
    %v4230 = vpop.f32.mrf.mxu0
    %v4231 = vadd.f32 %v4202, %v4230
    %4232 = vmatmul.f32.gmra.mxu0 %v2726
    %v4233 = vpop.f32.mrf.mxu0
    %v4234 = vadd.f32 %v4205, %v4233
    %4235 = vdwg.mxu0
    %4236 = vmatpush.msra.mxu0 %v2983
    %4237 = vmatpush.msra.mxu0 %v2979
    %4238 = vmatpush.msra.mxu0 %v2975
    %4239 = vmatpush.msra.mxu0 %v2971
    %4240 = vmatpush.msra.mxu0 %v2967
    %4241 = vmatpush.msra.mxu0 %v2963
    %4242 = vmatpush.msra.mxu0 %v2959
    %4243 = vmatpush.msra.mxu0 %v2955
    %4244 = vmatpush.msra.mxu0 %v2951
    %4245 = vmatpush.msra.mxu0 %v2947
    %4246 = vmatpush.msra.mxu0 %v2943
    %4247 = vmatpush.msra.mxu0 %v2939
    %4248 = vmatpush.msra.mxu0 %v2935
    %4249 = vmatpush.msra.mxu0 %v2931
    %4250 = vmatpush.msra.mxu0 %v2927
    %4251 = vmatpush.msra.mxu0 %v2923
    %4252 = vmatmul.f32.gmra.mxu0 %v2715
    %v4253 = vpop.f32.mrf.mxu0
    %v4254 = vadd.f32 %v4225, %v4253
    %4255 = vmatmul.f32.gmra.mxu0 %v2719
    %v4256 = vpop.f32.mrf.mxu0
    %v4257 = vadd.f32 %v4228, %v4256
    %4258 = vmatmul.f32.gmra.mxu0 %v2723
    %v4259 = vpop.f32.mrf.mxu0
    %v4260 = vadd.f32 %v4231, %v4259
    %4261 = vmatmul.f32.gmra.mxu0 %v2727
    %v4262 = vpop.f32.mrf.mxu0
    %v4263 = vadd.f32 %v4234, %v4262
    %4264 = vdwg.mxu0
    %v4265 = vld [vmem:[#allocation2] sm:$0xfc]
    %v4266 = vld [vmem:[#allocation2 + $0x8] sm:$0xfc]
    %v4267 = vld [vmem:[#allocation2 + $0x10] sm:$0xfc]
    %v4268 = vld [vmem:[#allocation2 + $0x18] sm:$0xfc]
    %v4269 = vld [vmem:[#allocation2 + $0x40] sm:$0x3]
    %v4270 = vld [vmem:[#allocation2 + $0x48] sm:$0x3]
    %v4271 = vld [vmem:[#allocation2 + $0x50] sm:$0x3]
    %v4272 = vld [vmem:[#allocation2 + $0x58] sm:$0x3]
    %v4273 = vld [vmem:[#allocation2 + $0x60] sm:$0xfc]
    %v4274 = vld [vmem:[#allocation2 + $0x68] sm:$0xfc]
    %v4275 = vld [vmem:[#allocation2 + $0x70] sm:$0xfc]
    %v4276 = vld [vmem:[#allocation2 + $0x78] sm:$0xfc]
    %v4277 = vld [vmem:[#allocation2 + $0xa0] sm:$0x3]
    %v4278 = vld [vmem:[#allocation2 + $0xa8] sm:$0x3]
    %v4279 = vld [vmem:[#allocation2 + $0xb0] sm:$0x3]
    %v4280 = vld [vmem:[#allocation2 + $0xb8] sm:$0x3]
    %v4297 = vrot.slane %v4265, 2
    %v4298 = vrot.slane %v2716, 2
    %v4299 = vsel %vm1788, %v4297, %v4298
    %v4300 = vrot.slane %v4266, 2
    %v4301 = vrot.slane %v2717, 2
    %v4302 = vsel %vm1788, %v4300, %v4301
    %v4303 = vrot.slane %v4267, 2
    %v4304 = vrot.slane %v2718, 2
    %v4305 = vsel %vm1788, %v4303, %v4304
    %v4306 = vrot.slane %v4268, 2
    %v4307 = vrot.slane %v2719, 2
    %v4308 = vsel %vm1788, %v4306, %v4307
    %v4309 = vrot.slane %v4269, 2
    %v4310 = vsel %vm1788, %v4298, %v4309
    %v4311 = vrot.slane %v4270, 2
    %v4312 = vsel %vm1788, %v4301, %v4311
    %v4313 = vrot.slane %v4271, 2
    %v4314 = vsel %vm1788, %v4304, %v4313
    %v4315 = vrot.slane %v4272, 2
    %v4316 = vsel %vm1788, %v4307, %v4315
    %v4317 = vrot.slane %v4273, 2
    %v4318 = vrot.slane %v2724, 2
    %v4319 = vsel %vm1788, %v4317, %v4318
    %v4320 = vrot.slane %v4274, 2
    %v4321 = vrot.slane %v2725, 2
    %v4322 = vsel %vm1788, %v4320, %v4321
    %v4323 = vrot.slane %v4275, 2
    %v4324 = vrot.slane %v2726, 2
    %v4325 = vsel %vm1788, %v4323, %v4324
    %v4326 = vrot.slane %v4276, 2
    %v4327 = vrot.slane %v2727, 2
    %v4328 = vsel %vm1788, %v4326, %v4327
    %v4329 = vrot.slane %v4277, 2
    %v4330 = vsel %vm1788, %v4318, %v4329
    %v4331 = vrot.slane %v4278, 2
    %v4332 = vsel %vm1788, %v4321, %v4331
    %v4333 = vrot.slane %v4279, 2
    %v4334 = vsel %vm1788, %v4324, %v4333
    %v4335 = vrot.slane %v4280, 2
    %v4336 = vsel %vm1788, %v4327, %v4335
    %s4353 = scalar_lea.vmem [#allocation6], 4096
    %v4354 = vld [vmem:[%s4353] sm:$0xff]
    %v4355 = vld [vmem:[%s4353 + $0x8] sm:$0xff]
    %v4356 = vld [vmem:[%s4353 + $0x10] sm:$0xff]
    %v4357 = vld [vmem:[%s4353 + $0x18] sm:$0xff]
    %v4358 = vld [vmem:[%s4353 + $0x20] sm:$0xff]
    %v4359 = vld [vmem:[%s4353 + $0x28] sm:$0xff]
    %v4360 = vld [vmem:[%s4353 + $0x30] sm:$0xff]
    %v4361 = vld [vmem:[%s4353 + $0x38] sm:$0xff]
    %v4362 = vld [vmem:[%s4353 + $0x40] sm:$0xff]
    %v4363 = vld [vmem:[%s4353 + $0x48] sm:$0xff]
    %v4364 = vld [vmem:[%s4353 + $0x50] sm:$0xff]
    %v4365 = vld [vmem:[%s4353 + $0x58] sm:$0xff]
    %v4366 = vld [vmem:[%s4353 + $0x60] sm:$0xff]
    %v4367 = vld [vmem:[%s4353 + $0x68] sm:$0xff]
    %v4368 = vld [vmem:[%s4353 + $0x70] sm:$0xff]
    %v4369 = vld [vmem:[%s4353 + $0x78] sm:$0xff]
    %v4370 = vld [vmem:[%s4353 + $0x80] sm:$0xff]
    %v4371 = vld [vmem:[%s4353 + $0x88] sm:$0xff]
    %v4372 = vld [vmem:[%s4353 + $0x90] sm:$0xff]
    %v4373 = vld [vmem:[%s4353 + $0x98] sm:$0xff]
    %v4374 = vld [vmem:[%s4353 + $0xa0] sm:$0xff]
    %v4375 = vld [vmem:[%s4353 + $0xa8] sm:$0xff]
    %v4376 = vld [vmem:[%s4353 + $0xb0] sm:$0xff]
    %v4377 = vld [vmem:[%s4353 + $0xb8] sm:$0xff]
    %v4378 = vld [vmem:[%s4353 + $0xc0] sm:$0xff]
    %v4379 = vld [vmem:[%s4353 + $0xc8] sm:$0xff]
    %v4380 = vld [vmem:[%s4353 + $0xd0] sm:$0xff]
    %v4381 = vld [vmem:[%s4353 + $0xd8] sm:$0xff]
    %v4382 = vld [vmem:[%s4353 + $0xe0] sm:$0xff]
    %v4383 = vld [vmem:[%s4353 + $0xe8] sm:$0xff]
    %v4384 = vld [vmem:[%s4353 + $0xf0] sm:$0xff]
    %v4385 = vld [vmem:[%s4353 + $0xf8] sm:$0xff]
    %v4386 = vld [vmem:[%s4353 + $0x100] sm:$0xff]
    %v4387 = vld [vmem:[%s4353 + $0x108] sm:$0xff]
    %v4388 = vld [vmem:[%s4353 + $0x110] sm:$0xff]
    %v4389 = vld [vmem:[%s4353 + $0x118] sm:$0xff]
    %v4390 = vld [vmem:[%s4353 + $0x120] sm:$0xff]
    %v4391 = vld [vmem:[%s4353 + $0x128] sm:$0xff]
    %v4392 = vld [vmem:[%s4353 + $0x130] sm:$0xff]
    %v4393 = vld [vmem:[%s4353 + $0x138] sm:$0xff]
    %v4394 = vld [vmem:[%s4353 + $0x140] sm:$0xff]
    %v4395 = vld [vmem:[%s4353 + $0x148] sm:$0xff]
    %v4396 = vld [vmem:[%s4353 + $0x150] sm:$0xff]
    %v4397 = vld [vmem:[%s4353 + $0x158] sm:$0xff]
    %v4398 = vld [vmem:[%s4353 + $0x160] sm:$0xff]
    %v4399 = vld [vmem:[%s4353 + $0x168] sm:$0xff]
    %v4400 = vld [vmem:[%s4353 + $0x170] sm:$0xff]
    %v4401 = vld [vmem:[%s4353 + $0x178] sm:$0xff]
    %v4402 = vld [vmem:[%s4353 + $0x180] sm:$0xff]
    %v4403 = vld [vmem:[%s4353 + $0x188] sm:$0xff]
    %v4404 = vld [vmem:[%s4353 + $0x190] sm:$0xff]
    %v4405 = vld [vmem:[%s4353 + $0x198] sm:$0xff]
    %v4406 = vld [vmem:[%s4353 + $0x1a0] sm:$0xff]
    %v4407 = vld [vmem:[%s4353 + $0x1a8] sm:$0xff]
    %v4408 = vld [vmem:[%s4353 + $0x1b0] sm:$0xff]
    %v4409 = vld [vmem:[%s4353 + $0x1b8] sm:$0xff]
    %v4410 = vld [vmem:[%s4353 + $0x1c0] sm:$0xff]
    %v4411 = vld [vmem:[%s4353 + $0x1c8] sm:$0xff]
    %v4412 = vld [vmem:[%s4353 + $0x1d0] sm:$0xff]
    %v4413 = vld [vmem:[%s4353 + $0x1d8] sm:$0xff]
    %v4414 = vld [vmem:[%s4353 + $0x1e0] sm:$0xff]
    %v4415 = vld [vmem:[%s4353 + $0x1e8] sm:$0xff]
    %v4416 = vld [vmem:[%s4353 + $0x1f0] sm:$0xff]
    %v4417 = vld [vmem:[%s4353 + $0x1f8] sm:$0xff]
    %v4418 = vld [vmem:[%s4353 + $0x200] sm:$0xff]
    %v4419 = vld [vmem:[%s4353 + $0x208] sm:$0xff]
    %v4420 = vld [vmem:[%s4353 + $0x210] sm:$0xff]
    %v4421 = vld [vmem:[%s4353 + $0x218] sm:$0xff]
    %v4422 = vld [vmem:[%s4353 + $0x220] sm:$0xff]
    %v4423 = vld [vmem:[%s4353 + $0x228] sm:$0xff]
    %v4424 = vld [vmem:[%s4353 + $0x230] sm:$0xff]
    %v4425 = vld [vmem:[%s4353 + $0x238] sm:$0xff]
    %v4426 = vld [vmem:[%s4353 + $0x240] sm:$0xff]
    %v4427 = vld [vmem:[%s4353 + $0x248] sm:$0xff]
    %v4428 = vld [vmem:[%s4353 + $0x250] sm:$0xff]
    %v4429 = vld [vmem:[%s4353 + $0x258] sm:$0xff]
    %v4430 = vld [vmem:[%s4353 + $0x260] sm:$0xff]
    %v4431 = vld [vmem:[%s4353 + $0x268] sm:$0xff]
    %v4432 = vld [vmem:[%s4353 + $0x270] sm:$0xff]
    %v4433 = vld [vmem:[%s4353 + $0x278] sm:$0xff]
    %v4434 = vld [vmem:[%s4353 + $0x280] sm:$0xff]
    %v4435 = vld [vmem:[%s4353 + $0x288] sm:$0xff]
    %v4436 = vld [vmem:[%s4353 + $0x290] sm:$0xff]
    %v4437 = vld [vmem:[%s4353 + $0x298] sm:$0xff]
    %v4438 = vld [vmem:[%s4353 + $0x2a0] sm:$0xff]
    %v4439 = vld [vmem:[%s4353 + $0x2a8] sm:$0xff]
    %v4440 = vld [vmem:[%s4353 + $0x2b0] sm:$0xff]
    %v4441 = vld [vmem:[%s4353 + $0x2b8] sm:$0xff]
    %v4442 = vld [vmem:[%s4353 + $0x2c0] sm:$0xff]
    %v4443 = vld [vmem:[%s4353 + $0x2c8] sm:$0xff]
    %v4444 = vld [vmem:[%s4353 + $0x2d0] sm:$0xff]
    %v4445 = vld [vmem:[%s4353 + $0x2d8] sm:$0xff]
    %v4446 = vld [vmem:[%s4353 + $0x2e0] sm:$0xff]
    %v4447 = vld [vmem:[%s4353 + $0x2e8] sm:$0xff]
    %v4448 = vld [vmem:[%s4353 + $0x2f0] sm:$0xff]
    %v4449 = vld [vmem:[%s4353 + $0x2f8] sm:$0xff]
    %v4450 = vld [vmem:[%s4353 + $0x300] sm:$0xff]
    %v4451 = vld [vmem:[%s4353 + $0x308] sm:$0xff]
    %v4452 = vld [vmem:[%s4353 + $0x310] sm:$0xff]
    %v4453 = vld [vmem:[%s4353 + $0x318] sm:$0xff]
    %v4454 = vld [vmem:[%s4353 + $0x320] sm:$0xff]
    %v4455 = vld [vmem:[%s4353 + $0x328] sm:$0xff]
    %v4456 = vld [vmem:[%s4353 + $0x330] sm:$0xff]
    %v4457 = vld [vmem:[%s4353 + $0x338] sm:$0xff]
    %v4458 = vld [vmem:[%s4353 + $0x340] sm:$0xff]
    %v4459 = vld [vmem:[%s4353 + $0x348] sm:$0xff]
    %v4460 = vld [vmem:[%s4353 + $0x350] sm:$0xff]
    %v4461 = vld [vmem:[%s4353 + $0x358] sm:$0xff]
    %v4462 = vld [vmem:[%s4353 + $0x360] sm:$0xff]
    %v4463 = vld [vmem:[%s4353 + $0x368] sm:$0xff]
    %v4464 = vld [vmem:[%s4353 + $0x370] sm:$0xff]
    %v4465 = vld [vmem:[%s4353 + $0x378] sm:$0xff]
    %v4466 = vld [vmem:[%s4353 + $0x380] sm:$0xff]
    %v4467 = vld [vmem:[%s4353 + $0x388] sm:$0xff]
    %v4468 = vld [vmem:[%s4353 + $0x390] sm:$0xff]
    %v4469 = vld [vmem:[%s4353 + $0x398] sm:$0xff]
    %v4470 = vld [vmem:[%s4353 + $0x3a0] sm:$0xff]
    %v4471 = vld [vmem:[%s4353 + $0x3a8] sm:$0xff]
    %v4472 = vld [vmem:[%s4353 + $0x3b0] sm:$0xff]
    %v4473 = vld [vmem:[%s4353 + $0x3b8] sm:$0xff]
    %v4474 = vld [vmem:[%s4353 + $0x3c0] sm:$0xff]
    %v4475 = vld [vmem:[%s4353 + $0x3c8] sm:$0xff]
    %v4476 = vld [vmem:[%s4353 + $0x3d0] sm:$0xff]
    %v4477 = vld [vmem:[%s4353 + $0x3d8] sm:$0xff]
    %v4478 = vld [vmem:[%s4353 + $0x3e0] sm:$0xff]
    %v4479 = vld [vmem:[%s4353 + $0x3e8] sm:$0xff]
    %v4480 = vld [vmem:[%s4353 + $0x3f0] sm:$0xff]
    %v4481 = vld [vmem:[%s4353 + $0x3f8] sm:$0xff]
    %v4482 = vld [vmem:[%s4353 + $0x400] sm:$0xff]
    %v4483 = vld [vmem:[%s4353 + $0x408] sm:$0xff]
    %v4484 = vld [vmem:[%s4353 + $0x410] sm:$0xff]
    %v4485 = vld [vmem:[%s4353 + $0x418] sm:$0xff]
    %v4486 = vld [vmem:[%s4353 + $0x420] sm:$0xff]
    %v4487 = vld [vmem:[%s4353 + $0x428] sm:$0xff]
    %v4488 = vld [vmem:[%s4353 + $0x430] sm:$0xff]
    %v4489 = vld [vmem:[%s4353 + $0x438] sm:$0xff]
    %v4490 = vld [vmem:[%s4353 + $0x440] sm:$0xff]
    %v4491 = vld [vmem:[%s4353 + $0x448] sm:$0xff]
    %v4492 = vld [vmem:[%s4353 + $0x450] sm:$0xff]
    %v4493 = vld [vmem:[%s4353 + $0x458] sm:$0xff]
    %v4494 = vld [vmem:[%s4353 + $0x460] sm:$0xff]
    %v4495 = vld [vmem:[%s4353 + $0x468] sm:$0xff]
    %v4496 = vld [vmem:[%s4353 + $0x470] sm:$0xff]
    %v4497 = vld [vmem:[%s4353 + $0x478] sm:$0xff]
    %v4498 = vld [vmem:[%s4353 + $0x480] sm:$0xff]
    %v4499 = vld [vmem:[%s4353 + $0x488] sm:$0xff]
    %v4500 = vld [vmem:[%s4353 + $0x490] sm:$0xff]
    %v4501 = vld [vmem:[%s4353 + $0x498] sm:$0xff]
    %v4502 = vld [vmem:[%s4353 + $0x4a0] sm:$0xff]
    %v4503 = vld [vmem:[%s4353 + $0x4a8] sm:$0xff]
    %v4504 = vld [vmem:[%s4353 + $0x4b0] sm:$0xff]
    %v4505 = vld [vmem:[%s4353 + $0x4b8] sm:$0xff]
    %v4506 = vld [vmem:[%s4353 + $0x4c0] sm:$0xff]
    %v4507 = vld [vmem:[%s4353 + $0x4c8] sm:$0xff]
    %v4508 = vld [vmem:[%s4353 + $0x4d0] sm:$0xff]
    %v4509 = vld [vmem:[%s4353 + $0x4d8] sm:$0xff]
    %v4510 = vld [vmem:[%s4353 + $0x4e0] sm:$0xff]
    %v4511 = vld [vmem:[%s4353 + $0x4e8] sm:$0xff]
    %v4512 = vld [vmem:[%s4353 + $0x4f0] sm:$0xff]
    %v4513 = vld [vmem:[%s4353 + $0x4f8] sm:$0xff]
    %v4514 = vld [vmem:[%s4353 + $0x500] sm:$0xff]
    %v4515 = vld [vmem:[%s4353 + $0x508] sm:$0xff]
    %v4516 = vld [vmem:[%s4353 + $0x510] sm:$0xff]
    %v4517 = vld [vmem:[%s4353 + $0x518] sm:$0xff]
    %v4518 = vld [vmem:[%s4353 + $0x520] sm:$0xff]
    %v4519 = vld [vmem:[%s4353 + $0x528] sm:$0xff]
    %v4520 = vld [vmem:[%s4353 + $0x530] sm:$0xff]
    %v4521 = vld [vmem:[%s4353 + $0x538] sm:$0xff]
    %v4522 = vld [vmem:[%s4353 + $0x540] sm:$0xff]
    %v4523 = vld [vmem:[%s4353 + $0x548] sm:$0xff]
    %v4524 = vld [vmem:[%s4353 + $0x550] sm:$0xff]
    %v4525 = vld [vmem:[%s4353 + $0x558] sm:$0xff]
    %v4526 = vld [vmem:[%s4353 + $0x560] sm:$0xff]
    %v4527 = vld [vmem:[%s4353 + $0x568] sm:$0xff]
    %v4528 = vld [vmem:[%s4353 + $0x570] sm:$0xff]
    %v4529 = vld [vmem:[%s4353 + $0x578] sm:$0xff]
    %v4530 = vld [vmem:[%s4353 + $0x580] sm:$0xff]
    %v4531 = vld [vmem:[%s4353 + $0x588] sm:$0xff]
    %v4532 = vld [vmem:[%s4353 + $0x590] sm:$0xff]
    %v4533 = vld [vmem:[%s4353 + $0x598] sm:$0xff]
    %v4534 = vld [vmem:[%s4353 + $0x5a0] sm:$0xff]
    %v4535 = vld [vmem:[%s4353 + $0x5a8] sm:$0xff]
    %v4536 = vld [vmem:[%s4353 + $0x5b0] sm:$0xff]
    %v4537 = vld [vmem:[%s4353 + $0x5b8] sm:$0xff]
    %v4538 = vld [vmem:[%s4353 + $0x5c0] sm:$0xff]
    %v4539 = vld [vmem:[%s4353 + $0x5c8] sm:$0xff]
    %v4540 = vld [vmem:[%s4353 + $0x5d0] sm:$0xff]
    %v4541 = vld [vmem:[%s4353 + $0x5d8] sm:$0xff]
    %v4542 = vld [vmem:[%s4353 + $0x5e0] sm:$0xff]
    %v4543 = vld [vmem:[%s4353 + $0x5e8] sm:$0xff]
    %v4544 = vld [vmem:[%s4353 + $0x5f0] sm:$0xff]
    %v4545 = vld [vmem:[%s4353 + $0x5f8] sm:$0xff]
    %v4546 = vld [vmem:[%s4353 + $0x600] sm:$0xff]
    %v4547 = vld [vmem:[%s4353 + $0x608] sm:$0xff]
    %v4548 = vld [vmem:[%s4353 + $0x610] sm:$0xff]
    %v4549 = vld [vmem:[%s4353 + $0x618] sm:$0xff]
    %v4550 = vld [vmem:[%s4353 + $0x620] sm:$0xff]
    %v4551 = vld [vmem:[%s4353 + $0x628] sm:$0xff]
    %v4552 = vld [vmem:[%s4353 + $0x630] sm:$0xff]
    %v4553 = vld [vmem:[%s4353 + $0x638] sm:$0xff]
    %v4554 = vld [vmem:[%s4353 + $0x640] sm:$0xff]
    %v4555 = vld [vmem:[%s4353 + $0x648] sm:$0xff]
    %v4556 = vld [vmem:[%s4353 + $0x650] sm:$0xff]
    %v4557 = vld [vmem:[%s4353 + $0x658] sm:$0xff]
    %v4558 = vld [vmem:[%s4353 + $0x660] sm:$0xff]
    %v4559 = vld [vmem:[%s4353 + $0x668] sm:$0xff]
    %v4560 = vld [vmem:[%s4353 + $0x670] sm:$0xff]
    %v4561 = vld [vmem:[%s4353 + $0x678] sm:$0xff]
    %v4562 = vld [vmem:[%s4353 + $0x680] sm:$0xff]
    %v4563 = vld [vmem:[%s4353 + $0x688] sm:$0xff]
    %v4564 = vld [vmem:[%s4353 + $0x690] sm:$0xff]
    %v4565 = vld [vmem:[%s4353 + $0x698] sm:$0xff]
    %v4566 = vld [vmem:[%s4353 + $0x6a0] sm:$0xff]
    %v4567 = vld [vmem:[%s4353 + $0x6a8] sm:$0xff]
    %v4568 = vld [vmem:[%s4353 + $0x6b0] sm:$0xff]
    %v4569 = vld [vmem:[%s4353 + $0x6b8] sm:$0xff]
    %v4570 = vld [vmem:[%s4353 + $0x6c0] sm:$0xff]
    %v4571 = vld [vmem:[%s4353 + $0x6c8] sm:$0xff]
    %v4572 = vld [vmem:[%s4353 + $0x6d0] sm:$0xff]
    %v4573 = vld [vmem:[%s4353 + $0x6d8] sm:$0xff]
    %v4574 = vld [vmem:[%s4353 + $0x6e0] sm:$0xff]
    %v4575 = vld [vmem:[%s4353 + $0x6e8] sm:$0xff]
    %v4576 = vld [vmem:[%s4353 + $0x6f0] sm:$0xff]
    %v4577 = vld [vmem:[%s4353 + $0x6f8] sm:$0xff]
    %v4578 = vld [vmem:[%s4353 + $0x700] sm:$0xff]
    %v4579 = vld [vmem:[%s4353 + $0x708] sm:$0xff]
    %v4580 = vld [vmem:[%s4353 + $0x710] sm:$0xff]
    %v4581 = vld [vmem:[%s4353 + $0x718] sm:$0xff]
    %v4582 = vld [vmem:[%s4353 + $0x720] sm:$0xff]
    %v4583 = vld [vmem:[%s4353 + $0x728] sm:$0xff]
    %v4584 = vld [vmem:[%s4353 + $0x730] sm:$0xff]
    %v4585 = vld [vmem:[%s4353 + $0x738] sm:$0xff]
    %v4586 = vld [vmem:[%s4353 + $0x740] sm:$0xff]
    %v4587 = vld [vmem:[%s4353 + $0x748] sm:$0xff]
    %v4588 = vld [vmem:[%s4353 + $0x750] sm:$0xff]
    %v4589 = vld [vmem:[%s4353 + $0x758] sm:$0xff]
    %v4590 = vld [vmem:[%s4353 + $0x760] sm:$0xff]
    %v4591 = vld [vmem:[%s4353 + $0x768] sm:$0xff]
    %v4592 = vld [vmem:[%s4353 + $0x770] sm:$0xff]
    %v4593 = vld [vmem:[%s4353 + $0x778] sm:$0xff]
    %v4594 = vld [vmem:[%s4353 + $0x780] sm:$0xff]
    %v4595 = vld [vmem:[%s4353 + $0x788] sm:$0xff]
    %v4596 = vld [vmem:[%s4353 + $0x790] sm:$0xff]
    %v4597 = vld [vmem:[%s4353 + $0x798] sm:$0xff]
    %v4598 = vld [vmem:[%s4353 + $0x7a0] sm:$0xff]
    %v4599 = vld [vmem:[%s4353 + $0x7a8] sm:$0xff]
    %v4600 = vld [vmem:[%s4353 + $0x7b0] sm:$0xff]
    %v4601 = vld [vmem:[%s4353 + $0x7b8] sm:$0xff]
    %v4602 = vld [vmem:[%s4353 + $0x7c0] sm:$0xff]
    %v4603 = vld [vmem:[%s4353 + $0x7c8] sm:$0xff]
    %v4604 = vld [vmem:[%s4353 + $0x7d0] sm:$0xff]
    %v4605 = vld [vmem:[%s4353 + $0x7d8] sm:$0xff]
    %v4606 = vld [vmem:[%s4353 + $0x7e0] sm:$0xff]
    %v4607 = vld [vmem:[%s4353 + $0x7e8] sm:$0xff]
    %v4608 = vld [vmem:[%s4353 + $0x7f0] sm:$0xff]
    %v4609 = vld [vmem:[%s4353 + $0x7f8] sm:$0xff]
    %4610 = vmatpush.msra.mxu0 %v4414
    %4611 = vmatpush.msra.mxu0 %v4410
    %4612 = vmatpush.msra.mxu0 %v4406
    %4613 = vmatpush.msra.mxu0 %v4402
    %4614 = vmatpush.msra.mxu0 %v4398
    %4615 = vmatpush.msra.mxu0 %v4394
    %4616 = vmatpush.msra.mxu0 %v4390
    %4617 = vmatpush.msra.mxu0 %v4386
    %4618 = vmatpush.msra.mxu0 %v4382
    %4619 = vmatpush.msra.mxu0 %v4378
    %4620 = vmatpush.msra.mxu0 %v4374
    %4621 = vmatpush.msra.mxu0 %v4370
    %4622 = vmatpush.msra.mxu0 %v4366
    %4623 = vmatpush.msra.mxu0 %v4362
    %4624 = vmatpush.msra.mxu0 %v4358
    %4625 = vmatpush.msra.mxu0 %v4354
    %4626 = vmatmul.f32.gmra.mxu0 %v4299
    %v4627 = vpop.f32.mrf.mxu0
    %v4628 = vadd.f32 0.0, %v4627
    %4629 = vmatmul.f32.gmra.mxu0 %v4310
    %v4630 = vpop.f32.mrf.mxu0
    %v4631 = vadd.f32 0.0, %v4630
    %4632 = vmatmul.f32.gmra.mxu0 %v4319
    %v4633 = vpop.f32.mrf.mxu0
    %v4634 = vadd.f32 0.0, %v4633
    %4635 = vmatmul.f32.gmra.mxu0 %v4330
    %v4636 = vpop.f32.mrf.mxu0
    %v4637 = vadd.f32 0.0, %v4636
    %4638 = vdwg.mxu0
    %4639 = vmatpush.msra.mxu0 %v4478
    %4640 = vmatpush.msra.mxu0 %v4474
    %4641 = vmatpush.msra.mxu0 %v4470
    %4642 = vmatpush.msra.mxu0 %v4466
    %4643 = vmatpush.msra.mxu0 %v4462
    %4644 = vmatpush.msra.mxu0 %v4458
    %4645 = vmatpush.msra.mxu0 %v4454
    %4646 = vmatpush.msra.mxu0 %v4450
    %4647 = vmatpush.msra.mxu0 %v4446
    %4648 = vmatpush.msra.mxu0 %v4442
    %4649 = vmatpush.msra.mxu0 %v4438
    %4650 = vmatpush.msra.mxu0 %v4434
    %4651 = vmatpush.msra.mxu0 %v4430
    %4652 = vmatpush.msra.mxu0 %v4426
    %4653 = vmatpush.msra.mxu0 %v4422
    %4654 = vmatpush.msra.mxu0 %v4418
    %4655 = vmatmul.f32.gmra.mxu0 %v4302
    %v4656 = vpop.f32.mrf.mxu0
    %v4657 = vadd.f32 %v4628, %v4656
    %4658 = vmatmul.f32.gmra.mxu0 %v4312
    %v4659 = vpop.f32.mrf.mxu0
    %v4660 = vadd.f32 %v4631, %v4659
    %4661 = vmatmul.f32.gmra.mxu0 %v4322
    %v4662 = vpop.f32.mrf.mxu0
    %v4663 = vadd.f32 %v4634, %v4662
    %4664 = vmatmul.f32.gmra.mxu0 %v4332
    %v4665 = vpop.f32.mrf.mxu0
    %v4666 = vadd.f32 %v4637, %v4665
    %4667 = vdwg.mxu0
    %4668 = vmatpush.msra.mxu0 %v4542
    %4669 = vmatpush.msra.mxu0 %v4538
    %4670 = vmatpush.msra.mxu0 %v4534
    %4671 = vmatpush.msra.mxu0 %v4530
    %4672 = vmatpush.msra.mxu0 %v4526
    %4673 = vmatpush.msra.mxu0 %v4522
    %4674 = vmatpush.msra.mxu0 %v4518
    %4675 = vmatpush.msra.mxu0 %v4514
    %4676 = vmatpush.msra.mxu0 %v4510
    %4677 = vmatpush.msra.mxu0 %v4506
    %4678 = vmatpush.msra.mxu0 %v4502
    %4679 = vmatpush.msra.mxu0 %v4498
    %4680 = vmatpush.msra.mxu0 %v4494
    %4681 = vmatpush.msra.mxu0 %v4490
    %4682 = vmatpush.msra.mxu0 %v4486
    %4683 = vmatpush.msra.mxu0 %v4482
    %4684 = vmatmul.f32.gmra.mxu0 %v4305
    %v4685 = vpop.f32.mrf.mxu0
    %v4686 = vadd.f32 %v4657, %v4685
    %4687 = vmatmul.f32.gmra.mxu0 %v4314
    %v4688 = vpop.f32.mrf.mxu0
    %v4689 = vadd.f32 %v4660, %v4688
    %4690 = vmatmul.f32.gmra.mxu0 %v4325
    %v4691 = vpop.f32.mrf.mxu0
    %v4692 = vadd.f32 %v4663, %v4691
    %4693 = vmatmul.f32.gmra.mxu0 %v4334
    %v4694 = vpop.f32.mrf.mxu0
    %v4695 = vadd.f32 %v4666, %v4694
    %4696 = vdwg.mxu0
    %4697 = vmatpush.msra.mxu0 %v4606
    %4698 = vmatpush.msra.mxu0 %v4602
    %4699 = vmatpush.msra.mxu0 %v4598
    %4700 = vmatpush.msra.mxu0 %v4594
    %4701 = vmatpush.msra.mxu0 %v4590
    %4702 = vmatpush.msra.mxu0 %v4586
    %4703 = vmatpush.msra.mxu0 %v4582
    %4704 = vmatpush.msra.mxu0 %v4578
    %4705 = vmatpush.msra.mxu0 %v4574
    %4706 = vmatpush.msra.mxu0 %v4570
    %4707 = vmatpush.msra.mxu0 %v4566
    %4708 = vmatpush.msra.mxu0 %v4562
    %4709 = vmatpush.msra.mxu0 %v4558
    %4710 = vmatpush.msra.mxu0 %v4554
    %4711 = vmatpush.msra.mxu0 %v4550
    %4712 = vmatpush.msra.mxu0 %v4546
    %4713 = vmatmul.f32.gmra.mxu0 %v4308
    %v4714 = vpop.f32.mrf.mxu0
    %v4715 = vadd.f32 %v4686, %v4714
    %4716 = vmatmul.f32.gmra.mxu0 %v4316
    %v4717 = vpop.f32.mrf.mxu0
    %v4718 = vadd.f32 %v4689, %v4717
    %4719 = vmatmul.f32.gmra.mxu0 %v4328
    %v4720 = vpop.f32.mrf.mxu0
    %v4721 = vadd.f32 %v4692, %v4720
    %4722 = vmatmul.f32.gmra.mxu0 %v4336
    %v4723 = vpop.f32.mrf.mxu0
    %v4724 = vadd.f32 %v4695, %v4723
    %4725 = vdwg.mxu0
    %4726 = vmatpush.msra.mxu0 %v4415
    %4727 = vmatpush.msra.mxu0 %v4411
    %4728 = vmatpush.msra.mxu0 %v4407
    %4729 = vmatpush.msra.mxu0 %v4403
    %4730 = vmatpush.msra.mxu0 %v4399
    %4731 = vmatpush.msra.mxu0 %v4395
    %4732 = vmatpush.msra.mxu0 %v4391
    %4733 = vmatpush.msra.mxu0 %v4387
    %4734 = vmatpush.msra.mxu0 %v4383
    %4735 = vmatpush.msra.mxu0 %v4379
    %4736 = vmatpush.msra.mxu0 %v4375
    %4737 = vmatpush.msra.mxu0 %v4371
    %4738 = vmatpush.msra.mxu0 %v4367
    %4739 = vmatpush.msra.mxu0 %v4363
    %4740 = vmatpush.msra.mxu0 %v4359
    %4741 = vmatpush.msra.mxu0 %v4355
    %4742 = vmatmul.f32.gmra.mxu0 %v4299
    %v4743 = vpop.f32.mrf.mxu0
    %v4744 = vadd.f32 0.0, %v4743
    %4745 = vmatmul.f32.gmra.mxu0 %v4310
    %v4746 = vpop.f32.mrf.mxu0
    %v4747 = vadd.f32 0.0, %v4746
    %4748 = vmatmul.f32.gmra.mxu0 %v4319
    %v4749 = vpop.f32.mrf.mxu0
    %v4750 = vadd.f32 0.0, %v4749
    %4751 = vmatmul.f32.gmra.mxu0 %v4330
    %v4752 = vpop.f32.mrf.mxu0
    %v4753 = vadd.f32 0.0, %v4752
    %4754 = vdwg.mxu0
    %4755 = vmatpush.msra.mxu0 %v4479
    %4756 = vmatpush.msra.mxu0 %v4475
    %4757 = vmatpush.msra.mxu0 %v4471
    %4758 = vmatpush.msra.mxu0 %v4467
    %4759 = vmatpush.msra.mxu0 %v4463
    %4760 = vmatpush.msra.mxu0 %v4459
    %4761 = vmatpush.msra.mxu0 %v4455
    %4762 = vmatpush.msra.mxu0 %v4451
    %4763 = vmatpush.msra.mxu0 %v4447
    %4764 = vmatpush.msra.mxu0 %v4443
    %4765 = vmatpush.msra.mxu0 %v4439
    %4766 = vmatpush.msra.mxu0 %v4435
    %4767 = vmatpush.msra.mxu0 %v4431
    %4768 = vmatpush.msra.mxu0 %v4427
    %4769 = vmatpush.msra.mxu0 %v4423
    %4770 = vmatpush.msra.mxu0 %v4419
    %4771 = vmatmul.f32.gmra.mxu0 %v4302
    %v4772 = vpop.f32.mrf.mxu0
    %v4773 = vadd.f32 %v4744, %v4772
    %4774 = vmatmul.f32.gmra.mxu0 %v4312
    %v4775 = vpop.f32.mrf.mxu0
    %v4776 = vadd.f32 %v4747, %v4775
    %4777 = vmatmul.f32.gmra.mxu0 %v4322
    %v4778 = vpop.f32.mrf.mxu0
    %v4779 = vadd.f32 %v4750, %v4778
    %4780 = vmatmul.f32.gmra.mxu0 %v4332
    %v4781 = vpop.f32.mrf.mxu0
    %v4782 = vadd.f32 %v4753, %v4781
    %4783 = vdwg.mxu0
    %4784 = vmatpush.msra.mxu0 %v4543
    %4785 = vmatpush.msra.mxu0 %v4539
    %4786 = vmatpush.msra.mxu0 %v4535
    %4787 = vmatpush.msra.mxu0 %v4531
    %4788 = vmatpush.msra.mxu0 %v4527
    %4789 = vmatpush.msra.mxu0 %v4523
    %4790 = vmatpush.msra.mxu0 %v4519
    %4791 = vmatpush.msra.mxu0 %v4515
    %4792 = vmatpush.msra.mxu0 %v4511
    %4793 = vmatpush.msra.mxu0 %v4507
    %4794 = vmatpush.msra.mxu0 %v4503
    %4795 = vmatpush.msra.mxu0 %v4499
    %4796 = vmatpush.msra.mxu0 %v4495
    %4797 = vmatpush.msra.mxu0 %v4491
    %4798 = vmatpush.msra.mxu0 %v4487
    %4799 = vmatpush.msra.mxu0 %v4483
    %4800 = vmatmul.f32.gmra.mxu0 %v4305
    %v4801 = vpop.f32.mrf.mxu0
    %v4802 = vadd.f32 %v4773, %v4801
    %4803 = vmatmul.f32.gmra.mxu0 %v4314
    %v4804 = vpop.f32.mrf.mxu0
    %v4805 = vadd.f32 %v4776, %v4804
    %4806 = vmatmul.f32.gmra.mxu0 %v4325
    %v4807 = vpop.f32.mrf.mxu0
    %v4808 = vadd.f32 %v4779, %v4807
    %4809 = vmatmul.f32.gmra.mxu0 %v4334
    %v4810 = vpop.f32.mrf.mxu0
    %v4811 = vadd.f32 %v4782, %v4810
    %4812 = vdwg.mxu0
    %4813 = vmatpush.msra.mxu0 %v4607
    %4814 = vmatpush.msra.mxu0 %v4603
    %4815 = vmatpush.msra.mxu0 %v4599
    %4816 = vmatpush.msra.mxu0 %v4595
    %4817 = vmatpush.msra.mxu0 %v4591
    %4818 = vmatpush.msra.mxu0 %v4587
    %4819 = vmatpush.msra.mxu0 %v4583
    %4820 = vmatpush.msra.mxu0 %v4579
    %4821 = vmatpush.msra.mxu0 %v4575
    %4822 = vmatpush.msra.mxu0 %v4571
    %4823 = vmatpush.msra.mxu0 %v4567
    %4824 = vmatpush.msra.mxu0 %v4563
    %4825 = vmatpush.msra.mxu0 %v4559
    %4826 = vmatpush.msra.mxu0 %v4555
    %4827 = vmatpush.msra.mxu0 %v4551
    %4828 = vmatpush.msra.mxu0 %v4547
    %4829 = vmatmul.f32.gmra.mxu0 %v4308
    %v4830 = vpop.f32.mrf.mxu0
    %v4831 = vadd.f32 %v4802, %v4830
    %4832 = vmatmul.f32.gmra.mxu0 %v4316
    %v4833 = vpop.f32.mrf.mxu0
    %v4834 = vadd.f32 %v4805, %v4833
    %4835 = vmatmul.f32.gmra.mxu0 %v4328
    %v4836 = vpop.f32.mrf.mxu0
    %v4837 = vadd.f32 %v4808, %v4836
    %4838 = vmatmul.f32.gmra.mxu0 %v4336
    %v4839 = vpop.f32.mrf.mxu0
    %v4840 = vadd.f32 %v4811, %v4839
    %4841 = vdwg.mxu0
    %4842 = vmatpush.msra.mxu0 %v4416
    %4843 = vmatpush.msra.mxu0 %v4412
    %4844 = vmatpush.msra.mxu0 %v4408
    %4845 = vmatpush.msra.mxu0 %v4404
    %4846 = vmatpush.msra.mxu0 %v4400
    %4847 = vmatpush.msra.mxu0 %v4396
    %4848 = vmatpush.msra.mxu0 %v4392
    %4849 = vmatpush.msra.mxu0 %v4388
    %4850 = vmatpush.msra.mxu0 %v4384
    %4851 = vmatpush.msra.mxu0 %v4380
    %4852 = vmatpush.msra.mxu0 %v4376
    %4853 = vmatpush.msra.mxu0 %v4372
    %4854 = vmatpush.msra.mxu0 %v4368
    %4855 = vmatpush.msra.mxu0 %v4364
    %4856 = vmatpush.msra.mxu0 %v4360
    %4857 = vmatpush.msra.mxu0 %v4356
    %4858 = vmatmul.f32.gmra.mxu0 %v4299
    %v4859 = vpop.f32.mrf.mxu0
    %v4860 = vadd.f32 0.0, %v4859
    %4861 = vmatmul.f32.gmra.mxu0 %v4310
    %v4862 = vpop.f32.mrf.mxu0
    %v4863 = vadd.f32 0.0, %v4862
    %4864 = vmatmul.f32.gmra.mxu0 %v4319
    %v4865 = vpop.f32.mrf.mxu0
    %v4866 = vadd.f32 0.0, %v4865
    %4867 = vmatmul.f32.gmra.mxu0 %v4330
    %v4868 = vpop.f32.mrf.mxu0
    %v4869 = vadd.f32 0.0, %v4868
    %4870 = vdwg.mxu0
    %4871 = vmatpush.msra.mxu0 %v4480
    %4872 = vmatpush.msra.mxu0 %v4476
    %4873 = vmatpush.msra.mxu0 %v4472
    %4874 = vmatpush.msra.mxu0 %v4468
    %4875 = vmatpush.msra.mxu0 %v4464
    %4876 = vmatpush.msra.mxu0 %v4460
    %4877 = vmatpush.msra.mxu0 %v4456
    %4878 = vmatpush.msra.mxu0 %v4452
    %4879 = vmatpush.msra.mxu0 %v4448
    %4880 = vmatpush.msra.mxu0 %v4444
    %4881 = vmatpush.msra.mxu0 %v4440
    %4882 = vmatpush.msra.mxu0 %v4436
    %4883 = vmatpush.msra.mxu0 %v4432
    %4884 = vmatpush.msra.mxu0 %v4428
    %4885 = vmatpush.msra.mxu0 %v4424
    %4886 = vmatpush.msra.mxu0 %v4420
    %4887 = vmatmul.f32.gmra.mxu0 %v4302
    %v4888 = vpop.f32.mrf.mxu0
    %v4889 = vadd.f32 %v4860, %v4888
    %4890 = vmatmul.f32.gmra.mxu0 %v4312
    %v4891 = vpop.f32.mrf.mxu0
    %v4892 = vadd.f32 %v4863, %v4891
    %4893 = vmatmul.f32.gmra.mxu0 %v4322
    %v4894 = vpop.f32.mrf.mxu0
    %v4895 = vadd.f32 %v4866, %v4894
    %4896 = vmatmul.f32.gmra.mxu0 %v4332
    %v4897 = vpop.f32.mrf.mxu0
    %v4898 = vadd.f32 %v4869, %v4897
    %4899 = vdwg.mxu0
    %4900 = vmatpush.msra.mxu0 %v4544
    %4901 = vmatpush.msra.mxu0 %v4540
    %4902 = vmatpush.msra.mxu0 %v4536
    %4903 = vmatpush.msra.mxu0 %v4532
    %4904 = vmatpush.msra.mxu0 %v4528
    %4905 = vmatpush.msra.mxu0 %v4524
    %4906 = vmatpush.msra.mxu0 %v4520
    %4907 = vmatpush.msra.mxu0 %v4516
    %4908 = vmatpush.msra.mxu0 %v4512
    %4909 = vmatpush.msra.mxu0 %v4508
    %4910 = vmatpush.msra.mxu0 %v4504
    %4911 = vmatpush.msra.mxu0 %v4500
    %4912 = vmatpush.msra.mxu0 %v4496
    %4913 = vmatpush.msra.mxu0 %v4492
    %4914 = vmatpush.msra.mxu0 %v4488
    %4915 = vmatpush.msra.mxu0 %v4484
    %4916 = vmatmul.f32.gmra.mxu0 %v4305
    %v4917 = vpop.f32.mrf.mxu0
    %v4918 = vadd.f32 %v4889, %v4917
    %4919 = vmatmul.f32.gmra.mxu0 %v4314
    %v4920 = vpop.f32.mrf.mxu0
    %v4921 = vadd.f32 %v4892, %v4920
    %4922 = vmatmul.f32.gmra.mxu0 %v4325
    %v4923 = vpop.f32.mrf.mxu0
    %v4924 = vadd.f32 %v4895, %v4923
    %4925 = vmatmul.f32.gmra.mxu0 %v4334
    %v4926 = vpop.f32.mrf.mxu0
    %v4927 = vadd.f32 %v4898, %v4926
    %4928 = vdwg.mxu0
    %4929 = vmatpush.msra.mxu0 %v4608
    %4930 = vmatpush.msra.mxu0 %v4604
    %4931 = vmatpush.msra.mxu0 %v4600
    %4932 = vmatpush.msra.mxu0 %v4596
    %4933 = vmatpush.msra.mxu0 %v4592
    %4934 = vmatpush.msra.mxu0 %v4588
    %4935 = vmatpush.msra.mxu0 %v4584
    %4936 = vmatpush.msra.mxu0 %v4580
    %4937 = vmatpush.msra.mxu0 %v4576
    %4938 = vmatpush.msra.mxu0 %v4572
    %4939 = vmatpush.msra.mxu0 %v4568
    %4940 = vmatpush.msra.mxu0 %v4564
    %4941 = vmatpush.msra.mxu0 %v4560
    %4942 = vmatpush.msra.mxu0 %v4556
    %4943 = vmatpush.msra.mxu0 %v4552
    %4944 = vmatpush.msra.mxu0 %v4548
    %4945 = vmatmul.f32.gmra.mxu0 %v4308
    %v4946 = vpop.f32.mrf.mxu0
    %v4947 = vadd.f32 %v4918, %v4946
    %4948 = vmatmul.f32.gmra.mxu0 %v4316
    %v4949 = vpop.f32.mrf.mxu0
    %v4950 = vadd.f32 %v4921, %v4949
    %4951 = vmatmul.f32.gmra.mxu0 %v4328
    %v4952 = vpop.f32.mrf.mxu0
    %v4953 = vadd.f32 %v4924, %v4952
    %4954 = vmatmul.f32.gmra.mxu0 %v4336
    %v4955 = vpop.f32.mrf.mxu0
    %v4956 = vadd.f32 %v4927, %v4955
    %4957 = vdwg.mxu0
    %4958 = vmatpush.msra.mxu0 %v4417
    %4959 = vmatpush.msra.mxu0 %v4413
    %4960 = vmatpush.msra.mxu0 %v4409
    %4961 = vmatpush.msra.mxu0 %v4405
    %4962 = vmatpush.msra.mxu0 %v4401
    %4963 = vmatpush.msra.mxu0 %v4397
    %4964 = vmatpush.msra.mxu0 %v4393
    %4965 = vmatpush.msra.mxu0 %v4389
    %4966 = vmatpush.msra.mxu0 %v4385
    %4967 = vmatpush.msra.mxu0 %v4381
    %4968 = vmatpush.msra.mxu0 %v4377
    %4969 = vmatpush.msra.mxu0 %v4373
    %4970 = vmatpush.msra.mxu0 %v4369
    %4971 = vmatpush.msra.mxu0 %v4365
    %4972 = vmatpush.msra.mxu0 %v4361
    %4973 = vmatpush.msra.mxu0 %v4357
    %4974 = vmatmul.f32.gmra.mxu0 %v4299
    %v4975 = vpop.f32.mrf.mxu0
    %v4976 = vadd.f32 0.0, %v4975
    %4977 = vmatmul.f32.gmra.mxu0 %v4310
    %v4978 = vpop.f32.mrf.mxu0
    %v4979 = vadd.f32 0.0, %v4978
    %4980 = vmatmul.f32.gmra.mxu0 %v4319
    %v4981 = vpop.f32.mrf.mxu0
    %v4982 = vadd.f32 0.0, %v4981
    %4983 = vmatmul.f32.gmra.mxu0 %v4330
    %v4984 = vpop.f32.mrf.mxu0
    %v4985 = vadd.f32 0.0, %v4984
    %4986 = vdwg.mxu0
    %4987 = vmatpush.msra.mxu0 %v4481
    %4988 = vmatpush.msra.mxu0 %v4477
    %4989 = vmatpush.msra.mxu0 %v4473
    %4990 = vmatpush.msra.mxu0 %v4469
    %4991 = vmatpush.msra.mxu0 %v4465
    %4992 = vmatpush.msra.mxu0 %v4461
    %4993 = vmatpush.msra.mxu0 %v4457
    %4994 = vmatpush.msra.mxu0 %v4453
    %4995 = vmatpush.msra.mxu0 %v4449
    %4996 = vmatpush.msra.mxu0 %v4445
    %4997 = vmatpush.msra.mxu0 %v4441
    %4998 = vmatpush.msra.mxu0 %v4437
    %4999 = vmatpush.msra.mxu0 %v4433
    %5000 = vmatpush.msra.mxu0 %v4429
    %5001 = vmatpush.msra.mxu0 %v4425
    %5002 = vmatpush.msra.mxu0 %v4421
    %5003 = vmatmul.f32.gmra.mxu0 %v4302
    %v5004 = vpop.f32.mrf.mxu0
    %v5005 = vadd.f32 %v4976, %v5004
    %5006 = vmatmul.f32.gmra.mxu0 %v4312
    %v5007 = vpop.f32.mrf.mxu0
    %v5008 = vadd.f32 %v4979, %v5007
    %5009 = vmatmul.f32.gmra.mxu0 %v4322
    %v5010 = vpop.f32.mrf.mxu0
    %v5011 = vadd.f32 %v4982, %v5010
    %5012 = vmatmul.f32.gmra.mxu0 %v4332
    %v5013 = vpop.f32.mrf.mxu0
    %v5014 = vadd.f32 %v4985, %v5013
    %5015 = vdwg.mxu0
    %5016 = vmatpush.msra.mxu0 %v4545
    %5017 = vmatpush.msra.mxu0 %v4541
    %5018 = vmatpush.msra.mxu0 %v4537
    %5019 = vmatpush.msra.mxu0 %v4533
    %5020 = vmatpush.msra.mxu0 %v4529
    %5021 = vmatpush.msra.mxu0 %v4525
    %5022 = vmatpush.msra.mxu0 %v4521
    %5023 = vmatpush.msra.mxu0 %v4517
    %5024 = vmatpush.msra.mxu0 %v4513
    %5025 = vmatpush.msra.mxu0 %v4509
    %5026 = vmatpush.msra.mxu0 %v4505
    %5027 = vmatpush.msra.mxu0 %v4501
    %5028 = vmatpush.msra.mxu0 %v4497
    %5029 = vmatpush.msra.mxu0 %v4493
    %5030 = vmatpush.msra.mxu0 %v4489
    %5031 = vmatpush.msra.mxu0 %v4485
    %5032 = vmatmul.f32.gmra.mxu0 %v4305
    %v5033 = vpop.f32.mrf.mxu0
    %v5034 = vadd.f32 %v5005, %v5033
    %5035 = vmatmul.f32.gmra.mxu0 %v4314
    %v5036 = vpop.f32.mrf.mxu0
    %v5037 = vadd.f32 %v5008, %v5036
    %5038 = vmatmul.f32.gmra.mxu0 %v4325
    %v5039 = vpop.f32.mrf.mxu0
    %v5040 = vadd.f32 %v5011, %v5039
    %5041 = vmatmul.f32.gmra.mxu0 %v4334
    %v5042 = vpop.f32.mrf.mxu0
    %v5043 = vadd.f32 %v5014, %v5042
    %5044 = vdwg.mxu0
    %5045 = vmatpush.msra.mxu0 %v4609
    %5046 = vmatpush.msra.mxu0 %v4605
    %5047 = vmatpush.msra.mxu0 %v4601
    %5048 = vmatpush.msra.mxu0 %v4597
    %5049 = vmatpush.msra.mxu0 %v4593
    %5050 = vmatpush.msra.mxu0 %v4589
    %5051 = vmatpush.msra.mxu0 %v4585
    %5052 = vmatpush.msra.mxu0 %v4581
    %5053 = vmatpush.msra.mxu0 %v4577
    %5054 = vmatpush.msra.mxu0 %v4573
    %5055 = vmatpush.msra.mxu0 %v4569
    %5056 = vmatpush.msra.mxu0 %v4565
    %5057 = vmatpush.msra.mxu0 %v4561
    %5058 = vmatpush.msra.mxu0 %v4557
    %5059 = vmatpush.msra.mxu0 %v4553
    %5060 = vmatpush.msra.mxu0 %v4549
    %5061 = vmatmul.f32.gmra.mxu0 %v4308
    %v5062 = vpop.f32.mrf.mxu0
    %v5063 = vadd.f32 %v5034, %v5062
    %5064 = vmatmul.f32.gmra.mxu0 %v4316
    %v5065 = vpop.f32.mrf.mxu0
    %v5066 = vadd.f32 %v5037, %v5065
    %5067 = vmatmul.f32.gmra.mxu0 %v4328
    %v5068 = vpop.f32.mrf.mxu0
    %v5069 = vadd.f32 %v5040, %v5068
    %5070 = vmatmul.f32.gmra.mxu0 %v4336
    %v5071 = vpop.f32.mrf.mxu0
    %v5072 = vadd.f32 %v5043, %v5071
    %5073 = vdwg.mxu0
    %v5074 = vadd.f32 %v3906, %v4715
    %v5075 = vadd.f32 %v4022, %v4831
    %v5076 = vadd.f32 %v4138, %v4947
    %v5077 = vadd.f32 %v4254, %v5063
    %v5078 = vadd.f32 %v3909, %v4718
    %v5079 = vadd.f32 %v4025, %v4834
    %v5080 = vadd.f32 %v4141, %v4950
    %v5081 = vadd.f32 %v4257, %v5066
    %v5082 = vadd.f32 %v3912, %v4721
    %v5083 = vadd.f32 %v4028, %v4837
    %v5084 = vadd.f32 %v4144, %v4953
    %v5085 = vadd.f32 %v4260, %v5069
    %v5086 = vadd.f32 %v3915, %v4724
    %v5087 = vadd.f32 %v4031, %v4840
    %v5088 = vadd.f32 %v4147, %v4956
    %v5089 = vadd.f32 %v4263, %v5072
    %s5090 = scalar_lea.vmem [#allocation8], 1
    %v5091 = vld [vmem:[%s5090] ss:$4 sm:$0xf]
    %v5093 = vperm.slane %v5091, 0
    %v5094 = vperm.slane %v5091, 1
    %v5095 = vperm.slane %v5091, 2
    %v5096 = vperm.slane %v5091, 3
    %v5101 = vadd.f32 %v5074, %v5093
    %v5102 = vadd.f32 %v5075, %v5094
    %v5103 = vadd.f32 %v5076, %v5095
    %v5104 = vadd.f32 %v5077, %v5096
    %v5105 = vadd.f32 %v5078, %v5093
    %v5106 = vadd.f32 %v5079, %v5094
    %v5107 = vadd.f32 %v5080, %v5095
    %v5108 = vadd.f32 %v5081, %v5096
    %v5109 = vadd.f32 %v5082, %v5093
    %v5110 = vadd.f32 %v5083, %v5094
    %v5111 = vadd.f32 %v5084, %v5095
    %v5112 = vadd.f32 %v5085, %v5096
    %v5113 = vadd.f32 %v5086, %v5093
    %v5114 = vadd.f32 %v5087, %v5094
    %v5115 = vadd.f32 %v5088, %v5095
    %v5116 = vadd.f32 %v5089, %v5096
    %5117 = vst [vmem:[#allocation3] sm:$0xff] %v5101
    %5118 = vst [vmem:[#allocation3 + $0x8] sm:$0xff] %v5102
    %5119 = vst [vmem:[#allocation3 + $0x10] sm:$0xff] %v5103
    %5120 = vst [vmem:[#allocation3 + $0x18] sm:$0xff] %v5104
    %5121 = vst [vmem:[#allocation3 + $0x20] sm:$0xff] %v5105
    %5122 = vst [vmem:[#allocation3 + $0x28] sm:$0xff] %v5106
    %5123 = vst [vmem:[#allocation3 + $0x30] sm:$0xff] %v5107
    %5124 = vst [vmem:[#allocation3 + $0x38] sm:$0xff] %v5108
    %5125 = vst [vmem:[#allocation3 + $0x40] sm:$0xff] %v5109
    %5126 = vst [vmem:[#allocation3 + $0x48] sm:$0xff] %v5110
    %5127 = vst [vmem:[#allocation3 + $0x50] sm:$0xff] %v5111
    %5128 = vst [vmem:[#allocation3 + $0x58] sm:$0xff] %v5112
    %5129 = vst [vmem:[#allocation3 + $0x60] sm:$0xff] %v5113
    %5130 = vst [vmem:[#allocation3 + $0x68] sm:$0xff] %v5114
    %5131 = vst [vmem:[#allocation3 + $0x70] sm:$0xff] %v5115
    %5132 = vst [vmem:[#allocation3 + $0x78] sm:$0xff] %v5116
    %v5133 = vld [vmem:[#allocation3] sm:$0xff]
    %v5134 = vld [vmem:[#allocation3 + $0x8] sm:$0xff]
    %v5135 = vld [vmem:[#allocation3 + $0x10] sm:$0xff]
    %v5136 = vld [vmem:[#allocation3 + $0x18] sm:$0xff]
    %v5137 = vld [vmem:[#allocation3 + $0x20] sm:$0xff]
    %v5138 = vld [vmem:[#allocation3 + $0x28] sm:$0xff]
    %v5139 = vld [vmem:[#allocation3 + $0x30] sm:$0xff]
    %v5140 = vld [vmem:[#allocation3 + $0x38] sm:$0xff]
    %v5141 = vld [vmem:[#allocation3 + $0x40] sm:$0xff]
    %v5142 = vld [vmem:[#allocation3 + $0x48] sm:$0xff]
    %v5143 = vld [vmem:[#allocation3 + $0x50] sm:$0xff]
    %v5144 = vld [vmem:[#allocation3 + $0x58] sm:$0xff]
    %v5145 = vld [vmem:[#allocation3 + $0x60] sm:$0xff]
    %v5146 = vld [vmem:[#allocation3 + $0x68] sm:$0xff]
    %v5147 = vld [vmem:[#allocation3 + $0x70] sm:$0xff]
    %v5148 = vld [vmem:[#allocation3 + $0x78] sm:$0xff]
    %v5149 = vadd.f32 %v5133, %v5137
    %v5150 = vrot.slane %v5149, 4
    %v5151 = vadd.f32 %v5149, %v5150
    %v5152 = vrot.slane %v5151, 2
    %v5153 = vadd.f32 %v5151, %v5152
    %v5154 = vrot.slane %v5153, 1
    %v5155 = vadd.f32 %v5153, %v5154
    %v5156 = vadd.f32 %v5134, %v5138
    %v5157 = vrot.slane %v5156, 4
    %v5158 = vadd.f32 %v5156, %v5157
    %v5159 = vrot.slane %v5158, 2
    %v5160 = vadd.f32 %v5158, %v5159
    %v5161 = vrot.slane %v5160, 1
    %v5162 = vadd.f32 %v5160, %v5161
    %v5163 = vadd.f32 %v5135, %v5139
    %v5164 = vrot.slane %v5163, 4
    %v5165 = vadd.f32 %v5163, %v5164
    %v5166 = vrot.slane %v5165, 2
    %v5167 = vadd.f32 %v5165, %v5166
    %v5168 = vrot.slane %v5167, 1
    %v5169 = vadd.f32 %v5167, %v5168
    %v5170 = vadd.f32 %v5136, %v5140
    %v5171 = vrot.slane %v5170, 4
    %v5172 = vadd.f32 %v5170, %v5171
    %v5173 = vrot.slane %v5172, 2
    %v5174 = vadd.f32 %v5172, %v5173
    %v5175 = vrot.slane %v5174, 1
    %v5176 = vadd.f32 %v5174, %v5175
    %v5177 = vadd.f32 %v5141, %v5145
    %v5178 = vrot.slane %v5177, 4
    %v5179 = vadd.f32 %v5177, %v5178
    %v5180 = vrot.slane %v5179, 2
    %v5181 = vadd.f32 %v5179, %v5180
    %v5182 = vrot.slane %v5181, 1
    %v5183 = vadd.f32 %v5181, %v5182
    %v5184 = vadd.f32 %v5142, %v5146
    %v5185 = vrot.slane %v5184, 4
    %v5186 = vadd.f32 %v5184, %v5185
    %v5187 = vrot.slane %v5186, 2
    %v5188 = vadd.f32 %v5186, %v5187
    %v5189 = vrot.slane %v5188, 1
    %v5190 = vadd.f32 %v5188, %v5189
    %v5191 = vadd.f32 %v5143, %v5147
    %v5192 = vrot.slane %v5191, 4
    %v5193 = vadd.f32 %v5191, %v5192
    %v5194 = vrot.slane %v5193, 2
    %v5195 = vadd.f32 %v5193, %v5194
    %v5196 = vrot.slane %v5195, 1
    %v5197 = vadd.f32 %v5195, %v5196
    %v5198 = vadd.f32 %v5144, %v5148
    %v5199 = vrot.slane %v5198, 4
    %v5200 = vadd.f32 %v5198, %v5199
    %v5201 = vrot.slane %v5200, 2
    %v5202 = vadd.f32 %v5200, %v5201
    %v5203 = vrot.slane %v5202, 1
    %v5204 = vadd.f32 %v5202, %v5203
    %v5205 = vld [vmem:[%s4] sm:$0xff]
    %v5206 = vld [vmem:[%s4 + $0x8] sm:$0xff]
    %v5207 = vld [vmem:[%s4 + $0x10] sm:$0xff]
    %v5208 = vld [vmem:[%s4 + $0x18] sm:$0xff]
    %v5209 = vld [vmem:[%s4 + $0x20] sm:$0xff]
    %v5210 = vld [vmem:[%s4 + $0x28] sm:$0xff]
    %v5211 = vld [vmem:[%s4 + $0x30] sm:$0xff]
    %v5212 = vld [vmem:[%s4 + $0x38] sm:$0xff]
    %v5213 = vld [vmem:[%s4 + $0x40] sm:$0xff]
    %v5214 = vld [vmem:[%s4 + $0x48] sm:$0xff]
    %v5215 = vld [vmem:[%s4 + $0x50] sm:$0xff]
    %v5216 = vld [vmem:[%s4 + $0x58] sm:$0xff]
    %v5217 = vld [vmem:[%s4 + $0x60] sm:$0xff]
    %v5218 = vld [vmem:[%s4 + $0x68] sm:$0xff]
    %v5219 = vld [vmem:[%s4 + $0x70] sm:$0xff]
    %v5220 = vld [vmem:[%s4 + $0x78] sm:$0xff]
    %v5221 = vld [vmem:[%s4 + $0x80] sm:$0xff]
    %v5222 = vld [vmem:[%s4 + $0x88] sm:$0xff]
    %v5223 = vld [vmem:[%s4 + $0x90] sm:$0xff]
    %v5224 = vld [vmem:[%s4 + $0x98] sm:$0xff]
    %v5225 = vld [vmem:[%s4 + $0xa0] sm:$0xff]
    %v5226 = vld [vmem:[%s4 + $0xa8] sm:$0xff]
    %v5227 = vld [vmem:[%s4 + $0xb0] sm:$0xff]
    %v5228 = vld [vmem:[%s4 + $0xb8] sm:$0xff]
    %v5229 = vld [vmem:[%s4 + $0xc0] sm:$0xff]
    %v5230 = vld [vmem:[%s4 + $0xc8] sm:$0xff]
    %v5231 = vld [vmem:[%s4 + $0xd0] sm:$0xff]
    %v5232 = vld [vmem:[%s4 + $0xd8] sm:$0xff]
    %v5233 = vld [vmem:[%s4 + $0xe0] sm:$0xff]
    %v5234 = vld [vmem:[%s4 + $0xe8] sm:$0xff]
    %v5235 = vld [vmem:[%s4 + $0xf0] sm:$0xff]
    %v5236 = vld [vmem:[%s4 + $0xf8] sm:$0xff]
    %v5237 = vld [vmem:[%s4 + $0x100] sm:$0xff]
    %v5238 = vld [vmem:[%s4 + $0x108] sm:$0xff]
    %v5239 = vld [vmem:[%s4 + $0x110] sm:$0xff]
    %v5240 = vld [vmem:[%s4 + $0x118] sm:$0xff]
    %v5241 = vld [vmem:[%s4 + $0x120] sm:$0xff]
    %v5242 = vld [vmem:[%s4 + $0x128] sm:$0xff]
    %v5243 = vld [vmem:[%s4 + $0x130] sm:$0xff]
    %v5244 = vld [vmem:[%s4 + $0x138] sm:$0xff]
    %v5245 = vld [vmem:[%s4 + $0x140] sm:$0xff]
    %v5246 = vld [vmem:[%s4 + $0x148] sm:$0xff]
    %v5247 = vld [vmem:[%s4 + $0x150] sm:$0xff]
    %v5248 = vld [vmem:[%s4 + $0x158] sm:$0xff]
    %v5249 = vld [vmem:[%s4 + $0x160] sm:$0xff]
    %v5250 = vld [vmem:[%s4 + $0x168] sm:$0xff]
    %v5251 = vld [vmem:[%s4 + $0x170] sm:$0xff]
    %v5252 = vld [vmem:[%s4 + $0x178] sm:$0xff]
    %v5253 = vld [vmem:[%s4 + $0x180] sm:$0xff]
    %v5254 = vld [vmem:[%s4 + $0x188] sm:$0xff]
    %v5255 = vld [vmem:[%s4 + $0x190] sm:$0xff]
    %v5256 = vld [vmem:[%s4 + $0x198] sm:$0xff]
    %v5257 = vld [vmem:[%s4 + $0x1a0] sm:$0xff]
    %v5258 = vld [vmem:[%s4 + $0x1a8] sm:$0xff]
    %v5259 = vld [vmem:[%s4 + $0x1b0] sm:$0xff]
    %v5260 = vld [vmem:[%s4 + $0x1b8] sm:$0xff]
    %v5261 = vld [vmem:[%s4 + $0x1c0] sm:$0xff]
    %v5262 = vld [vmem:[%s4 + $0x1c8] sm:$0xff]
    %v5263 = vld [vmem:[%s4 + $0x1d0] sm:$0xff]
    %v5264 = vld [vmem:[%s4 + $0x1d8] sm:$0xff]
    %v5265 = vld [vmem:[%s4 + $0x1e0] sm:$0xff]
    %v5266 = vld [vmem:[%s4 + $0x1e8] sm:$0xff]
    %v5267 = vld [vmem:[%s4 + $0x1f0] sm:$0xff]
    %v5268 = vld [vmem:[%s4 + $0x1f8] sm:$0xff]
    %v5269 = vld [vmem:[#allocation8 + $0x2] sm:$0x1]
    %v5270 = vperm.slane %v5269, 0
    %vm5279 = vcmask 1041409
    %v5280 = vsel %vm5279, %v5183, %v5155
    %v5281 = vsel %vm5279, %v5190, %v5162
    %v5282 = vsel %vm5279, %v5197, %v5169
    %v5283 = vsel %vm5279, %v5204, %v5176
    %5288 = vmatpush.msra.mxu0 %v5220
    %5289 = vmatpush.msra.mxu0 %v5219
    %5290 = vmatpush.msra.mxu0 %v5218
    %5291 = vmatpush.msra.mxu0 %v5217
    %5292 = vmatpush.msra.mxu0 %v5216
    %5293 = vmatpush.msra.mxu0 %v5215
    %5294 = vmatpush.msra.mxu0 %v5214
    %5295 = vmatpush.msra.mxu0 %v5213
    %5296 = vmatpush.msra.mxu0 %v5212
    %5297 = vmatpush.msra.mxu0 %v5211
    %5298 = vmatpush.msra.mxu0 %v5210
    %5299 = vmatpush.msra.mxu0 %v5209
    %5300 = vmatpush.msra.mxu0 %v5208
    %5301 = vmatpush.msra.mxu0 %v5207
    %5302 = vmatpush.msra.mxu0 %v5206
    %5303 = vmatpush.msra.mxu0 %v5205
    %5304 = vmatmul.f32.gmra.mxu0 %v5280
    %v5305 = vpop.f32.mrf.mxu0
    %v5306 = vadd.f32 %v5270, %v5305
    %5307 = vdwg.mxu0
    %5308 = vmatpush.msra.mxu0 %v5236
    %5309 = vmatpush.msra.mxu0 %v5235
    %5310 = vmatpush.msra.mxu0 %v5234
    %5311 = vmatpush.msra.mxu0 %v5233
    %5312 = vmatpush.msra.mxu0 %v5232
    %5313 = vmatpush.msra.mxu0 %v5231
    %5314 = vmatpush.msra.mxu0 %v5230
    %5315 = vmatpush.msra.mxu0 %v5229
    %5316 = vmatpush.msra.mxu0 %v5228
    %5317 = vmatpush.msra.mxu0 %v5227
    %5318 = vmatpush.msra.mxu0 %v5226
    %5319 = vmatpush.msra.mxu0 %v5225
    %5320 = vmatpush.msra.mxu0 %v5224
    %5321 = vmatpush.msra.mxu0 %v5223
    %5322 = vmatpush.msra.mxu0 %v5222
    %5323 = vmatpush.msra.mxu0 %v5221
    %5324 = vmatmul.f32.gmra.mxu0 %v5281
    %v5325 = vpop.f32.mrf.mxu0
    %v5326 = vadd.f32 %v5306, %v5325
    %5327 = vdwg.mxu0
    %5328 = vmatpush.msra.mxu0 %v5252
    %5329 = vmatpush.msra.mxu0 %v5251
    %5330 = vmatpush.msra.mxu0 %v5250
    %5331 = vmatpush.msra.mxu0 %v5249
    %5332 = vmatpush.msra.mxu0 %v5248
    %5333 = vmatpush.msra.mxu0 %v5247
    %5334 = vmatpush.msra.mxu0 %v5246
    %5335 = vmatpush.msra.mxu0 %v5245
    %5336 = vmatpush.msra.mxu0 %v5244
    %5337 = vmatpush.msra.mxu0 %v5243
    %5338 = vmatpush.msra.mxu0 %v5242
    %5339 = vmatpush.msra.mxu0 %v5241
    %5340 = vmatpush.msra.mxu0 %v5240
    %5341 = vmatpush.msra.mxu0 %v5239
    %5342 = vmatpush.msra.mxu0 %v5238
    %5343 = vmatpush.msra.mxu0 %v5237
    %5344 = vmatmul.f32.gmra.mxu0 %v5282
    %v5345 = vpop.f32.mrf.mxu0
    %v5346 = vadd.f32 %v5326, %v5345
    %5347 = vdwg.mxu0
    %5348 = vmatpush.msra.mxu0 %v5268
    %5349 = vmatpush.msra.mxu0 %v5267
    %5350 = vmatpush.msra.mxu0 %v5266
    %5351 = vmatpush.msra.mxu0 %v5265
    %5352 = vmatpush.msra.mxu0 %v5264
    %5353 = vmatpush.msra.mxu0 %v5263
    %5354 = vmatpush.msra.mxu0 %v5262
    %5355 = vmatpush.msra.mxu0 %v5261
    %5356 = vmatpush.msra.mxu0 %v5260
    %5357 = vmatpush.msra.mxu0 %v5259
    %5358 = vmatpush.msra.mxu0 %v5258
    %5359 = vmatpush.msra.mxu0 %v5257
    %5360 = vmatpush.msra.mxu0 %v5256
    %5361 = vmatpush.msra.mxu0 %v5255
    %5362 = vmatpush.msra.mxu0 %v5254
    %5363 = vmatpush.msra.mxu0 %v5253
    %5364 = vmatmul.f32.gmra.mxu0 %v5283
    %v5365 = vpop.f32.mrf.mxu0
    %v5366 = vadd.f32 %v5346, %v5365
    %5367 = vdwg.mxu0
    %v5368 = vmax.f32 %v5366, 0.0
    %v5369 = vld [vmem:[#allocation9] sm:$0xff]
    %s5370 = scalar_lea.vmem [#allocation8], 3
    %v5371 = vld [vmem:[%s5370] ss:$4 sm:$0xf]
    %v5373 = vperm.slane %v5371, 0
    %v5374 = vperm.slane %v5371, 1
    %v5375 = vperm.slane %v5371, 2
    %v5376 = vperm.slane %v5371, 3
    %5382 = vst [vmem:[#allocation1] ss:$4 sm:$0xff] %v5369
    %v5383 = vld.sshfl [vmem:[#allocation1] sm:$0xff pattern:$0x73625140]
    %v5384 = vld.sshfl [vmem:[#allocation1 + $0x8] sm:$0xff pattern:$0x73625140]
    %v5385 = vld.sshfl [vmem:[#allocation1 + $0x10] sm:$0xff pattern:$0x73625140]
    %v5386 = vld.sshfl [vmem:[#allocation1 + $0x18] sm:$0xff pattern:$0x73625140]
    %vm5387 = vcmask 15360
    %v5389 = vsel %vm5387, %v5368, 0
    %vm5391 = vcmask 1041408
    %v5392 = vsel %vm5391, %v5383, 0
    %v5394 = vsel %vm5391, %v5384, 0
    %v5396 = vsel %vm5391, %v5385, 0
    %v5398 = vsel %vm5391, %v5386, 0
    %5400 = vmatpush.msra.mxu0 0.0
    %5401 = vmatpush.msra.mxu0 0.0
    %5402 = vmatpush.msra.mxu0 0.0
    %5403 = vmatpush.msra.mxu0 0.0
    %5404 = vmatpush.msra.mxu0 0.0
    %5405 = vmatpush.msra.mxu0 0.0
    %5406 = vmatpush.msra.mxu0 0.0
    %5407 = vmatpush.msra.mxu0 0.0
    %5408 = vmatpush.msra.mxu0 0.0
    %5409 = vmatpush.msra.mxu0 0.0
    %5410 = vmatpush.msra.mxu0 0.0
    %5411 = vmatpush.msra.mxu0 0.0
    %5412 = vmatpush.msra.mxu0 0.0
    %5413 = vmatpush.msra.mxu0 0.0
    %5414 = vmatpush.msra.mxu0 0.0
    %5415 = vmatpush.msra.mxu0 %v5392
    %5416 = vmatmul.f32.gmra.mxu0 %v5389
    %v5417 = vpop.f32.mrf.mxu0
    %v5418 = vadd.f32 %v5373, %v5417
    %5419 = vdwg.mxu0
    %5420 = vmatpush.msra.mxu0 0.0
    %5421 = vmatpush.msra.mxu0 0.0
    %5422 = vmatpush.msra.mxu0 0.0
    %5423 = vmatpush.msra.mxu0 0.0
    %5424 = vmatpush.msra.mxu0 0.0
    %5425 = vmatpush.msra.mxu0 0.0
    %5426 = vmatpush.msra.mxu0 0.0
    %5427 = vmatpush.msra.mxu0 0.0
    %5428 = vmatpush.msra.mxu0 0.0
    %5429 = vmatpush.msra.mxu0 0.0
    %5430 = vmatpush.msra.mxu0 0.0
    %5431 = vmatpush.msra.mxu0 0.0
    %5432 = vmatpush.msra.mxu0 0.0
    %5433 = vmatpush.msra.mxu0 0.0
    %5434 = vmatpush.msra.mxu0 0.0
    %5435 = vmatpush.msra.mxu0 %v5394
    %5436 = vmatmul.f32.gmra.mxu0 %v5389
    %v5437 = vpop.f32.mrf.mxu0
    %v5438 = vadd.f32 %v5374, %v5437
    %5439 = vdwg.mxu0
    %5440 = vmatpush.msra.mxu0 0.0
    %5441 = vmatpush.msra.mxu0 0.0
    %5442 = vmatpush.msra.mxu0 0.0
    %5443 = vmatpush.msra.mxu0 0.0
    %5444 = vmatpush.msra.mxu0 0.0
    %5445 = vmatpush.msra.mxu0 0.0
    %5446 = vmatpush.msra.mxu0 0.0
    %5447 = vmatpush.msra.mxu0 0.0
    %5448 = vmatpush.msra.mxu0 0.0
    %5449 = vmatpush.msra.mxu0 0.0
    %5450 = vmatpush.msra.mxu0 0.0
    %5451 = vmatpush.msra.mxu0 0.0
    %5452 = vmatpush.msra.mxu0 0.0
    %5453 = vmatpush.msra.mxu0 0.0
    %5454 = vmatpush.msra.mxu0 0.0
    %5455 = vmatpush.msra.mxu0 %v5396
    %5456 = vmatmul.f32.gmra.mxu0 %v5389
    %v5457 = vpop.f32.mrf.mxu0
    %v5458 = vadd.f32 %v5375, %v5457
    %5459 = vdwg.mxu0
    %5460 = vmatpush.msra.mxu0 0.0
    %5461 = vmatpush.msra.mxu0 0.0
    %5462 = vmatpush.msra.mxu0 0.0
    %5463 = vmatpush.msra.mxu0 0.0
    %5464 = vmatpush.msra.mxu0 0.0
    %5465 = vmatpush.msra.mxu0 0.0
    %5466 = vmatpush.msra.mxu0 0.0
    %5467 = vmatpush.msra.mxu0 0.0
    %5468 = vmatpush.msra.mxu0 0.0
    %5469 = vmatpush.msra.mxu0 0.0
    %5470 = vmatpush.msra.mxu0 0.0
    %5471 = vmatpush.msra.mxu0 0.0
    %5472 = vmatpush.msra.mxu0 0.0
    %5473 = vmatpush.msra.mxu0 0.0
    %5474 = vmatpush.msra.mxu0 0.0
    %5475 = vmatpush.msra.mxu0 %v5398
    %5476 = vmatmul.f32.gmra.mxu0 %v5389
    %v5477 = vpop.f32.mrf.mxu0
    %v5478 = vadd.f32 %v5376, %v5477
    %5479 = vdwg.mxu0
    %v5480 = vxor.u32 %v5418, 2147483648
    %v5481 = vxor.u32 %v5438, 2147483648
    %v5482 = vxor.u32 %v5458, 2147483648
    %v5483 = vxor.u32 %v5478, 2147483648
    %v5484 = vmul.f32 %v5480, 1.442695
    %v5485 = vpow.pop %v5484
    %v5486 = vmul.f32 %v5481, 1.442695
    %v5487 = vpow.pop %v5486
    %v5488 = vmul.f32 %v5482, 1.442695
    %v5489 = vpow.pop %v5488
    %v5490 = vmul.f32 %v5483, 1.442695
    %v5491 = vpow.pop %v5490
    %v5492 = vadd.f32 %v5485, 1.0
    %v5493 = vadd.f32 %v5487, 1.0
    %v5494 = vadd.f32 %v5489, 1.0
    %v5495 = vadd.f32 %v5491, 1.0
    %v5496 = vrcp.pop %v5492
    %v5497 = vmul.f32 %v5492, %v5496
    %v5498 = vsub.f32 1.0, %v5497
    %v5499 = vmul.f32 %v5496, %v5498
    %v5500 = vadd.f32 %v5496, %v5499
    %vm5501 = vweird.f32 %v5492
    %vm5502 = vweird.f32 %v5496
    %vm5503 = vmor %vm5501, %vm5502
    %v5504 = vsel %vm5503, %v5496, %v5500
    %v5505 = vand.u32 2147483647, %v5492
    %vm5506 = vcmp.eq.f32.partialorder %v5505, 8.507059e+37
    %v5507 = vand.u32 %v5492, 2147483648
    %v5508 = vor.u32 1.1754944e-38, %v5507
    %v5509 = vsel %vm5506, %v5508, %v5504
    %v5510 = vmul.f32 1.0, %v5509
    %v5511 = vrcp.pop %v5493
    %v5512 = vmul.f32 %v5493, %v5511
    %v5513 = vsub.f32 1.0, %v5512
    %v5514 = vmul.f32 %v5511, %v5513
    %v5515 = vadd.f32 %v5511, %v5514
    %vm5516 = vweird.f32 %v5493
    %vm5517 = vweird.f32 %v5511
    %vm5518 = vmor %vm5516, %vm5517
    %v5519 = vsel %vm5518, %v5511, %v5515
    %v5520 = vand.u32 2147483647, %v5493
    %vm5521 = vcmp.eq.f32.partialorder %v5520, 8.507059e+37
    %v5522 = vand.u32 %v5493, 2147483648
    %v5523 = vor.u32 1.1754944e-38, %v5522
    %v5524 = vsel %vm5521, %v5523, %v5519
    %v5525 = vmul.f32 1.0, %v5524
    %v5526 = vrcp.pop %v5494
    %v5527 = vmul.f32 %v5494, %v5526
    %v5528 = vsub.f32 1.0, %v5527
    %v5529 = vmul.f32 %v5526, %v5528
    %v5530 = vadd.f32 %v5526, %v5529
    %vm5531 = vweird.f32 %v5494
    %vm5532 = vweird.f32 %v5526
    %vm5533 = vmor %vm5531, %vm5532
    %v5534 = vsel %vm5533, %v5526, %v5530
    %v5535 = vand.u32 2147483647, %v5494
    %vm5536 = vcmp.eq.f32.partialorder %v5535, 8.507059e+37
    %v5537 = vand.u32 %v5494, 2147483648
    %v5538 = vor.u32 1.1754944e-38, %v5537
    %v5539 = vsel %vm5536, %v5538, %v5534
    %v5540 = vmul.f32 1.0, %v5539
    %v5541 = vrcp.pop %v5495
    %v5542 = vmul.f32 %v5495, %v5541
    %v5543 = vsub.f32 1.0, %v5542
    %v5544 = vmul.f32 %v5541, %v5543
    %v5545 = vadd.f32 %v5541, %v5544
    %vm5546 = vweird.f32 %v5495
    %vm5547 = vweird.f32 %v5541
    %vm5548 = vmor %vm5546, %vm5547
    %v5549 = vsel %vm5548, %v5541, %v5545
    %v5550 = vand.u32 2147483647, %v5495
    %vm5551 = vcmp.eq.f32.partialorder %v5550, 8.507059e+37
    %v5552 = vand.u32 %v5495, 2147483648
    %v5553 = vor.u32 1.1754944e-38, %v5552
    %v5554 = vsel %vm5551, %v5553, %v5549
    %v5555 = vmul.f32 1.0, %v5554
    %v5560 = vrot.slane %v5525, 7
    %v5561 = vrot.slane %v5540, 6
    %v5562 = vrot.slane %v5555, 5
    %v5563 = vsel %vm129, %v5510, %v5560
    %vm5564 = vcmask 1042434
    %v5565 = vsel %vm5564, %v5561, %v5562
    %v5566 = vsel %vm5391, %v5563, %v5565
    %v5567 = vsel %vm5279, %v5510, %v5560
    %vm5568 = vcmask 1043459
    %v5569 = vsel %vm5568, %v5561, %v5562
    %vm5570 = vcmask 1042433
    %v5571 = vsel %vm5570, %v5567, %v5569
    %v5572 = vrot.slane %v5571, 1
    %v5573 = vld [vmem:[%s0] sm:$0xff]
    %v5574 = vld [vmem:[%s0 + $0x8] sm:$0xff]
    %v5575 = vld [vmem:[%s0 + $0x10] sm:$0xff]
    %v5576 = vld [vmem:[%s0 + $0x18] sm:$0xff]
    %v5577 = vld [vmem:[%s0 + $0x20] sm:$0xff]
    %v5578 = vld [vmem:[%s0 + $0x28] sm:$0xff]
    %v5579 = vld [vmem:[%s0 + $0x30] sm:$0xff]
    %v5580 = vld [vmem:[%s0 + $0x38] sm:$0xff]
    %v5581 = vld [vmem:[%s0 + $0x40] sm:$0xff]
    %v5582 = vld [vmem:[%s0 + $0x48] sm:$0xff]
    %v5583 = vld [vmem:[%s0 + $0x50] sm:$0xff]
    %v5584 = vld [vmem:[%s0 + $0x58] sm:$0xff]
    %v5585 = vld [vmem:[%s0 + $0x60] sm:$0xff]
    %v5586 = vld [vmem:[%s0 + $0x68] sm:$0xff]
    %v5587 = vld [vmem:[%s0 + $0x70] sm:$0xff]
    %v5588 = vld [vmem:[%s0 + $0x78] sm:$0xff]
    %v5589 = vperm.slane %v5566, 0
    %v5590 = vperm.slane %v5566, 1
    %v5591 = vperm.slane %v5566, 2
    %v5592 = vperm.slane %v5566, 3
    %v5593 = vperm.slane %v5572, 0
    %v5594 = vperm.slane %v5572, 1
    %v5595 = vperm.slane %v5572, 2
    %v5596 = vperm.slane %v5572, 3
    %v5605 = vmul.f32 %v5133, %v5589
    %v5606 = vmul.f32 %v5134, %v5590
    %v5607 = vmul.f32 %v5135, %v5591
    %v5608 = vmul.f32 %v5136, %v5592
    %v5609 = vmul.f32 %v5137, %v5589
    %v5610 = vmul.f32 %v5138, %v5590
    %v5611 = vmul.f32 %v5139, %v5591
    %v5612 = vmul.f32 %v5140, %v5592
    %v5613 = vmul.f32 %v5141, %v5593
    %v5614 = vmul.f32 %v5142, %v5594
    %v5615 = vmul.f32 %v5143, %v5595
    %v5616 = vmul.f32 %v5144, %v5596
    %v5617 = vmul.f32 %v5145, %v5593
    %v5618 = vmul.f32 %v5146, %v5594
    %v5619 = vmul.f32 %v5147, %v5595
    %v5620 = vmul.f32 %v5148, %v5596
    %v5621 = vadd.f32 %v5605, %v5573
    %v5622 = vadd.f32 %v5606, %v5574
    %v5623 = vadd.f32 %v5607, %v5575
    %v5624 = vadd.f32 %v5608, %v5576
    %v5625 = vadd.f32 %v5609, %v5577
    %v5626 = vadd.f32 %v5610, %v5578
    %v5627 = vadd.f32 %v5611, %v5579
    %v5628 = vadd.f32 %v5612, %v5580
    %v5629 = vadd.f32 %v5613, %v5581
    %v5630 = vadd.f32 %v5614, %v5582
    %v5631 = vadd.f32 %v5615, %v5583
    %v5632 = vadd.f32 %v5616, %v5584
    %v5633 = vadd.f32 %v5617, %v5585
    %v5634 = vadd.f32 %v5618, %v5586
    %v5635 = vadd.f32 %v5619, %v5587
    %v5636 = vadd.f32 %v5620, %v5588
    %5637 = vst [vmem:[%s6] sm:$0xff] %v5621
    %5638 = vst [vmem:[%s6 + $0x8] sm:$0xff] %v5622
    %5639 = vst [vmem:[%s6 + $0x10] sm:$0xff] %v5623
    %5640 = vst [vmem:[%s6 + $0x18] sm:$0xff] %v5624
    %5641 = vst [vmem:[%s6 + $0x20] sm:$0xff] %v5625
    %5642 = vst [vmem:[%s6 + $0x28] sm:$0xff] %v5626
    %5643 = vst [vmem:[%s6 + $0x30] sm:$0xff] %v5627
    %5644 = vst [vmem:[%s6 + $0x38] sm:$0xff] %v5628
    %5645 = vst [vmem:[%s6 + $0x40] sm:$0xff] %v5629
    %5646 = vst [vmem:[%s6 + $0x48] sm:$0xff] %v5630
    %5647 = vst [vmem:[%s6 + $0x50] sm:$0xff] %v5631
    %5648 = vst [vmem:[%s6 + $0x58] sm:$0xff] %v5632
    %5649 = vst [vmem:[%s6 + $0x60] sm:$0xff] %v5633
    %5650 = vst [vmem:[%s6 + $0x68] sm:$0xff] %v5634
    %5651 = vst [vmem:[%s6 + $0x70] sm:$0xff] %v5635
    %5652 = vst [vmem:[%s6 + $0x78] sm:$0xff] %v5636
    // Predicated region
    $region42: #{rcab_forward.1} parent=1 // pred_check
      _
    $region43: #{rcab_forward.1} parent=1 // pred_check_branch
      %5654 = sbr.rel (0) target = $region45
    $region44: #{rcab_forward.1} parent=1 // pred_region
      _
    $region45: #{rcab_forward.1} parent=1 // pred_fallthru
      _
    // Predicated region
    $region46: #{rcab_forward.1} parent=1 // pred_check
      _
    $region47: #{rcab_forward.1} parent=1 // pred_check_branch
      %5656 = sbr.rel (0) target = $region49
    $region48: #{rcab_forward.1} parent=1 // pred_region
      _
    $region49: #{rcab_forward.1} parent=1 // pred_fallthru
      _
    %5657 = vsyncpa [#allocation5], 1
    %5658 = vsyncpa [#allocation7], 1
    %5659 = vsyncpa [#allocation10], 1

</llo_original>
